<compile_context>
chip_gen: v7x
topology: tpu7x:2x2x1
jax: 0.10.0
libtpu: 0.0.40
codegen_flags: <defaults>
</compile_context>

<pallas_src>
import numpy as np
import jax
import jax.numpy as jnp
from jax import lax
from jax.experimental import pallas as pl
from jax.experimental.pallas import tpu as pltpu

H = W = 16
HW = H * W
IN_C = 3
FEAT = 64            # stand-in for backbone.num_features (2560 in real EfficientNet-B7)
RED = 16             # CBAM reduction_ratio
HID = FEAT // RED    # 4
NUM_CLASSES = 5


# ----------------------------------------------------------------------------
# Glue: dense shift matrices that express a zero-padded conv tap as a matmul.
# ----------------------------------------------------------------------------
def _shift_matrix(h, w, dy, dx):
    """(HW, HW) matrix: out[p] = in[p shifted by (dy, dx)], zero padded."""
    m = np.zeros((h * w, h * w), np.float32)
    for i in range(h):
        for j in range(w):
            ii, jj = i + dy, j + dx
            if 0 <= ii < h and 0 <= jj < w:
                m[i * w + j, ii * w + jj] = 1.0
    return m


# ----------------------------------------------------------------------------
# Fused kernel: attention gate -> domain 3x3 convs -> backbone stand-in stem
#               -> CBAM (channel + spatial) -> global avg pool -> classifier
# All per-image tensors are [channels, HW]  (spatial on lanes).
# ----------------------------------------------------------------------------
def fused_kernel(x_ref, aw_ref, ab_ref, st_ref, wu_ref, wb_ref, bsum_ref,
                 stw_ref, stb_ref, w1_ref, b1_ref, w2_ref, b2_ref,
                 asp_ref, sab_ref, clw_ref, clb_ref, out_ref):
    x = x_ref[0]                                                    # [3, HW]

    # attention gate: w = sigmoid(1x1 conv)
    w = jax.nn.sigmoid(
        jnp.dot(aw_ref[...], x, preferred_element_type=jnp.float32) + ab_ref[...]
    )                                                               # [1, HW]
    xu = x * w
    xb = x * (1.0 - w)

    # domain 3x3 convs: channel-mix per tap (tiny matmuls), then ONE spatial
    # shift matmul per tap; single running accumulator (MRB-friendly on v7x).
    acc = jnp.zeros_like(x)
    for t in range(9):
        v = (jnp.dot(wu_ref[t], xu, preferred_element_type=jnp.float32)
             + jnp.dot(wb_ref[t], xb, preferred_element_type=jnp.float32))  # [3, HW]
        acc = acc + jnp.dot(v, st_ref[t], preferred_element_type=jnp.float32)
    y = acc + bsum_ref[...]                                         # [3, HW]

    # TODO(synk): stand-in for timm EfficientNet-B7 `forward_features`
    # (pretrained multi-stage MBConv backbone) — replaced by 1x1 conv + ReLU.
    feat = jnp.maximum(
        jnp.dot(stw_ref[...], y, preferred_element_type=jnp.float32) + stb_ref[...],
        0.0,
    )                                                               # [FEAT, HW]

    # CBAM channel attention: GAP over spatial -> 1x1 -> ReLU -> 1x1 -> sigmoid
    gap = jnp.mean(feat, axis=1, keepdims=True)                     # [FEAT, 1]
    h = jnp.maximum(
        jnp.dot(w1_ref[...], gap, preferred_element_type=jnp.float32) + b1_ref[...],
        0.0,
    )                                                               # [HID, 1]
    ca = jax.nn.sigmoid(
        jnp.dot(w2_ref[...], h, preferred_element_type=jnp.float32) + b2_ref[...]
    )                                                               # [FEAT, 1]
    xc = feat * ca

    # CBAM spatial attention: max/mean over channels -> fused 7x7 conv matmul
    mx = jnp.max(xc, axis=0, keepdims=True)                         # [1, HW]
    av = jnp.mean(xc, axis=0, keepdims=True)                        # [1, HW]
    cat = jnp.concatenate([mx, av], axis=1)                         # [1, 2*HW]
    sa = jax.nn.sigmoid(
        jnp.dot(cat, asp_ref[...], preferred_element_type=jnp.float32) + sab_ref[...]
    )                                                               # [1, HW]
    xs = xc * sa

    # global avg pool + classifier
    pooled = jnp.mean(xs, axis=1, keepdims=True)                    # [FEAT, 1]
    logits = (jnp.dot(clw_ref[...], pooled, preferred_element_type=jnp.float32)
              + clb_ref[...])                                       # [NC, 1]
    out_ref[0] = logits


# ----------------------------------------------------------------------------
# Parameter init (deterministic, matches the PyTorch module's shapes)
# ----------------------------------------------------------------------------
def init_params(key):
    ks = jax.random.split(key, 16)
    s = 0.25
    return {
        "attn_w": s * jax.random.normal(ks[0], (1, IN_C, 1, 1), jnp.float32),
        "attn_b": s * jax.random.normal(ks[1], (1,), jnp.float32),
        "uw_w":  s * jax.random.normal(ks[2], (IN_C, IN_C, 3, 3), jnp.float32),
        "uw_b":  s * jax.random.normal(ks[3], (IN_C,), jnp.float32),
        "bc_w":  s * jax.random.normal(ks[4], (IN_C, IN_C, 3, 3), jnp.float32),
        "bc_b":  s * jax.random.normal(ks[5], (IN_C,), jnp.float32),
        "stem_w": s * jax.random.normal(ks[6], (FEAT, IN_C, 1, 1), jnp.float32),
        "stem_b": s * jax.random.normal(ks[7], (FEAT,), jnp.float32),
        "ca_w1": s * jax.random.normal(ks[8], (HID, FEAT, 1, 1), jnp.float32),
        "ca_b1": s * jax.random.normal(ks[9], (HID,), jnp.float32),
        "ca_w2": s * jax.random.normal(ks[10], (FEAT, HID, 1, 1), jnp.float32),
        "ca_b2": s * jax.random.normal(ks[11], (FEAT,), jnp.float32),
        "sa_w":  s * jax.random.normal(ks[12], (1, 2, 7, 7), jnp.float32),
        "sa_b":  s * jax.random.normal(ks[13], (1,), jnp.float32),
        "cls_w": s * jax.random.normal(ks[14], (NUM_CLASSES, FEAT), jnp.float32),
        "cls_b": s * jax.random.normal(ks[15], (NUM_CLASSES,), jnp.float32),
    }


def build_operands(p):
    """Host-side (hoisted, call once): dense operators in the [C, HW] layout."""
    n = {k: np.asarray(v, np.float32) for k, v in p.items()}
    ops = {}
    ops["aw"] = n["attn_w"].reshape(1, IN_C)                         # [1,3]
    ops["ab"] = n["attn_b"].reshape(1, 1)
    # shift matrices transposed (right-multiplication in the [C,HW] layout)
    ops["ST"] = np.stack([_shift_matrix(H, W, ky - 1, kx - 1).T
                          for ky in range(3) for kx in range(3)])    # [9,HW,HW]
    ops["WU"] = np.stack([n["uw_w"][:, :, ky, kx]
                          for ky in range(3) for kx in range(3)])    # [9,co,ci]
    ops["WB"] = np.stack([n["bc_w"][:, :, ky, kx]
                          for ky in range(3) for kx in range(3)])
    ops["bsum"] = (n["uw_b"] + n["bc_b"]).reshape(IN_C, 1)
    ops["stemW"] = n["stem_w"][:, :, 0, 0]                           # [FEAT,3]
    ops["stemB"] = n["stem_b"].reshape(FEAT, 1)
    ops["caW1"] = n["ca_w1"][:, :, 0, 0]                             # [HID,FEAT]
    ops["caB1"] = n["ca_b1"].reshape(HID, 1)
    ops["caW2"] = n["ca_w2"][:, :, 0, 0]                             # [FEAT,HID]
    ops["caB2"] = n["ca_b2"].reshape(FEAT, 1)
    # fused 7x7 spatial-attention operator: [2*HW, HW]
    amax = np.zeros((HW, HW), np.float32)
    aavg = np.zeros((HW, HW), np.float32)
    for ky in range(7):
        for kx in range(7):
            sh = _shift_matrix(H, W, ky - 3, kx - 3)
            amax += n["sa_w"][0, 0, ky, kx] * sh
            aavg += n["sa_w"][0, 1, ky, kx] * sh
    ops["Asp"] = np.concatenate([amax.T, aavg.T], axis=0)            # [2*HW,HW]
    ops["sab"] = n["sa_b"].reshape(1, 1)
    ops["clw"] = n["cls_w"]                                          # [NC,FEAT]
    ops["clb"] = n["cls_b"].reshape(NUM_CLASSES, 1)
    return {k: jnp.asarray(v) for k, v in ops.items()}


# ----------------------------------------------------------------------------
# pallas_call wrapper (single fused kernel, grid over batch)
# ----------------------------------------------------------------------------
def custom_efficientnet_b7_forward(x_nchw, ops):
    n = x_nchw.shape[0]
    x_t = x_nchw.reshape(n, IN_C, HW)          # NCHW -> [N, C, HW] (no transpose needed)

    const2 = lambda i: (0, 0)
    const3 = lambda i: (0, 0, 0)
    out = pl.pallas_call(
        fused_kernel,
        out_shape=jax.ShapeDtypeStruct((n, NUM_CLASSES, 1), jnp.float32),
        grid=(n,),
        in_specs=[
            pl.BlockSpec((1, IN_C, HW), lambda i: (i, 0, 0)),        # x
            pl.BlockSpec((1, IN_C), const2),                         # aw
            pl.BlockSpec((1, 1), const2),                            # ab
            pl.BlockSpec((9, HW, HW), const3),                       # ST
            pl.BlockSpec((9, IN_C, IN_C), const3),                   # WU
            pl.BlockSpec((9, IN_C, IN_C), const3),                   # WB
            pl.BlockSpec((IN_C, 1), const2),                         # bsum
            pl.BlockSpec((FEAT, IN_C), const2),                      # stemW
            pl.BlockSpec((FEAT, 1), const2),                         # stemB
            pl.BlockSpec((HID, FEAT), const2),                       # caW1
            pl.BlockSpec((HID, 1), const2),                          # caB1
            pl.BlockSpec((FEAT, HID), const2),                       # caW2
            pl.BlockSpec((FEAT, 1), const2),                         # caB2
            pl.BlockSpec((2 * HW, HW), const2),                      # Asp
            pl.BlockSpec((1, 1), const2),                            # sab
            pl.BlockSpec((NUM_CLASSES, FEAT), const2),               # clw
            pl.BlockSpec((NUM_CLASSES, 1), const2),                  # clb
        ],
        out_specs=pl.BlockSpec((1, NUM_CLASSES, 1), lambda i: (i, 0, 0)),
        compiler_params=pltpu.CompilerParams(dimension_semantics=("parallel",)),
    )(x_t, ops["aw"], ops["ab"], ops["ST"], ops["WU"], ops["WB"], ops["bsum"],
      ops["stemW"], ops["stemB"], ops["caW1"], ops["caB1"], ops["caW2"],
      ops["caB2"], ops["Asp"], ops["sab"], ops["clw"], ops["clb"])
    return out.reshape(n, NUM_CLASSES)


# ----------------------------------------------------------------------------
# Pure-JAX (NCHW, real convs) reference for correctness checking
# ----------------------------------------------------------------------------
def _conv(x, w, b, pad):
    out = lax.conv_general_dilated(
        x, w, window_strides=(1, 1), padding=[(pad, pad), (pad, pad)],
        dimension_numbers=("NCHW", "OIHW", "NCHW"),
        precision=lax.Precision.HIGHEST)
    return out + b.reshape(1, -1, 1, 1)


def reference_forward(x, p):
    w = jax.nn.sigmoid(_conv(x, p["attn_w"], p["attn_b"], 0))
    u = _conv(x * w, p["uw_w"], p["uw_b"], 1)
    b = _conv(x * (1.0 - w), p["bc_w"], p["bc_b"], 1)
    y = u + b
    feat = jax.nn.relu(_conv(y, p["stem_w"], p["stem_b"], 0))        # backbone stand-in
    gap = jnp.mean(feat, axis=(2, 3), keepdims=True)
    h = jax.nn.relu(_conv(gap, p["ca_w1"], p["ca_b1"], 0))
    ca = jax.nn.sigmoid(_conv(h, p["ca_w2"], p["ca_b2"], 0))
    xc = feat * ca
    mx = jnp.max(xc, axis=1, keepdims=True)
    av = jnp.mean(xc, axis=1, keepdims=True)
    sa = jax.nn.sigmoid(_conv(jnp.concatenate([mx, av], axis=1), p["sa_w"], p["sa_b"], 3))
    xs = xc * sa
    pooled = jnp.mean(xs, axis=(2, 3))
    return pooled @ p["cls_w"].T + p["cls_b"]


if __name__ == "__main__":
    key = jax.random.PRNGKey(0)
    kx, kp = jax.random.split(key)
    x = jax.random.normal(kx, (2, IN_C, H, W), jnp.float32)
    params = init_params(kp)

    # hoist operand construction out of the forward; jit the forward itself
    ops = build_operands(params)
    forward = jax.jit(custom_efficientnet_b7_forward)

    logits = forward(x, ops)
    logits = jax.block_until_ready(logits)
    assert logits.shape == (2, NUM_CLASSES)

    ref = np.asarray(reference_forward(x, params))
    got = np.asarray(logits)
    if not np.allclose(got, ref, rtol=1e-2, atol=1e-3):
        raise SystemExit("mismatch: max abs err %.3e" % float(np.max(np.abs(got - ref))))
    print("KERNEL_OK")
</pallas_src>

<mosaic_0001>
module attributes {stable_mosaic.version = 11 : i64} {
  func.func @fused_kernel(%arg0: i32, %arg1: memref<1x3x256xf32, #tpu.memory_space<vmem>>, %arg2: memref<1x3xf32, #tpu.memory_space<vmem>>, %arg3: memref<1x1xf32, #tpu.memory_space<vmem>>, %arg4: memref<9x256x256xf32, #tpu.memory_space<vmem>>, %arg5: memref<9x3x3xf32, #tpu.memory_space<vmem>>, %arg6: memref<9x3x3xf32, #tpu.memory_space<vmem>>, %arg7: memref<3x1xf32, #tpu.memory_space<vmem>>, %arg8: memref<64x3xf32, #tpu.memory_space<vmem>>, %arg9: memref<64x1xf32, #tpu.memory_space<vmem>>, %arg10: memref<4x64xf32, #tpu.memory_space<vmem>>, %arg11: memref<4x1xf32, #tpu.memory_space<vmem>>, %arg12: memref<64x4xf32, #tpu.memory_space<vmem>>, %arg13: memref<64x1xf32, #tpu.memory_space<vmem>>, %arg14: memref<512x256xf32, #tpu.memory_space<vmem>>, %arg15: memref<1x1xf32, #tpu.memory_space<vmem>>, %arg16: memref<5x64xf32, #tpu.memory_space<vmem>>, %arg17: memref<5x1xf32, #tpu.memory_space<vmem>>, %arg18: memref<1x5x1xf32, #tpu.memory_space<vmem>>) attributes {dimension_semantics = [#tpu.dimension_semantics<parallel>], iteration_bounds = array<i64: 2>, scalar_prefetch = 0 : i64, scratch_operands = 0 : i64, tpu.core_type = #tpu.core_type<tc>, window_params = [{transform_indices = @transform_0, window_bounds = array<i64: 1, 3, 256>}, {pipeline_mode = #tpu.pipeline_mode<synchronous>, transform_indices = @transform_1, window_bounds = array<i64: 1, 3>}, {pipeline_mode = #tpu.pipeline_mode<synchronous>, transform_indices = @transform_2, window_bounds = array<i64: 1, 1>}, {pipeline_mode = #tpu.pipeline_mode<synchronous>, transform_indices = @transform_3, window_bounds = array<i64: 9, 256, 256>}, {pipeline_mode = #tpu.pipeline_mode<synchronous>, transform_indices = @transform_4, window_bounds = array<i64: 9, 3, 3>}, {pipeline_mode = #tpu.pipeline_mode<synchronous>, transform_indices = @transform_5, window_bounds = array<i64: 9, 3, 3>}, {pipeline_mode = #tpu.pipeline_mode<synchronous>, transform_indices = @transform_6, window_bounds = array<i64: 3, 1>}, {pipeline_mode = #tpu.pipeline_mode<synchronous>, transform_indices = @transform_7, window_bounds = array<i64: 64, 3>}, {pipeline_mode = #tpu.pipeline_mode<synchronous>, transform_indices = @transform_8, window_bounds = array<i64: 64, 1>}, {pipeline_mode = #tpu.pipeline_mode<synchronous>, transform_indices = @transform_9, window_bounds = array<i64: 4, 64>}, {pipeline_mode = #tpu.pipeline_mode<synchronous>, transform_indices = @transform_10, window_bounds = array<i64: 4, 1>}, {pipeline_mode = #tpu.pipeline_mode<synchronous>, transform_indices = @transform_11, window_bounds = array<i64: 64, 4>}, {pipeline_mode = #tpu.pipeline_mode<synchronous>, transform_indices = @transform_12, window_bounds = array<i64: 64, 1>}, {pipeline_mode = #tpu.pipeline_mode<synchronous>, transform_indices = @transform_13, window_bounds = array<i64: 512, 256>}, {pipeline_mode = #tpu.pipeline_mode<synchronous>, transform_indices = @transform_14, window_bounds = array<i64: 1, 1>}, {pipeline_mode = #tpu.pipeline_mode<synchronous>, transform_indices = @transform_15, window_bounds = array<i64: 5, 64>}, {pipeline_mode = #tpu.pipeline_mode<synchronous>, transform_indices = @transform_16, window_bounds = array<i64: 5, 1>}, {transform_indices = @transform_17, window_bounds = array<i64: 1, 5, 1>}]} {
    %c0 = arith.constant 0 : index
    %c0_0 = arith.constant 0 : index
    %c0_1 = arith.constant 0 : index
    %0 = vector.load %arg1[%c0, %c0_0, %c0_1] : memref<1x3x256xf32, #tpu.memory_space<vmem>>, vector<1x3x256xf32>
    %1 = vector.shape_cast %0 : vector<1x3x256xf32> to vector<3x256xf32>
    %c0_2 = arith.constant 0 : index
    %c0_3 = arith.constant 0 : index
    %2 = vector.load %arg2[%c0_2, %c0_3] : memref<1x3xf32, #tpu.memory_space<vmem>>, vector<1x3xf32>
    %cst = arith.constant dense<0.000000e+00> : vector<1x256xf32>
    %3 = tpu.matmul %2, %1, %cst {dimension_numbers = #tpu.dot_dimension_numbers<[1], [0], [0], [1], [0, 0, 1, 1], [], []>} : vector<1x3xf32>, vector<3x256xf32>, vector<1x256xf32> -> vector<1x256xf32>
    %c0_4 = arith.constant 0 : index
    %c0_5 = arith.constant 0 : index
    %4 = vector.load %arg3[%c0_4, %c0_5] : memref<1x1xf32, #tpu.memory_space<vmem>>, vector<1x1xf32>
    %5 = vector.broadcast %4 : vector<1x1xf32> to vector<1x256xf32>
    %6 = arith.addf %3, %5 : vector<1x256xf32>
    %7 = arith.negf %6 : vector<1x256xf32>
    %8 = math.exp %7 : vector<1x256xf32>
    %cst_6 = arith.constant 1.000000e+00 : f32
    %9 = vector.broadcast %cst_6 : f32 to vector<1x256xf32>
    %10 = arith.addf %9, %8 : vector<1x256xf32>
    %11 = arith.divf %9, %10 : vector<1x256xf32>
    %12 = vector.broadcast %11 : vector<1x256xf32> to vector<3x256xf32>
    %13 = arith.mulf %1, %12 : vector<3x256xf32>
    %cst_7 = arith.constant 1.000000e+00 : f32
    %14 = vector.broadcast %cst_7 : f32 to vector<1x256xf32>
    %15 = arith.subf %14, %11 : vector<1x256xf32>
    %16 = vector.broadcast %15 : vector<1x256xf32> to vector<3x256xf32>
    %17 = arith.mulf %1, %16 : vector<3x256xf32>
    %cst_8 = arith.constant 0.000000e+00 : f32
    %18 = vector.broadcast %cst_8 : f32 to vector<3x256xf32>
    %c0_9 = arith.constant 0 : index
    %c0_10 = arith.constant 0 : index
    %c0_11 = arith.constant 0 : index
    %19 = vector.load %arg5[%c0_9, %c0_10, %c0_11] : memref<9x3x3xf32, #tpu.memory_space<vmem>>, vector<1x3x3xf32>
    %20 = vector.shape_cast %19 : vector<1x3x3xf32> to vector<3x3xf32>
    %cst_12 = arith.constant dense<0.000000e+00> : vector<3x256xf32>
    %21 = tpu.matmul %20, %13, %cst_12 {dimension_numbers = #tpu.dot_dimension_numbers<[1], [0], [0], [1], [0, 0, 1, 1], [], []>} : vector<3x3xf32>, vector<3x256xf32>, vector<3x256xf32> -> vector<3x256xf32>
    %c0_13 = arith.constant 0 : index
    %c0_14 = arith.constant 0 : index
    %c0_15 = arith.constant 0 : index
    %22 = vector.load %arg6[%c0_13, %c0_14, %c0_15] : memref<9x3x3xf32, #tpu.memory_space<vmem>>, vector<1x3x3xf32>
    %23 = vector.shape_cast %22 : vector<1x3x3xf32> to vector<3x3xf32>
    %cst_16 = arith.constant dense<0.000000e+00> : vector<3x256xf32>
    %24 = tpu.matmul %23, %17, %cst_16 {dimension_numbers = #tpu.dot_dimension_numbers<[1], [0], [0], [1], [0, 0, 1, 1], [], []>} : vector<3x3xf32>, vector<3x256xf32>, vector<3x256xf32> -> vector<3x256xf32>
    %25 = arith.addf %21, %24 : vector<3x256xf32>
    %c0_17 = arith.constant 0 : index
    %c0_18 = arith.constant 0 : index
    %c0_19 = arith.constant 0 : index
    %26 = vector.load %arg4[%c0_17, %c0_18, %c0_19] : memref<9x256x256xf32, #tpu.memory_space<vmem>>, vector<1x256x256xf32>
    %27 = vector.shape_cast %26 : vector<1x256x256xf32> to vector<256x256xf32>
    %cst_20 = arith.constant dense<0.000000e+00> : vector<3x256xf32>
    %28 = tpu.matmul %25, %27, %cst_20 {dimension_numbers = #tpu.dot_dimension_numbers<[1], [0], [0], [1], [0, 0, 1, 1], [], []>} : vector<3x256xf32>, vector<256x256xf32>, vector<3x256xf32> -> vector<3x256xf32>
    %29 = arith.addf %18, %28 : vector<3x256xf32>
    %c1 = arith.constant 1 : index
    %c0_21 = arith.constant 0 : index
    %c0_22 = arith.constant 0 : index
    %30 = vector.load %arg5[%c1, %c0_21, %c0_22] : memref<9x3x3xf32, #tpu.memory_space<vmem>>, vector<1x3x3xf32>
    %31 = vector.shape_cast %30 : vector<1x3x3xf32> to vector<3x3xf32>
    %cst_23 = arith.constant dense<0.000000e+00> : vector<3x256xf32>
    %32 = tpu.matmul %31, %13, %cst_23 {dimension_numbers = #tpu.dot_dimension_numbers<[1], [0], [0], [1], [0, 0, 1, 1], [], []>} : vector<3x3xf32>, vector<3x256xf32>, vector<3x256xf32> -> vector<3x256xf32>
    %c1_24 = arith.constant 1 : index
    %c0_25 = arith.constant 0 : index
    %c0_26 = arith.constant 0 : index
    %33 = vector.load %arg6[%c1_24, %c0_25, %c0_26] : memref<9x3x3xf32, #tpu.memory_space<vmem>>, vector<1x3x3xf32>
    %34 = vector.shape_cast %33 : vector<1x3x3xf32> to vector<3x3xf32>
    %cst_27 = arith.constant dense<0.000000e+00> : vector<3x256xf32>
    %35 = tpu.matmul %34, %17, %cst_27 {dimension_numbers = #tpu.dot_dimension_numbers<[1], [0], [0], [1], [0, 0, 1, 1], [], []>} : vector<3x3xf32>, vector<3x256xf32>, vector<3x256xf32> -> vector<3x256xf32>
    %36 = arith.addf %32, %35 : vector<3x256xf32>
    %c1_28 = arith.constant 1 : index
    %c0_29 = arith.constant 0 : index
    %c0_30 = arith.constant 0 : index
    %37 = vector.load %arg4[%c1_28, %c0_29, %c0_30] : memref<9x256x256xf32, #tpu.memory_space<vmem>>, vector<1x256x256xf32>
    %38 = vector.shape_cast %37 : vector<1x256x256xf32> to vector<256x256xf32>
    %cst_31 = arith.constant dense<0.000000e+00> : vector<3x256xf32>
    %39 = tpu.matmul %36, %38, %cst_31 {dimension_numbers = #tpu.dot_dimension_numbers<[1], [0], [0], [1], [0, 0, 1, 1], [], []>} : vector<3x256xf32>, vector<256x256xf32>, vector<3x256xf32> -> vector<3x256xf32>
    %40 = arith.addf %29, %39 : vector<3x256xf32>
    %c2 = arith.constant 2 : index
    %c0_32 = arith.constant 0 : index
    %c0_33 = arith.constant 0 : index
    %41 = vector.load %arg5[%c2, %c0_32, %c0_33] : memref<9x3x3xf32, #tpu.memory_space<vmem>>, vector<1x3x3xf32>
    %42 = vector.shape_cast %41 : vector<1x3x3xf32> to vector<3x3xf32>
    %cst_34 = arith.constant dense<0.000000e+00> : vector<3x256xf32>
    %43 = tpu.matmul %42, %13, %cst_34 {dimension_numbers = #tpu.dot_dimension_numbers<[1], [0], [0], [1], [0, 0, 1, 1], [], []>} : vector<3x3xf32>, vector<3x256xf32>, vector<3x256xf32> -> vector<3x256xf32>
    %c2_35 = arith.constant 2 : index
    %c0_36 = arith.constant 0 : index
    %c0_37 = arith.constant 0 : index
    %44 = vector.load %arg6[%c2_35, %c0_36, %c0_37] : memref<9x3x3xf32, #tpu.memory_space<vmem>>, vector<1x3x3xf32>
    %45 = vector.shape_cast %44 : vector<1x3x3xf32> to vector<3x3xf32>
    %cst_38 = arith.constant dense<0.000000e+00> : vector<3x256xf32>
    %46 = tpu.matmul %45, %17, %cst_38 {dimension_numbers = #tpu.dot_dimension_numbers<[1], [0], [0], [1], [0, 0, 1, 1], [], []>} : vector<3x3xf32>, vector<3x256xf32>, vector<3x256xf32> -> vector<3x256xf32>
    %47 = arith.addf %43, %46 : vector<3x256xf32>
    %c2_39 = arith.constant 2 : index
    %c0_40 = arith.constant 0 : index
    %c0_41 = arith.constant 0 : index
    %48 = vector.load %arg4[%c2_39, %c0_40, %c0_41] : memref<9x256x256xf32, #tpu.memory_space<vmem>>, vector<1x256x256xf32>
    %49 = vector.shape_cast %48 : vector<1x256x256xf32> to vector<256x256xf32>
    %cst_42 = arith.constant dense<0.000000e+00> : vector<3x256xf32>
    %50 = tpu.matmul %47, %49, %cst_42 {dimension_numbers = #tpu.dot_dimension_numbers<[1], [0], [0], [1], [0, 0, 1, 1], [], []>} : vector<3x256xf32>, vector<256x256xf32>, vector<3x256xf32> -> vector<3x256xf32>
    %51 = arith.addf %40, %50 : vector<3x256xf32>
    %c3 = arith.constant 3 : index
    %c0_43 = arith.constant 0 : index
    %c0_44 = arith.constant 0 : index
    %52 = vector.load %arg5[%c3, %c0_43, %c0_44] : memref<9x3x3xf32, #tpu.memory_space<vmem>>, vector<1x3x3xf32>
    %53 = vector.shape_cast %52 : vector<1x3x3xf32> to vector<3x3xf32>
    %cst_45 = arith.constant dense<0.000000e+00> : vector<3x256xf32>
    %54 = tpu.matmul %53, %13, %cst_45 {dimension_numbers = #tpu.dot_dimension_numbers<[1], [0], [0], [1], [0, 0, 1, 1], [], []>} : vector<3x3xf32>, vector<3x256xf32>, vector<3x256xf32> -> vector<3x256xf32>
    %c3_46 = arith.constant 3 : index
    %c0_47 = arith.constant 0 : index
    %c0_48 = arith.constant 0 : index
    %55 = vector.load %arg6[%c3_46, %c0_47, %c0_48] : memref<9x3x3xf32, #tpu.memory_space<vmem>>, vector<1x3x3xf32>
    %56 = vector.shape_cast %55 : vector<1x3x3xf32> to vector<3x3xf32>
    %cst_49 = arith.constant dense<0.000000e+00> : vector<3x256xf32>
    %57 = tpu.matmul %56, %17, %cst_49 {dimension_numbers = #tpu.dot_dimension_numbers<[1], [0], [0], [1], [0, 0, 1, 1], [], []>} : vector<3x3xf32>, vector<3x256xf32>, vector<3x256xf32> -> vector<3x256xf32>
    %58 = arith.addf %54, %57 : vector<3x256xf32>
    %c3_50 = arith.constant 3 : index
    %c0_51 = arith.constant 0 : index
    %c0_52 = arith.constant 0 : index
    %59 = vector.load %arg4[%c3_50, %c0_51, %c0_52] : memref<9x256x256xf32, #tpu.memory_space<vmem>>, vector<1x256x256xf32>
    %60 = vector.shape_cast %59 : vector<1x256x256xf32> to vector<256x256xf32>
    %cst_53 = arith.constant dense<0.000000e+00> : vector<3x256xf32>
    %61 = tpu.matmul %58, %60, %cst_53 {dimension_numbers = #tpu.dot_dimension_numbers<[1], [0], [0], [1], [0, 0, 1, 1], [], []>} : vector<3x256xf32>, vector<256x256xf32>, vector<3x256xf32> -> vector<3x256xf32>
    %62 = arith.addf %51, %61 : vector<3x256xf32>
    %c4 = arith.constant 4 : index
    %c0_54 = arith.constant 0 : index
    %c0_55 = arith.constant 0 : index
    %63 = vector.load %arg5[%c4, %c0_54, %c0_55] : memref<9x3x3xf32, #tpu.memory_space<vmem>>, vector<1x3x3xf32>
    %64 = vector.shape_cast %63 : vector<1x3x3xf32> to vector<3x3xf32>
    %cst_56 = arith.constant dense<0.000000e+00> : vector<3x256xf32>
    %65 = tpu.matmul %64, %13, %cst_56 {dimension_numbers = #tpu.dot_dimension_numbers<[1], [0], [0], [1], [0, 0, 1, 1], [], []>} : vector<3x3xf32>, vector<3x256xf32>, vector<3x256xf32> -> vector<3x256xf32>
    %c4_57 = arith.constant 4 : index
    %c0_58 = arith.constant 0 : index
    %c0_59 = arith.constant 0 : index
    %66 = vector.load %arg6[%c4_57, %c0_58, %c0_59] : memref<9x3x3xf32, #tpu.memory_space<vmem>>, vector<1x3x3xf32>
    %67 = vector.shape_cast %66 : vector<1x3x3xf32> to vector<3x3xf32>
    %cst_60 = arith.constant dense<0.000000e+00> : vector<3x256xf32>
    %68 = tpu.matmul %67, %17, %cst_60 {dimension_numbers = #tpu.dot_dimension_numbers<[1], [0], [0], [1], [0, 0, 1, 1], [], []>} : vector<3x3xf32>, vector<3x256xf32>, vector<3x256xf32> -> vector<3x256xf32>
    %69 = arith.addf %65, %68 : vector<3x256xf32>
    %c4_61 = arith.constant 4 : index
    %c0_62 = arith.constant 0 : index
    %c0_63 = arith.constant 0 : index
    %70 = vector.load %arg4[%c4_61, %c0_62, %c0_63] : memref<9x256x256xf32, #tpu.memory_space<vmem>>, vector<1x256x256xf32>
    %71 = vector.shape_cast %70 : vector<1x256x256xf32> to vector<256x256xf32>
    %cst_64 = arith.constant dense<0.000000e+00> : vector<3x256xf32>
    %72 = tpu.matmul %69, %71, %cst_64 {dimension_numbers = #tpu.dot_dimension_numbers<[1], [0], [0], [1], [0, 0, 1, 1], [], []>} : vector<3x256xf32>, vector<256x256xf32>, vector<3x256xf32> -> vector<3x256xf32>
    %73 = arith.addf %62, %72 : vector<3x256xf32>
    %c5 = arith.constant 5 : index
    %c0_65 = arith.constant 0 : index
    %c0_66 = arith.constant 0 : index
    %74 = vector.load %arg5[%c5, %c0_65, %c0_66] : memref<9x3x3xf32, #tpu.memory_space<vmem>>, vector<1x3x3xf32>
    %75 = vector.shape_cast %74 : vector<1x3x3xf32> to vector<3x3xf32>
    %cst_67 = arith.constant dense<0.000000e+00> : vector<3x256xf32>
    %76 = tpu.matmul %75, %13, %cst_67 {dimension_numbers = #tpu.dot_dimension_numbers<[1], [0], [0], [1], [0, 0, 1, 1], [], []>} : vector<3x3xf32>, vector<3x256xf32>, vector<3x256xf32> -> vector<3x256xf32>
    %c5_68 = arith.constant 5 : index
    %c0_69 = arith.constant 0 : index
    %c0_70 = arith.constant 0 : index
    %77 = vector.load %arg6[%c5_68, %c0_69, %c0_70] : memref<9x3x3xf32, #tpu.memory_space<vmem>>, vector<1x3x3xf32>
    %78 = vector.shape_cast %77 : vector<1x3x3xf32> to vector<3x3xf32>
    %cst_71 = arith.constant dense<0.000000e+00> : vector<3x256xf32>
    %79 = tpu.matmul %78, %17, %cst_71 {dimension_numbers = #tpu.dot_dimension_numbers<[1], [0], [0], [1], [0, 0, 1, 1], [], []>} : vector<3x3xf32>, vector<3x256xf32>, vector<3x256xf32> -> vector<3x256xf32>
    %80 = arith.addf %76, %79 : vector<3x256xf32>
    %c5_72 = arith.constant 5 : index
    %c0_73 = arith.constant 0 : index
    %c0_74 = arith.constant 0 : index
    %81 = vector.load %arg4[%c5_72, %c0_73, %c0_74] : memref<9x256x256xf32, #tpu.memory_space<vmem>>, vector<1x256x256xf32>
    %82 = vector.shape_cast %81 : vector<1x256x256xf32> to vector<256x256xf32>
    %cst_75 = arith.constant dense<0.000000e+00> : vector<3x256xf32>
    %83 = tpu.matmul %80, %82, %cst_75 {dimension_numbers = #tpu.dot_dimension_numbers<[1], [0], [0], [1], [0, 0, 1, 1], [], []>} : vector<3x256xf32>, vector<256x256xf32>, vector<3x256xf32> -> vector<3x256xf32>
    %84 = arith.addf %73, %83 : vector<3x256xf32>
    %c6 = arith.constant 6 : index
    %c0_76 = arith.constant 0 : index
    %c0_77 = arith.constant 0 : index
    %85 = vector.load %arg5[%c6, %c0_76, %c0_77] : memref<9x3x3xf32, #tpu.memory_space<vmem>>, vector<1x3x3xf32>
    %86 = vector.shape_cast %85 : vector<1x3x3xf32> to vector<3x3xf32>
    %cst_78 = arith.constant dense<0.000000e+00> : vector<3x256xf32>
    %87 = tpu.matmul %86, %13, %cst_78 {dimension_numbers = #tpu.dot_dimension_numbers<[1], [0], [0], [1], [0, 0, 1, 1], [], []>} : vector<3x3xf32>, vector<3x256xf32>, vector<3x256xf32> -> vector<3x256xf32>
    %c6_79 = arith.constant 6 : index
    %c0_80 = arith.constant 0 : index
    %c0_81 = arith.constant 0 : index
    %88 = vector.load %arg6[%c6_79, %c0_80, %c0_81] : memref<9x3x3xf32, #tpu.memory_space<vmem>>, vector<1x3x3xf32>
    %89 = vector.shape_cast %88 : vector<1x3x3xf32> to vector<3x3xf32>
    %cst_82 = arith.constant dense<0.000000e+00> : vector<3x256xf32>
    %90 = tpu.matmul %89, %17, %cst_82 {dimension_numbers = #tpu.dot_dimension_numbers<[1], [0], [0], [1], [0, 0, 1, 1], [], []>} : vector<3x3xf32>, vector<3x256xf32>, vector<3x256xf32> -> vector<3x256xf32>
    %91 = arith.addf %87, %90 : vector<3x256xf32>
    %c6_83 = arith.constant 6 : index
    %c0_84 = arith.constant 0 : index
    %c0_85 = arith.constant 0 : index
    %92 = vector.load %arg4[%c6_83, %c0_84, %c0_85] : memref<9x256x256xf32, #tpu.memory_space<vmem>>, vector<1x256x256xf32>
    %93 = vector.shape_cast %92 : vector<1x256x256xf32> to vector<256x256xf32>
    %cst_86 = arith.constant dense<0.000000e+00> : vector<3x256xf32>
    %94 = tpu.matmul %91, %93, %cst_86 {dimension_numbers = #tpu.dot_dimension_numbers<[1], [0], [0], [1], [0, 0, 1, 1], [], []>} : vector<3x256xf32>, vector<256x256xf32>, vector<3x256xf32> -> vector<3x256xf32>
    %95 = arith.addf %84, %94 : vector<3x256xf32>
    %c7 = arith.constant 7 : index
    %c0_87 = arith.constant 0 : index
    %c0_88 = arith.constant 0 : index
    %96 = vector.load %arg5[%c7, %c0_87, %c0_88] : memref<9x3x3xf32, #tpu.memory_space<vmem>>, vector<1x3x3xf32>
    %97 = vector.shape_cast %96 : vector<1x3x3xf32> to vector<3x3xf32>
    %cst_89 = arith.constant dense<0.000000e+00> : vector<3x256xf32>
    %98 = tpu.matmul %97, %13, %cst_89 {dimension_numbers = #tpu.dot_dimension_numbers<[1], [0], [0], [1], [0, 0, 1, 1], [], []>} : vector<3x3xf32>, vector<3x256xf32>, vector<3x256xf32> -> vector<3x256xf32>
    %c7_90 = arith.constant 7 : index
    %c0_91 = arith.constant 0 : index
    %c0_92 = arith.constant 0 : index
    %99 = vector.load %arg6[%c7_90, %c0_91, %c0_92] : memref<9x3x3xf32, #tpu.memory_space<vmem>>, vector<1x3x3xf32>
    %100 = vector.shape_cast %99 : vector<1x3x3xf32> to vector<3x3xf32>
    %cst_93 = arith.constant dense<0.000000e+00> : vector<3x256xf32>
    %101 = tpu.matmul %100, %17, %cst_93 {dimension_numbers = #tpu.dot_dimension_numbers<[1], [0], [0], [1], [0, 0, 1, 1], [], []>} : vector<3x3xf32>, vector<3x256xf32>, vector<3x256xf32> -> vector<3x256xf32>
    %102 = arith.addf %98, %101 : vector<3x256xf32>
    %c7_94 = arith.constant 7 : index
    %c0_95 = arith.constant 0 : index
    %c0_96 = arith.constant 0 : index
    %103 = vector.load %arg4[%c7_94, %c0_95, %c0_96] : memref<9x256x256xf32, #tpu.memory_space<vmem>>, vector<1x256x256xf32>
    %104 = vector.shape_cast %103 : vector<1x256x256xf32> to vector<256x256xf32>
    %cst_97 = arith.constant dense<0.000000e+00> : vector<3x256xf32>
    %105 = tpu.matmul %102, %104, %cst_97 {dimension_numbers = #tpu.dot_dimension_numbers<[1], [0], [0], [1], [0, 0, 1, 1], [], []>} : vector<3x256xf32>, vector<256x256xf32>, vector<3x256xf32> -> vector<3x256xf32>
    %106 = arith.addf %95, %105 : vector<3x256xf32>
    %c8 = arith.constant 8 : index
    %c0_98 = arith.constant 0 : index
    %c0_99 = arith.constant 0 : index
    %107 = vector.load %arg5[%c8, %c0_98, %c0_99] : memref<9x3x3xf32, #tpu.memory_space<vmem>>, vector<1x3x3xf32>
    %108 = vector.shape_cast %107 : vector<1x3x3xf32> to vector<3x3xf32>
    %cst_100 = arith.constant dense<0.000000e+00> : vector<3x256xf32>
    %109 = tpu.matmul %108, %13, %cst_100 {dimension_numbers = #tpu.dot_dimension_numbers<[1], [0], [0], [1], [0, 0, 1, 1], [], []>} : vector<3x3xf32>, vector<3x256xf32>, vector<3x256xf32> -> vector<3x256xf32>
    %c8_101 = arith.constant 8 : index
    %c0_102 = arith.constant 0 : index
    %c0_103 = arith.constant 0 : index
    %110 = vector.load %arg6[%c8_101, %c0_102, %c0_103] : memref<9x3x3xf32, #tpu.memory_space<vmem>>, vector<1x3x3xf32>
    %111 = vector.shape_cast %110 : vector<1x3x3xf32> to vector<3x3xf32>
    %cst_104 = arith.constant dense<0.000000e+00> : vector<3x256xf32>
    %112 = tpu.matmul %111, %17, %cst_104 {dimension_numbers = #tpu.dot_dimension_numbers<[1], [0], [0], [1], [0, 0, 1, 1], [], []>} : vector<3x3xf32>, vector<3x256xf32>, vector<3x256xf32> -> vector<3x256xf32>
    %113 = arith.addf %109, %112 : vector<3x256xf32>
    %c8_105 = arith.constant 8 : index
    %c0_106 = arith.constant 0 : index
    %c0_107 = arith.constant 0 : index
    %114 = vector.load %arg4[%c8_105, %c0_106, %c0_107] : memref<9x256x256xf32, #tpu.memory_space<vmem>>, vector<1x256x256xf32>
    %115 = vector.shape_cast %114 : vector<1x256x256xf32> to vector<256x256xf32>
    %cst_108 = arith.constant dense<0.000000e+00> : vector<3x256xf32>
    %116 = tpu.matmul %113, %115, %cst_108 {dimension_numbers = #tpu.dot_dimension_numbers<[1], [0], [0], [1], [0, 0, 1, 1], [], []>} : vector<3x256xf32>, vector<256x256xf32>, vector<3x256xf32> -> vector<3x256xf32>
    %117 = arith.addf %106, %116 : vector<3x256xf32>
    %c0_109 = arith.constant 0 : index
    %c0_110 = arith.constant 0 : index
    %118 = vector.load %arg7[%c0_109, %c0_110] : memref<3x1xf32, #tpu.memory_space<vmem>>, vector<3x1xf32>
    %119 = vector.broadcast %118 : vector<3x1xf32> to vector<3x256xf32>
    %120 = arith.addf %117, %119 : vector<3x256xf32>
    %c0_111 = arith.constant 0 : index
    %c0_112 = arith.constant 0 : index
    %121 = vector.load %arg8[%c0_111, %c0_112] : memref<64x3xf32, #tpu.memory_space<vmem>>, vector<64x3xf32>
    %cst_113 = arith.constant dense<0.000000e+00> : vector<64x256xf32>
    %122 = tpu.matmul %121, %120, %cst_113 {dimension_numbers = #tpu.dot_dimension_numbers<[1], [0], [0], [1], [0, 0, 1, 1], [], []>} : vector<64x3xf32>, vector<3x256xf32>, vector<64x256xf32> -> vector<64x256xf32>
    %c0_114 = arith.constant 0 : index
    %c0_115 = arith.constant 0 : index
    %123 = vector.load %arg9[%c0_114, %c0_115] : memref<64x1xf32, #tpu.memory_space<vmem>>, vector<64x1xf32>
    %124 = vector.broadcast %123 : vector<64x1xf32> to vector<64x256xf32>
    %125 = arith.addf %122, %124 : vector<64x256xf32>
    %cst_116 = arith.constant 0.000000e+00 : f32
    %126 = vector.broadcast %cst_116 : f32 to vector<64x256xf32>
    %127 = arith.maximumf %125, %126 : vector<64x256xf32>
    %cst_117 = arith.constant dense<0.000000e+00> : vector<64xf32>
    %128 = vector.multi_reduction <add>, %127, %cst_117 [1] : vector<64x256xf32> to vector<64xf32>
    %129 = vector.shape_cast %128 : vector<64xf32> to vector<64x1xf32>
    %cst_118 = arith.constant 2.560000e+02 : f32
    %130 = vector.broadcast %cst_118 : f32 to vector<64x1xf32>
    %131 = arith.divf %129, %130 : vector<64x1xf32>
    %c0_119 = arith.constant 0 : index
    %c0_120 = arith.constant 0 : index
    %132 = vector.load %arg10[%c0_119, %c0_120] : memref<4x64xf32, #tpu.memory_space<vmem>>, vector<4x64xf32>
    %cst_121 = arith.constant dense<0.000000e+00> : vector<4x1xf32>
    %133 = tpu.matmul %132, %131, %cst_121 {dimension_numbers = #tpu.dot_dimension_numbers<[1], [0], [0], [1], [0, 0, 1, 1], [], []>} : vector<4x64xf32>, vector<64x1xf32>, vector<4x1xf32> -> vector<4x1xf32>
    %c0_122 = arith.constant 0 : index
    %c0_123 = arith.constant 0 : index
    %134 = vector.load %arg11[%c0_122, %c0_123] : memref<4x1xf32, #tpu.memory_space<vmem>>, vector<4x1xf32>
    %135 = arith.addf %133, %134 : vector<4x1xf32>
    %cst_124 = arith.constant 0.000000e+00 : f32
    %136 = vector.broadcast %cst_124 : f32 to vector<4x1xf32>
    %137 = arith.maximumf %135, %136 : vector<4x1xf32>
    %c0_125 = arith.constant 0 : index
    %c0_126 = arith.constant 0 : index
    %138 = vector.load %arg12[%c0_125, %c0_126] : memref<64x4xf32, #tpu.memory_space<vmem>>, vector<64x4xf32>
    %cst_127 = arith.constant dense<0.000000e+00> : vector<64x1xf32>
    %139 = tpu.matmul %138, %137, %cst_127 {dimension_numbers = #tpu.dot_dimension_numbers<[1], [0], [0], [1], [0, 0, 1, 1], [], []>} : vector<64x4xf32>, vector<4x1xf32>, vector<64x1xf32> -> vector<64x1xf32>
    %c0_128 = arith.constant 0 : index
    %c0_129 = arith.constant 0 : index
    %140 = vector.load %arg13[%c0_128, %c0_129] : memref<64x1xf32, #tpu.memory_space<vmem>>, vector<64x1xf32>
    %141 = arith.addf %139, %140 : vector<64x1xf32>
    %142 = arith.negf %141 : vector<64x1xf32>
    %143 = math.exp %142 : vector<64x1xf32>
    %cst_130 = arith.constant 1.000000e+00 : f32
    %144 = vector.broadcast %cst_130 : f32 to vector<64x1xf32>
    %145 = arith.addf %144, %143 : vector<64x1xf32>
    %146 = arith.divf %144, %145 : vector<64x1xf32>
    %147 = vector.broadcast %146 : vector<64x1xf32> to vector<64x256xf32>
    %148 = arith.mulf %127, %147 : vector<64x256xf32>
    %cst_131 = arith.constant dense<0xFF800000> : vector<256xf32>
    %149 = vector.multi_reduction <maximumf>, %148, %cst_131 [0] : vector<64x256xf32> to vector<256xf32>
    %150 = vector.shape_cast %149 : vector<256xf32> to vector<1x256xf32>
    %cst_132 = arith.constant dense<0.000000e+00> : vector<256xf32>
    %151 = vector.multi_reduction <add>, %148, %cst_132 [0] : vector<64x256xf32> to vector<256xf32>
    %152 = vector.shape_cast %151 : vector<256xf32> to vector<1x256xf32>
    %cst_133 = arith.constant 6.400000e+01 : f32
    %153 = vector.broadcast %cst_133 : f32 to vector<1x256xf32>
    %154 = arith.divf %152, %153 : vector<1x256xf32>
    %155 = tpu.concatenate %150, %154 in 1 : vector<1x256xf32>, vector<1x256xf32> -> vector<1x512xf32>
    %c0_134 = arith.constant 0 : index
    %c0_135 = arith.constant 0 : index
    %156 = vector.load %arg14[%c0_134, %c0_135] : memref<512x256xf32, #tpu.memory_space<vmem>>, vector<512x256xf32>
    %cst_136 = arith.constant dense<0.000000e+00> : vector<1x256xf32>
    %157 = tpu.matmul %155, %156, %cst_136 {dimension_numbers = #tpu.dot_dimension_numbers<[1], [0], [0], [1], [0, 0, 1, 1], [], []>} : vector<1x512xf32>, vector<512x256xf32>, vector<1x256xf32> -> vector<1x256xf32>
    %c0_137 = arith.constant 0 : index
    %c0_138 = arith.constant 0 : index
    %158 = vector.load %arg15[%c0_137, %c0_138] : memref<1x1xf32, #tpu.memory_space<vmem>>, vector<1x1xf32>
    %159 = vector.broadcast %158 : vector<1x1xf32> to vector<1x256xf32>
    %160 = arith.addf %157, %159 : vector<1x256xf32>
    %161 = arith.negf %160 : vector<1x256xf32>
    %162 = math.exp %161 : vector<1x256xf32>
    %cst_139 = arith.constant 1.000000e+00 : f32
    %163 = vector.broadcast %cst_139 : f32 to vector<1x256xf32>
    %164 = arith.addf %163, %162 : vector<1x256xf32>
    %165 = arith.divf %163, %164 : vector<1x256xf32>
    %166 = vector.broadcast %165 : vector<1x256xf32> to vector<64x256xf32>
    %167 = arith.mulf %148, %166 : vector<64x256xf32>
    %cst_140 = arith.constant dense<0.000000e+00> : vector<64xf32>
    %168 = vector.multi_reduction <add>, %167, %cst_140 [1] : vector<64x256xf32> to vector<64xf32>
    %169 = vector.shape_cast %168 : vector<64xf32> to vector<64x1xf32>
    %cst_141 = arith.constant 2.560000e+02 : f32
    %170 = vector.broadcast %cst_141 : f32 to vector<64x1xf32>
    %171 = arith.divf %169, %170 : vector<64x1xf32>
    %c0_142 = arith.constant 0 : index
    %c0_143 = arith.constant 0 : index
    %172 = vector.load %arg16[%c0_142, %c0_143] : memref<5x64xf32, #tpu.memory_space<vmem>>, vector<5x64xf32>
    %cst_144 = arith.constant dense<0.000000e+00> : vector<5x1xf32>
    %173 = tpu.matmul %172, %171, %cst_144 {dimension_numbers = #tpu.dot_dimension_numbers<[1], [0], [0], [1], [0, 0, 1, 1], [], []>} : vector<5x64xf32>, vector<64x1xf32>, vector<5x1xf32> -> vector<5x1xf32>
    %c0_145 = arith.constant 0 : index
    %c0_146 = arith.constant 0 : index
    %174 = vector.load %arg17[%c0_145, %c0_146] : memref<5x1xf32, #tpu.memory_space<vmem>>, vector<5x1xf32>
    %175 = arith.addf %173, %174 : vector<5x1xf32>
    %c0_147 = arith.constant 0 : index
    %c0_148 = arith.constant 0 : index
    %c0_149 = arith.constant 0 : index
    %176 = vector.load %arg18[%c0_147, %c0_148, %c0_149] : memref<1x5x1xf32, #tpu.memory_space<vmem>>, vector<1x5x1xf32>
    %177 = vector.shape_cast %176 : vector<1x5x1xf32> to vector<5x1xf32>
    %178 = vector.shape_cast %175 : vector<5x1xf32> to vector<1x5x1xf32>
    tpu.vector_store %arg18[%c0_147, %c0_148, %c0_149], %178 {strides = array<i32>} : memref<1x5x1xf32, #tpu.memory_space<vmem>>, vector<1x5x1xf32>,
    return
  }
  func.func @transform_0(%arg0: i32) -> (i32, i32, i32) {
    %c0_i32 = arith.constant 0 : i32
    %c0_i32_0 = arith.constant 0 : i32
    %c0_i32_1 = arith.constant 0 : i32
    return %arg0, %c0_i32, %c0_i32_0 : i32, i32, i32
  }
  func.func @transform_1(%arg0: i32) -> (i32, i32) {
    %c0_i32 = arith.constant 0 : i32
    %c0_i32_0 = arith.constant 0 : i32
    %c0_i32_1 = arith.constant 0 : i32
    return %c0_i32, %c0_i32_0 : i32, i32
  }
  func.func @transform_2(%arg0: i32) -> (i32, i32) {
    %c0_i32 = arith.constant 0 : i32
    %c0_i32_0 = arith.constant 0 : i32
    %c0_i32_1 = arith.constant 0 : i32
    return %c0_i32, %c0_i32_0 : i32, i32
  }
  func.func @transform_3(%arg0: i32) -> (i32, i32, i32) {
    %c0_i32 = arith.constant 0 : i32
    %c0_i32_0 = arith.constant 0 : i32
    %c0_i32_1 = arith.constant 0 : i32
    %c0_i32_2 = arith.constant 0 : i32
    return %c0_i32, %c0_i32_0, %c0_i32_1 : i32, i32, i32
  }
  func.func @transform_4(%arg0: i32) -> (i32, i32, i32) {
    %c0_i32 = arith.constant 0 : i32
    %c0_i32_0 = arith.constant 0 : i32
    %c0_i32_1 = arith.constant 0 : i32
    %c0_i32_2 = arith.constant 0 : i32
    return %c0_i32, %c0_i32_0, %c0_i32_1 : i32, i32, i32
  }
  func.func @transform_5(%arg0: i32) -> (i32, i32, i32) {
    %c0_i32 = arith.constant 0 : i32
    %c0_i32_0 = arith.constant 0 : i32
    %c0_i32_1 = arith.constant 0 : i32
    %c0_i32_2 = arith.constant 0 : i32
    return %c0_i32, %c0_i32_0, %c0_i32_1 : i32, i32, i32
  }
  func.func @transform_6(%arg0: i32) -> (i32, i32) {
    %c0_i32 = arith.constant 0 : i32
    %c0_i32_0 = arith.constant 0 : i32
    %c0_i32_1 = arith.constant 0 : i32
    return %c0_i32, %c0_i32_0 : i32, i32
  }
  func.func @transform_7(%arg0: i32) -> (i32, i32) {
    %c0_i32 = arith.constant 0 : i32
    %c0_i32_0 = arith.constant 0 : i32
    %c0_i32_1 = arith.constant 0 : i32
    return %c0_i32, %c0_i32_0 : i32, i32
  }
  func.func @transform_8(%arg0: i32) -> (i32, i32) {
    %c0_i32 = arith.constant 0 : i32
    %c0_i32_0 = arith.constant 0 : i32
    %c0_i32_1 = arith.constant 0 : i32
    return %c0_i32, %c0_i32_0 : i32, i32
  }
  func.func @transform_9(%arg0: i32) -> (i32, i32) {
    %c0_i32 = arith.constant 0 : i32
    %c0_i32_0 = arith.constant 0 : i32
    %c0_i32_1 = arith.constant 0 : i32
    return %c0_i32, %c0_i32_0 : i32, i32
  }
  func.func @transform_10(%arg0: i32) -> (i32, i32) {
    %c0_i32 = arith.constant 0 : i32
    %c0_i32_0 = arith.constant 0 : i32
    %c0_i32_1 = arith.constant 0 : i32
    return %c0_i32, %c0_i32_0 : i32, i32
  }
  func.func @transform_11(%arg0: i32) -> (i32, i32) {
    %c0_i32 = arith.constant 0 : i32
    %c0_i32_0 = arith.constant 0 : i32
    %c0_i32_1 = arith.constant 0 : i32
    return %c0_i32, %c0_i32_0 : i32, i32
  }
  func.func @transform_12(%arg0: i32) -> (i32, i32) {
    %c0_i32 = arith.constant 0 : i32
    %c0_i32_0 = arith.constant 0 : i32
    %c0_i32_1 = arith.constant 0 : i32
    return %c0_i32, %c0_i32_0 : i32, i32
  }
  func.func @transform_13(%arg0: i32) -> (i32, i32) {
    %c0_i32 = arith.constant 0 : i32
    %c0_i32_0 = arith.constant 0 : i32
    %c0_i32_1 = arith.constant 0 : i32
    return %c0_i32, %c0_i32_0 : i32, i32
  }
  func.func @transform_14(%arg0: i32) -> (i32, i32) {
    %c0_i32 = arith.constant 0 : i32
    %c0_i32_0 = arith.constant 0 : i32
    %c0_i32_1 = arith.constant 0 : i32
    return %c0_i32, %c0_i32_0 : i32, i32
  }
  func.func @transform_15(%arg0: i32) -> (i32, i32) {
    %c0_i32 = arith.constant 0 : i32
    %c0_i32_0 = arith.constant 0 : i32
    %c0_i32_1 = arith.constant 0 : i32
    return %c0_i32, %c0_i32_0 : i32, i32
  }
  func.func @transform_16(%arg0: i32) -> (i32, i32) {
    %c0_i32 = arith.constant 0 : i32
    %c0_i32_0 = arith.constant 0 : i32
    %c0_i32_1 = arith.constant 0 : i32
    return %c0_i32, %c0_i32_0 : i32, i32
  }
  func.func @transform_17(%arg0: i32) -> (i32, i32, i32) {
    %c0_i32 = arith.constant 0 : i32
    %c0_i32_0 = arith.constant 0 : i32
    %c0_i32_1 = arith.constant 0 : i32
    return %arg0, %c0_i32, %c0_i32_0 : i32, i32, i32
  }
}

</mosaic_0001>

<llo_original>
// kernel: custom_efficientnet_b7_forward.1
$region0: #{custom_efficientnet_b7_forward.1}
  #allocation0 [shape = 'u32[]', space=smem, size = 0x4, offset = 0x4, fixed_abs, tag = 'smem constant byte address 0x4 - core index']
  #allocation1 [shape = 'u32[144,128]{1,0:T(1,128)}', space=vmem, size = 0x12000, scoped, tag = 'internal scratch']
  #allocation2 [shape = 'f32[1,1]{1,0:T(1,128)S(1)}', space=vmem, size = 0x200, scoped, tag = 'scoped memory for custom_efficientnet_b7_forward.1']
  #allocation3 [shape = 'f32[1,1]{1,0:T(1,128)S(1)}', space=vmem, size = 0x200, scoped, tag = 'scoped memory for custom_efficientnet_b7_forward.1']
  %s0 = inlined_call_operand.vmem [shape: f32[2,3,256], index: 0, kind: input, shape index: {}]
  %s1 = inlined_call_operand.hbm [shape: f32[1,3], index: 1, kind: input, shape index: {}]
  %s2 = inlined_call_operand.<no memory space> [shape: f32[1,1], index: 2, kind: input, shape index: {}]
  %s3 = inlined_call_operand.hbm [shape: f32[9,256,256], index: 3, kind: input, shape index: {}]
  %s4 = inlined_call_operand.vmem [shape: f32[9,3,3], index: 4, kind: input, shape index: {}]
  %s5 = inlined_call_operand.vmem [shape: f32[9,3,3], index: 5, kind: input, shape index: {}]
  %s6 = inlined_call_operand.vmem [shape: f32[3,1], index: 6, kind: input, shape index: {}]
  %s7 = inlined_call_operand.vmem [shape: f32[64,3], index: 7, kind: input, shape index: {}]
  %s8 = inlined_call_operand.vmem [shape: f32[64,1], index: 8, kind: input, shape index: {}]
  %s9 = inlined_call_operand.hbm [shape: f32[4,64], index: 9, kind: input, shape index: {}]
  %s10 = inlined_call_operand.vmem [shape: f32[4,1], index: 10, kind: input, shape index: {}]
  %s11 = inlined_call_operand.vmem [shape: f32[64,4], index: 11, kind: input, shape index: {}]
  %s12 = inlined_call_operand.vmem [shape: f32[64,1], index: 12, kind: input, shape index: {}]
  %s13 = inlined_call_operand.hbm [shape: f32[512,256], index: 13, kind: input, shape index: {}]
  %s14 = inlined_call_operand.<no memory space> [shape: f32[1,1], index: 14, kind: input, shape index: {}]
  %s15 = inlined_call_operand.hbm [shape: f32[5,64], index: 15, kind: input, shape index: {}]
  %s16 = inlined_call_operand.vmem [shape: f32[5,1], index: 16, kind: input, shape index: {}]
  %s17 = inlined_call_operand.vmem [shape: f32[2,5,1], index: 17, kind: output, shape index: {}]
  %s18 = sld [smem:[#allocation0]]
  $region121: #{custom_efficientnet_b7_forward.1} parent=0
    _
  %s20 = ssub.s32 1, %s18
  %s21 = scalar_select 0, %s20, %s18
  %v22 = vstv %s2
  %23 = vst [vmem:[#allocation2] sm:$0x1] %v22
  %v24 = vstv %s14
  %25 = vst [vmem:[#allocation3] sm:$0x1] %v24
  $region1: #{custom_efficientnet_b7_forward.1} parent=0
    #allocation4 [shape = 'u8[512]{0}', space=vmem, size = 0x400, scoped, tag = 'input window, operand 1, single buffered']
    #allocation5 [shape = 's32[2]{0}', space=sflag, size = 0x8, scoped, tag = 'scoped memory for custom_efficientnet_b7_forward.1']
    #allocation6 [shape = 'u8[2359296]{0}', space=vmem, size = 0x240000, scoped, tag = 'input window, operand 3, single buffered']
    #allocation7 [shape = 's32[1]{0}', space=sflag, size = 0x4, scoped, tag = 'scoped memory for custom_efficientnet_b7_forward.1']
    #allocation8 [shape = 'u8[2048]{0}', space=vmem, size = 0x800, scoped, tag = 'input window, operand 9, single buffered']
    #allocation9 [shape = 'u8[524288]{0}', space=vmem, size = 0x80000, scoped, tag = 'input window, operand 13, single buffered']
    #allocation10 [shape = 's32[1]{0}', space=sflag, size = 0x4, scoped, tag = 'scoped memory for custom_efficientnet_b7_forward.1']
    #allocation11 [shape = 'u8[4096]{0}', space=vmem, size = 0x1000, scoped, tag = 'input window, operand 15, single buffered']
    %26 = vsyncpa [#allocation5], 0
    %27 = vsyncpa [#allocation7], 0
    %28 = vsyncpa [#allocation10], 0
    loop: start=0, step=1, limit=4
    $region2: #{custom_efficientnet_b7_forward.1} parent=1 // loop_pre_header
      _
    $region3: #{custom_efficientnet_b7_forward.1} parent=1 // loop_header
      %s30 = sphi 0, %s34
      %p31 = scmp.ge.s32.totalorder %s30, 4
      %s40 = sphi 0, %s42
      %s43 = sphi 0, %s40
      %s44 = sphi 0, %s43
      %s60 = sphi 0, %s44
      %s64 = sphi 0, %s64
      %s66 = sphi 0, %s64
      %s67 = sphi 0, %s66
      %s81 = sphi 0, %s67
      %s85 = sphi 0, %s85
      %s87 = sphi 0, %s85
      %s88 = sphi 0, %s87
      %s102 = sphi 0, %s88
      %s106 = sphi 0, %s106
      %s108 = sphi 0, %s106
      %s109 = sphi 0, %s108
      %s123 = sphi 0, %s109
      %s127 = sphi 0, %s127
      %s129 = sphi 0, %s127
      %s130 = sphi 0, %s129
      %s144 = sphi 0, %s130
      %s148 = sphi 0, %s148
      %s150 = sphi 0, %s148
      %s151 = sphi 0, %s150
      %s165 = sphi 0, %s151
      %s169 = sphi 0, %s169
      %s171 = sphi 0, %s169
      %s172 = sphi 0, %s171
      %s186 = sphi 0, %s172
      %s190 = sphi 0, %s190
      %s192 = sphi 0, %s190
      %s193 = sphi 0, %s192
      %s207 = sphi 0, %s193
      %s211 = sphi 0, %s211
      %s213 = sphi 0, %s211
      %s214 = sphi 0, %s213
      %s228 = sphi 0, %s214
      %s232 = sphi 0, %s232
      %s234 = sphi 0, %s232
      %s235 = sphi 0, %s234
      %s249 = sphi 0, %s235
      %s253 = sphi 0, %s253
      %s255 = sphi 0, %s253
      %s256 = sphi 0, %s255
      %s270 = sphi 0, %s256
      %s274 = sphi 0, %s274
      %s276 = sphi 0, %s274
      %s277 = sphi 0, %s276
      %s291 = sphi 0, %s277
      %s295 = sphi 0, %s295
      %s297 = sphi 0, %s295
      %s298 = sphi 0, %s297
      %s312 = sphi 0, %s298
      %s316 = sphi 0, %s316
      %s318 = sphi 0, %s316
      %s319 = sphi 0, %s318
      %s333 = sphi 0, %s319
      %s337 = sphi 0, %s337
      %s339 = sphi 0, %s337
      %s340 = sphi 0, %s339
      %s354 = sphi 0, %s340
      %s358 = sphi 0, %s358
      %s360 = sphi 0, %s358
      %s361 = sphi 0, %s360
      %s375 = sphi 0, %s361
      %s379 = sphi 0, %s379
      %s381 = sphi 0, %s379
      %s382 = sphi 0, %s381
      %s396 = sphi 0, %s382
      %s402 = sphi 0, %s404
      %s405 = sphi 0, %s402
      %s406 = sphi 0, %s405
      %s422 = sphi 0, %s406
    $region4: #{custom_efficientnet_b7_forward.1} parent=1 // loop_header_branch
      %33 = sbr.rel (%p31) target = $region8
    $region5: #{custom_efficientnet_b7_forward.1} parent=1 // loop_body
      %s35 = ssub.s32 %s30, 1
      %s36 = ssub.s32 %s30, 2
      %s37 = sadd.s32 %s30, 1
      %s38 = ssub.s32 %s30, %s37
      %p39 = scmp.eq.s32.totalorder %s38, 0
      %s41 = sadd.s32 %s40, 1
      %s42 = scalar_select %p39, %s40, %s41
      %p45 = pneg %p39
      %p46 = scmp.eq.s32.totalorder %s30, 1
      %p47 = por %p45, %p46
      %p48 = scmp.ne.s32.totalorder %s40, %s43
      %p49 = scmp.eq.s32.totalorder %s30, 0
      %p50 = por %p48, %p49
      %p51 = scmp.ne.s32.totalorder %s40, %s43
      %p52 = scmp.eq.s32.totalorder %s35, 1
      %p53 = por %p51, %p52
      %p54 = scmp.ne.s32.totalorder %s43, %s44
      %p55 = scmp.eq.s32.totalorder %s35, 0
      %p56 = por %p54, %p55
      %p57 = scmp.ne.s32.totalorder %s43, %s44
      %p58 = scmp.eq.s32.totalorder %s36, 1
      %p59 = por %p57, %p58
      %p61 = scmp.ne.s32.totalorder %s44, %s60
      %p62 = scmp.eq.s32.totalorder %s36, 0
      %p63 = por %p61, %p62
      %s65 = sadd.s32 %s64, 1
      %p68 = scmp.eq.s32.totalorder %s30, 1
      %p69 = scmp.ne.s32.totalorder %s64, %s66
      %p70 = scmp.eq.s32.totalorder %s30, 0
      %p71 = por %p69, %p70
      %p72 = scmp.ne.s32.totalorder %s64, %s66
      %p73 = scmp.eq.s32.totalorder %s35, 1
      %p74 = por %p72, %p73
      %p75 = scmp.ne.s32.totalorder %s66, %s67
      %p76 = scmp.eq.s32.totalorder %s35, 0
      %p77 = por %p75, %p76
      %p78 = scmp.ne.s32.totalorder %s66, %s67
      %p79 = scmp.eq.s32.totalorder %s36, 1
      %p80 = por %p78, %p79
      %p82 = scmp.ne.s32.totalorder %s67, %s81
      %p83 = scmp.eq.s32.totalorder %s36, 0
      %p84 = por %p82, %p83
      %s86 = sadd.s32 %s85, 1
      %p89 = scmp.eq.s32.totalorder %s30, 1
      %p90 = scmp.ne.s32.totalorder %s85, %s87
      %p91 = scmp.eq.s32.totalorder %s30, 0
      %p92 = por %p90, %p91
      %p93 = scmp.ne.s32.totalorder %s85, %s87
      %p94 = scmp.eq.s32.totalorder %s35, 1
      %p95 = por %p93, %p94
      %p96 = scmp.ne.s32.totalorder %s87, %s88
      %p97 = scmp.eq.s32.totalorder %s35, 0
      %p98 = por %p96, %p97
      %p99 = scmp.ne.s32.totalorder %s87, %s88
      %p100 = scmp.eq.s32.totalorder %s36, 1
      %p101 = por %p99, %p100
      %p103 = scmp.ne.s32.totalorder %s88, %s102
      %p104 = scmp.eq.s32.totalorder %s36, 0
      %p105 = por %p103, %p104
      %s107 = sadd.s32 %s106, 1
      %p110 = scmp.eq.s32.totalorder %s30, 1
      %p111 = scmp.ne.s32.totalorder %s106, %s108
      %p112 = scmp.eq.s32.totalorder %s30, 0
      %p113 = por %p111, %p112
      %p114 = scmp.ne.s32.totalorder %s106, %s108
      %p115 = scmp.eq.s32.totalorder %s35, 1
      %p116 = por %p114, %p115
      %p117 = scmp.ne.s32.totalorder %s108, %s109
      %p118 = scmp.eq.s32.totalorder %s35, 0
      %p119 = por %p117, %p118
      %p120 = scmp.ne.s32.totalorder %s108, %s109
      %p121 = scmp.eq.s32.totalorder %s36, 1
      %p122 = por %p120, %p121
      %p124 = scmp.ne.s32.totalorder %s109, %s123
      %p125 = scmp.eq.s32.totalorder %s36, 0
      %p126 = por %p124, %p125
      %s128 = sadd.s32 %s127, 1
      %p131 = scmp.eq.s32.totalorder %s30, 1
      %p132 = scmp.ne.s32.totalorder %s127, %s129
      %p133 = scmp.eq.s32.totalorder %s30, 0
      %p134 = por %p132, %p133
      %p135 = scmp.ne.s32.totalorder %s127, %s129
      %p136 = scmp.eq.s32.totalorder %s35, 1
      %p137 = por %p135, %p136
      %p138 = scmp.ne.s32.totalorder %s129, %s130
      %p139 = scmp.eq.s32.totalorder %s35, 0
      %p140 = por %p138, %p139
      %p141 = scmp.ne.s32.totalorder %s129, %s130
      %p142 = scmp.eq.s32.totalorder %s36, 1
      %p143 = por %p141, %p142
      %p145 = scmp.ne.s32.totalorder %s130, %s144
      %p146 = scmp.eq.s32.totalorder %s36, 0
      %p147 = por %p145, %p146
      %s149 = sadd.s32 %s148, 1
      %p152 = scmp.eq.s32.totalorder %s30, 1
      %p153 = scmp.ne.s32.totalorder %s148, %s150
      %p154 = scmp.eq.s32.totalorder %s30, 0
      %p155 = por %p153, %p154
      %p156 = scmp.ne.s32.totalorder %s148, %s150
      %p157 = scmp.eq.s32.totalorder %s35, 1
      %p158 = por %p156, %p157
      %p159 = scmp.ne.s32.totalorder %s150, %s151
      %p160 = scmp.eq.s32.totalorder %s35, 0
      %p161 = por %p159, %p160
      %p162 = scmp.ne.s32.totalorder %s150, %s151
      %p163 = scmp.eq.s32.totalorder %s36, 1
      %p164 = por %p162, %p163
      %p166 = scmp.ne.s32.totalorder %s151, %s165
      %p167 = scmp.eq.s32.totalorder %s36, 0
      %p168 = por %p166, %p167
      %s170 = sadd.s32 %s169, 1
      %p173 = scmp.eq.s32.totalorder %s30, 1
      %p174 = scmp.ne.s32.totalorder %s169, %s171
      %p175 = scmp.eq.s32.totalorder %s30, 0
      %p176 = por %p174, %p175
      %p177 = scmp.ne.s32.totalorder %s169, %s171
      %p178 = scmp.eq.s32.totalorder %s35, 1
      %p179 = por %p177, %p178
      %p180 = scmp.ne.s32.totalorder %s171, %s172
      %p181 = scmp.eq.s32.totalorder %s35, 0
      %p182 = por %p180, %p181
      %p183 = scmp.ne.s32.totalorder %s171, %s172
      %p184 = scmp.eq.s32.totalorder %s36, 1
      %p185 = por %p183, %p184
      %p187 = scmp.ne.s32.totalorder %s172, %s186
      %p188 = scmp.eq.s32.totalorder %s36, 0
      %p189 = por %p187, %p188
      %s191 = sadd.s32 %s190, 1
      %p194 = scmp.eq.s32.totalorder %s30, 1
      %p195 = scmp.ne.s32.totalorder %s190, %s192
      %p196 = scmp.eq.s32.totalorder %s30, 0
      %p197 = por %p195, %p196
      %p198 = scmp.ne.s32.totalorder %s190, %s192
      %p199 = scmp.eq.s32.totalorder %s35, 1
      %p200 = por %p198, %p199
      %p201 = scmp.ne.s32.totalorder %s192, %s193
      %p202 = scmp.eq.s32.totalorder %s35, 0
      %p203 = por %p201, %p202
      %p204 = scmp.ne.s32.totalorder %s192, %s193
      %p205 = scmp.eq.s32.totalorder %s36, 1
      %p206 = por %p204, %p205
      %p208 = scmp.ne.s32.totalorder %s193, %s207
      %p209 = scmp.eq.s32.totalorder %s36, 0
      %p210 = por %p208, %p209
      %s212 = sadd.s32 %s211, 1
      %p215 = scmp.eq.s32.totalorder %s30, 1
      %p216 = scmp.ne.s32.totalorder %s211, %s213
      %p217 = scmp.eq.s32.totalorder %s30, 0
      %p218 = por %p216, %p217
      %p219 = scmp.ne.s32.totalorder %s211, %s213
      %p220 = scmp.eq.s32.totalorder %s35, 1
      %p221 = por %p219, %p220
      %p222 = scmp.ne.s32.totalorder %s213, %s214
      %p223 = scmp.eq.s32.totalorder %s35, 0
      %p224 = por %p222, %p223
      %p225 = scmp.ne.s32.totalorder %s213, %s214
      %p226 = scmp.eq.s32.totalorder %s36, 1
      %p227 = por %p225, %p226
      %p229 = scmp.ne.s32.totalorder %s214, %s228
      %p230 = scmp.eq.s32.totalorder %s36, 0
      %p231 = por %p229, %p230
      %s233 = sadd.s32 %s232, 1
      %p236 = scmp.eq.s32.totalorder %s30, 1
      %p237 = scmp.ne.s32.totalorder %s232, %s234
      %p238 = scmp.eq.s32.totalorder %s30, 0
      %p239 = por %p237, %p238
      %p240 = scmp.ne.s32.totalorder %s232, %s234
      %p241 = scmp.eq.s32.totalorder %s35, 1
      %p242 = por %p240, %p241
      %p243 = scmp.ne.s32.totalorder %s234, %s235
      %p244 = scmp.eq.s32.totalorder %s35, 0
      %p245 = por %p243, %p244
      %p246 = scmp.ne.s32.totalorder %s234, %s235
      %p247 = scmp.eq.s32.totalorder %s36, 1
      %p248 = por %p246, %p247
      %p250 = scmp.ne.s32.totalorder %s235, %s249
      %p251 = scmp.eq.s32.totalorder %s36, 0
      %p252 = por %p250, %p251
      %s254 = sadd.s32 %s253, 1
      %p257 = scmp.eq.s32.totalorder %s30, 1
      %p258 = scmp.ne.s32.totalorder %s253, %s255
      %p259 = scmp.eq.s32.totalorder %s30, 0
      %p260 = por %p258, %p259
      %p261 = scmp.ne.s32.totalorder %s253, %s255
      %p262 = scmp.eq.s32.totalorder %s35, 1
      %p263 = por %p261, %p262
      %p264 = scmp.ne.s32.totalorder %s255, %s256
      %p265 = scmp.eq.s32.totalorder %s35, 0
      %p266 = por %p264, %p265
      %p267 = scmp.ne.s32.totalorder %s255, %s256
      %p268 = scmp.eq.s32.totalorder %s36, 1
      %p269 = por %p267, %p268
      %p271 = scmp.ne.s32.totalorder %s256, %s270
      %p272 = scmp.eq.s32.totalorder %s36, 0
      %p273 = por %p271, %p272
      %s275 = sadd.s32 %s274, 1
      %p278 = scmp.eq.s32.totalorder %s30, 1
      %p279 = scmp.ne.s32.totalorder %s274, %s276
      %p280 = scmp.eq.s32.totalorder %s30, 0
      %p281 = por %p279, %p280
      %p282 = scmp.ne.s32.totalorder %s274, %s276
      %p283 = scmp.eq.s32.totalorder %s35, 1
      %p284 = por %p282, %p283
      %p285 = scmp.ne.s32.totalorder %s276, %s277
      %p286 = scmp.eq.s32.totalorder %s35, 0
      %p287 = por %p285, %p286
      %p288 = scmp.ne.s32.totalorder %s276, %s277
      %p289 = scmp.eq.s32.totalorder %s36, 1
      %p290 = por %p288, %p289
      %p292 = scmp.ne.s32.totalorder %s277, %s291
      %p293 = scmp.eq.s32.totalorder %s36, 0
      %p294 = por %p292, %p293
      %s296 = sadd.s32 %s295, 1
      %p299 = scmp.eq.s32.totalorder %s30, 1
      %p300 = scmp.ne.s32.totalorder %s295, %s297
      %p301 = scmp.eq.s32.totalorder %s30, 0
      %p302 = por %p300, %p301
      %p303 = scmp.ne.s32.totalorder %s295, %s297
      %p304 = scmp.eq.s32.totalorder %s35, 1
      %p305 = por %p303, %p304
      %p306 = scmp.ne.s32.totalorder %s297, %s298
      %p307 = scmp.eq.s32.totalorder %s35, 0
      %p308 = por %p306, %p307
      %p309 = scmp.ne.s32.totalorder %s297, %s298
      %p310 = scmp.eq.s32.totalorder %s36, 1
      %p311 = por %p309, %p310
      %p313 = scmp.ne.s32.totalorder %s298, %s312
      %p314 = scmp.eq.s32.totalorder %s36, 0
      %p315 = por %p313, %p314
      %s317 = sadd.s32 %s316, 1
      %p320 = scmp.eq.s32.totalorder %s30, 1
      %p321 = scmp.ne.s32.totalorder %s316, %s318
      %p322 = scmp.eq.s32.totalorder %s30, 0
      %p323 = por %p321, %p322
      %p324 = scmp.ne.s32.totalorder %s316, %s318
      %p325 = scmp.eq.s32.totalorder %s35, 1
      %p326 = por %p324, %p325
      %p327 = scmp.ne.s32.totalorder %s318, %s319
      %p328 = scmp.eq.s32.totalorder %s35, 0
      %p329 = por %p327, %p328
      %p330 = scmp.ne.s32.totalorder %s318, %s319
      %p331 = scmp.eq.s32.totalorder %s36, 1
      %p332 = por %p330, %p331
      %p334 = scmp.ne.s32.totalorder %s319, %s333
      %p335 = scmp.eq.s32.totalorder %s36, 0
      %p336 = por %p334, %p335
      %s338 = sadd.s32 %s337, 1
      %p341 = scmp.eq.s32.totalorder %s30, 1
      %p342 = scmp.ne.s32.totalorder %s337, %s339
      %p343 = scmp.eq.s32.totalorder %s30, 0
      %p344 = por %p342, %p343
      %p345 = scmp.ne.s32.totalorder %s337, %s339
      %p346 = scmp.eq.s32.totalorder %s35, 1
      %p347 = por %p345, %p346
      %p348 = scmp.ne.s32.totalorder %s339, %s340
      %p349 = scmp.eq.s32.totalorder %s35, 0
      %p350 = por %p348, %p349
      %p351 = scmp.ne.s32.totalorder %s339, %s340
      %p352 = scmp.eq.s32.totalorder %s36, 1
      %p353 = por %p351, %p352
      %p355 = scmp.ne.s32.totalorder %s340, %s354
      %p356 = scmp.eq.s32.totalorder %s36, 0
      %p357 = por %p355, %p356
      %s359 = sadd.s32 %s358, 1
      %p362 = scmp.eq.s32.totalorder %s30, 1
      %p363 = scmp.ne.s32.totalorder %s358, %s360
      %p364 = scmp.eq.s32.totalorder %s30, 0
      %p365 = por %p363, %p364
      %p366 = scmp.ne.s32.totalorder %s358, %s360
      %p367 = scmp.eq.s32.totalorder %s35, 1
      %p368 = por %p366, %p367
      %p369 = scmp.ne.s32.totalorder %s360, %s361
      %p370 = scmp.eq.s32.totalorder %s35, 0
      %p371 = por %p369, %p370
      %p372 = scmp.ne.s32.totalorder %s360, %s361
      %p373 = scmp.eq.s32.totalorder %s36, 1
      %p374 = por %p372, %p373
      %p376 = scmp.ne.s32.totalorder %s361, %s375
      %p377 = scmp.eq.s32.totalorder %s36, 0
      %p378 = por %p376, %p377
      %s380 = sadd.s32 %s379, 1
      %p383 = scmp.eq.s32.totalorder %s30, 1
      %p384 = scmp.ne.s32.totalorder %s379, %s381
      %p385 = scmp.eq.s32.totalorder %s30, 0
      %p386 = por %p384, %p385
      %p387 = scmp.ne.s32.totalorder %s379, %s381
      %p388 = scmp.eq.s32.totalorder %s35, 1
      %p389 = por %p387, %p388
      %p390 = scmp.ne.s32.totalorder %s381, %s382
      %p391 = scmp.eq.s32.totalorder %s35, 0
      %p392 = por %p390, %p391
      %p393 = scmp.ne.s32.totalorder %s381, %s382
      %p394 = scmp.eq.s32.totalorder %s36, 1
      %p395 = por %p393, %p394
      %p397 = scmp.ne.s32.totalorder %s382, %s396
      %p398 = scmp.eq.s32.totalorder %s36, 0
      %p399 = por %p397, %p398
      %s400 = ssub.s32 %s30, %s37
      %p401 = scmp.eq.s32.totalorder %s400, 0
      %s403 = sadd.s32 %s402, 1
      %s404 = scalar_select %p401, %s402, %s403
      %p407 = pneg %p401
      %p408 = scmp.eq.s32.totalorder %s30, 1
      %p409 = por %p407, %p408
      %p410 = scmp.ne.s32.totalorder %s402, %s405
      %p411 = scmp.eq.s32.totalorder %s30, 0
      %p412 = por %p410, %p411
      %p413 = scmp.ne.s32.totalorder %s402, %s405
      %p414 = scmp.eq.s32.totalorder %s35, 1
      %p415 = por %p413, %p414
      %p416 = scmp.ne.s32.totalorder %s405, %s406
      %p417 = scmp.eq.s32.totalorder %s35, 0
      %p418 = por %p416, %p417
      %p419 = scmp.ne.s32.totalorder %s405, %s406
      %p420 = scmp.eq.s32.totalorder %s36, 1
      %p421 = por %p419, %p420
      %p423 = scmp.ne.s32.totalorder %s406, %s422
      %p424 = scmp.eq.s32.totalorder %s36, 0
      %p425 = por %p423, %p424
      %p426 = scmp.le.s32.totalorder 1, %s30
      %p427 = scmp.lt.s32.totalorder %s30, 3
      %p428 = pnand %p426, %p427
      %p429 = pneg %p428
      // Predicated region
      $region9: #{custom_efficientnet_b7_forward.1} parent=5 // pred_check
        _
      $region10: #{custom_efficientnet_b7_forward.1} parent=5 // pred_check_branch
        %431 = sbr.rel (%p428) target = $region12
      $region11: #{custom_efficientnet_b7_forward.1} parent=5 // pred_region
        %s432 = ssub.s32 %s30, 1
        // Predicated region
        $region13: #{custom_efficientnet_b7_forward.1} parent=11 // pred_check
          %p433 = pneg %p77
        $region14: #{custom_efficientnet_b7_forward.1} parent=11 // pred_check_branch
          %435 = sbr.rel (%p433) target = $region16
        $region15: #{custom_efficientnet_b7_forward.1} parent=11 // pred_region
          %s437 = ssub.s32 16, 16
          %438 = vsyncadd [#allocation5], %s437
          %s440 = sshll.u32 [#allocation4], 4
          %s441 = int_to_ptr.vmem [resolvable:$true] %s440
          %443 = dma.hbm_to_vmem [thread:$0]  %s1, 16, %s441, [#allocation5]
        $region16: #{custom_efficientnet_b7_forward.1} parent=11 // pred_fallthru
          _
        // Predicated region
        $region17: #{custom_efficientnet_b7_forward.1} parent=11 // pred_check
          %p444 = pneg %p98
        $region18: #{custom_efficientnet_b7_forward.1} parent=11 // pred_check_branch
          %446 = sbr.rel (%p444) target = $region20
        $region19: #{custom_efficientnet_b7_forward.1} parent=11 // pred_region
          _
        $region20: #{custom_efficientnet_b7_forward.1} parent=11 // pred_fallthru
          _
        // Predicated region
        $region21: #{custom_efficientnet_b7_forward.1} parent=11 // pred_check
          %p447 = pneg %p119
        $region22: #{custom_efficientnet_b7_forward.1} parent=11 // pred_check_branch
          %449 = sbr.rel (%p447) target = $region24
        $region23: #{custom_efficientnet_b7_forward.1} parent=11 // pred_region
          %s451 = ssub.s32 73728, 73728
          %452 = vsyncadd [#allocation7], %s451
          %s453 = sshll.u32 [#allocation6], 4
          %s454 = int_to_ptr.vmem [resolvable:$true] %s453
          %459 = dma.hbm_to_vmem [thread:$0]  %s3, 73728, %s454, [#allocation7], 256, 256, 16
        $region24: #{custom_efficientnet_b7_forward.1} parent=11 // pred_fallthru
          _
        // Predicated region
        $region25: #{custom_efficientnet_b7_forward.1} parent=11 // pred_check
          %p460 = pneg %p140
        $region26: #{custom_efficientnet_b7_forward.1} parent=11 // pred_check_branch
          %462 = sbr.rel (%p460) target = $region28
        $region27: #{custom_efficientnet_b7_forward.1} parent=11 // pred_region
          _
        $region28: #{custom_efficientnet_b7_forward.1} parent=11 // pred_fallthru
          _
        // Predicated region
        $region29: #{custom_efficientnet_b7_forward.1} parent=11 // pred_check
          %p463 = pneg %p161
        $region30: #{custom_efficientnet_b7_forward.1} parent=11 // pred_check_branch
          %465 = sbr.rel (%p463) target = $region32
        $region31: #{custom_efficientnet_b7_forward.1} parent=11 // pred_region
          _
        $region32: #{custom_efficientnet_b7_forward.1} parent=11 // pred_fallthru
          _
        // Predicated region
        $region33: #{custom_efficientnet_b7_forward.1} parent=11 // pred_check
          %p466 = pneg %p182
        $region34: #{custom_efficientnet_b7_forward.1} parent=11 // pred_check_branch
          %468 = sbr.rel (%p466) target = $region36
        $region35: #{custom_efficientnet_b7_forward.1} parent=11 // pred_region
          _
        $region36: #{custom_efficientnet_b7_forward.1} parent=11 // pred_fallthru
          _
        // Predicated region
        $region37: #{custom_efficientnet_b7_forward.1} parent=11 // pred_check
          %p469 = pneg %p203
        $region38: #{custom_efficientnet_b7_forward.1} parent=11 // pred_check_branch
          %471 = sbr.rel (%p469) target = $region40
        $region39: #{custom_efficientnet_b7_forward.1} parent=11 // pred_region
          _
        $region40: #{custom_efficientnet_b7_forward.1} parent=11 // pred_fallthru
          _
        // Predicated region
        $region41: #{custom_efficientnet_b7_forward.1} parent=11 // pred_check
          %p472 = pneg %p224
        $region42: #{custom_efficientnet_b7_forward.1} parent=11 // pred_check_branch
          %474 = sbr.rel (%p472) target = $region44
        $region43: #{custom_efficientnet_b7_forward.1} parent=11 // pred_region
          _
        $region44: #{custom_efficientnet_b7_forward.1} parent=11 // pred_fallthru
          _
        // Predicated region
        $region45: #{custom_efficientnet_b7_forward.1} parent=11 // pred_check
          %p475 = pneg %p245
        $region46: #{custom_efficientnet_b7_forward.1} parent=11 // pred_check_branch
          %477 = sbr.rel (%p475) target = $region48
        $region47: #{custom_efficientnet_b7_forward.1} parent=11 // pred_region
          %s479 = ssub.s32 64, 64
          %480 = vsyncadd [#allocation7], %s479
          %s482 = sshll.u32 [#allocation8], 4
          %s483 = int_to_ptr.vmem [resolvable:$true] %s482
          %485 = dma.hbm_to_vmem [thread:$0]  %s9, 64, %s483, [#allocation7]
        $region48: #{custom_efficientnet_b7_forward.1} parent=11 // pred_fallthru
          _
        // Predicated region
        $region49: #{custom_efficientnet_b7_forward.1} parent=11 // pred_check
          %p486 = pneg %p266
        $region50: #{custom_efficientnet_b7_forward.1} parent=11 // pred_check_branch
          %488 = sbr.rel (%p486) target = $region52
        $region51: #{custom_efficientnet_b7_forward.1} parent=11 // pred_region
          _
        $region52: #{custom_efficientnet_b7_forward.1} parent=11 // pred_fallthru
          _
        // Predicated region
        $region53: #{custom_efficientnet_b7_forward.1} parent=11 // pred_check
          %p489 = pneg %p287
        $region54: #{custom_efficientnet_b7_forward.1} parent=11 // pred_check_branch
          %491 = sbr.rel (%p489) target = $region56
        $region55: #{custom_efficientnet_b7_forward.1} parent=11 // pred_region
          _
        $region56: #{custom_efficientnet_b7_forward.1} parent=11 // pred_fallthru
          _
        // Predicated region
        $region57: #{custom_efficientnet_b7_forward.1} parent=11 // pred_check
          %p492 = pneg %p308
        $region58: #{custom_efficientnet_b7_forward.1} parent=11 // pred_check_branch
          %494 = sbr.rel (%p492) target = $region60
        $region59: #{custom_efficientnet_b7_forward.1} parent=11 // pred_region
          _
        $region60: #{custom_efficientnet_b7_forward.1} parent=11 // pred_fallthru
          _
        // Predicated region
        $region61: #{custom_efficientnet_b7_forward.1} parent=11 // pred_check
          %p495 = pneg %p329
        $region62: #{custom_efficientnet_b7_forward.1} parent=11 // pred_check_branch
          %497 = sbr.rel (%p495) target = $region64
        $region63: #{custom_efficientnet_b7_forward.1} parent=11 // pred_region
          %s499 = ssub.s32 16384, 16384
          %500 = vsyncadd [#allocation10], %s499
          %s501 = sshll.u32 [#allocation9], 4
          %s502 = int_to_ptr.vmem [resolvable:$true] %s501
          %507 = dma.hbm_to_vmem [thread:$0]  %s13, 16384, %s502, [#allocation10], 256, 256, 16
        $region64: #{custom_efficientnet_b7_forward.1} parent=11 // pred_fallthru
          _
        // Predicated region
        $region65: #{custom_efficientnet_b7_forward.1} parent=11 // pred_check
          %p508 = pneg %p350
        $region66: #{custom_efficientnet_b7_forward.1} parent=11 // pred_check_branch
          %510 = sbr.rel (%p508) target = $region68
        $region67: #{custom_efficientnet_b7_forward.1} parent=11 // pred_region
          _
        $region68: #{custom_efficientnet_b7_forward.1} parent=11 // pred_fallthru
          _
        // Predicated region
        $region69: #{custom_efficientnet_b7_forward.1} parent=11 // pred_check
          %p511 = pneg %p371
        $region70: #{custom_efficientnet_b7_forward.1} parent=11 // pred_check_branch
          %513 = sbr.rel (%p511) target = $region72
        $region71: #{custom_efficientnet_b7_forward.1} parent=11 // pred_region
          %s515 = ssub.s32 128, 128
          %516 = vsyncadd [#allocation10], %s515
          %s518 = sshll.u32 [#allocation11], 4
          %s519 = int_to_ptr.vmem [resolvable:$true] %s518
          %521 = dma.hbm_to_vmem [thread:$0]  %s15, 128, %s519, [#allocation10]
        $region72: #{custom_efficientnet_b7_forward.1} parent=11 // pred_fallthru
          _
        // Predicated region
        $region73: #{custom_efficientnet_b7_forward.1} parent=11 // pred_check
          %p522 = pneg %p392
        $region74: #{custom_efficientnet_b7_forward.1} parent=11 // pred_check_branch
          %524 = sbr.rel (%p522) target = $region76
        $region75: #{custom_efficientnet_b7_forward.1} parent=11 // pred_region
          _
        $region76: #{custom_efficientnet_b7_forward.1} parent=11 // pred_fallthru
          _
      $region12: #{custom_efficientnet_b7_forward.1} parent=5 // pred_fallthru
        _
      %p525 = scmp.lt.s32.totalorder %s30, 2
      // Predicated region
      $region77: #{custom_efficientnet_b7_forward.1} parent=5 // pred_check
        %p526 = pneg %p525
      $region78: #{custom_efficientnet_b7_forward.1} parent=5 // pred_check_branch
        %528 = sbr.rel (%p526) target = $region80
      $region79: #{custom_efficientnet_b7_forward.1} parent=5 // pred_region
        // Predicated region
        $region81: #{custom_efficientnet_b7_forward.1} parent=79 // pred_check
          %p529 = pneg %p50
        $region82: #{custom_efficientnet_b7_forward.1} parent=79 // pred_check_branch
          %531 = sbr.rel (%p529) target = $region84
        $region83: #{custom_efficientnet_b7_forward.1} parent=79 // pred_region
          %p532 = scmp.lt.s32.totalorder %s30, 1
          %s533 = scalar_select %p532, %s30, 1
          %s534 = smul.addr %s533, 2
          %s535 = smul.addr %s534, 4
          %s536 = scalar_lea.vmem %s0, %s535
        $region84: #{custom_efficientnet_b7_forward.1} parent=79 // pred_fallthru
          _
      $region80: #{custom_efficientnet_b7_forward.1} parent=5 // pred_fallthru
        _
      %p537 = scmp.le.s32.totalorder 1, %s30
      %p538 = scmp.lt.s32.totalorder %s30, 3
      %p539 = pnand %p537, %p538
      %p540 = pneg %p539
      // Predicated region
      $region85: #{custom_efficientnet_b7_forward.1} parent=5 // pred_check
        _
      $region86: #{custom_efficientnet_b7_forward.1} parent=5 // pred_check_branch
        %542 = sbr.rel (%p539) target = $region88
      $region87: #{custom_efficientnet_b7_forward.1} parent=5 // pred_region
        %s543 = ssub.s32 %s30, 1
        // Predicated region
        $region89: #{custom_efficientnet_b7_forward.1} parent=87 // pred_check
          %p544 = pneg %p77
        $region90: #{custom_efficientnet_b7_forward.1} parent=87 // pred_check_branch
          %546 = sbr.rel (%p544) target = $region92
        $region91: #{custom_efficientnet_b7_forward.1} parent=87 // pred_region
          %547 = dma.done [#allocation5], 16
        $region92: #{custom_efficientnet_b7_forward.1} parent=87 // pred_fallthru
          _
        // Predicated region
        $region93: #{custom_efficientnet_b7_forward.1} parent=87 // pred_check
          %p548 = pneg %p119
        $region94: #{custom_efficientnet_b7_forward.1} parent=87 // pred_check_branch
          %550 = sbr.rel (%p548) target = $region96
        $region95: #{custom_efficientnet_b7_forward.1} parent=87 // pred_region
          %551 = dma.done [#allocation7], 73728
        $region96: #{custom_efficientnet_b7_forward.1} parent=87 // pred_fallthru
          _
        // Predicated region
        $region97: #{custom_efficientnet_b7_forward.1} parent=87 // pred_check
          %p552 = pneg %p245
        $region98: #{custom_efficientnet_b7_forward.1} parent=87 // pred_check_branch
          %554 = sbr.rel (%p552) target = $region100
        $region99: #{custom_efficientnet_b7_forward.1} parent=87 // pred_region
          %555 = dma.done [#allocation7], 64
        $region100: #{custom_efficientnet_b7_forward.1} parent=87 // pred_fallthru
          _
        // Predicated region
        $region101: #{custom_efficientnet_b7_forward.1} parent=87 // pred_check
          %p556 = pneg %p329
        $region102: #{custom_efficientnet_b7_forward.1} parent=87 // pred_check_branch
          %558 = sbr.rel (%p556) target = $region104
        $region103: #{custom_efficientnet_b7_forward.1} parent=87 // pred_region
          %559 = dma.done [#allocation10], 16384
        $region104: #{custom_efficientnet_b7_forward.1} parent=87 // pred_fallthru
          _
        // Predicated region
        $region105: #{custom_efficientnet_b7_forward.1} parent=87 // pred_check
          %p560 = pneg %p371
        $region106: #{custom_efficientnet_b7_forward.1} parent=87 // pred_check_branch
          %562 = sbr.rel (%p560) target = $region108
        $region107: #{custom_efficientnet_b7_forward.1} parent=87 // pred_region
          %563 = dma.done [#allocation10], 128
        $region108: #{custom_efficientnet_b7_forward.1} parent=87 // pred_fallthru
          _
        %p564 = scmp.lt.s32.totalorder %s35, 1
        %s565 = scalar_select %p564, %s35, 1
        %s566 = smul.addr %s565, 2
        %s567 = smul.addr %s566, 4
        %s568 = scalar_lea.vmem %s0, %s567
        %p569 = pneg %p56
        %p570 = pneg %p53
        %p571 = pneg %p77
        %p572 = pneg %p74
        %p573 = pneg %p98
        %p574 = pneg %p95
        %p575 = pneg %p119
        %p576 = pneg %p116
        %p577 = pneg %p140
        %p578 = pneg %p137
        %p579 = pneg %p161
        %p580 = pneg %p158
        %p581 = pneg %p182
        %p582 = pneg %p179
        %p583 = pneg %p203
        %p584 = pneg %p200
        %p585 = pneg %p224
        %p586 = pneg %p221
        %p587 = pneg %p245
        %p588 = pneg %p242
        %p589 = pneg %p266
        %p590 = pneg %p263
        %p591 = pneg %p287
        %p592 = pneg %p284
        %p593 = pneg %p308
        %p594 = pneg %p305
        %p595 = pneg %p329
        %p596 = pneg %p326
        %p597 = pneg %p350
        %p598 = pneg %p347
        %p599 = pneg %p371
        %p600 = pneg %p368
        %p601 = pneg %p392
        %p602 = pneg %p389
        %p603 = pneg %p418
        %p604 = pneg %p415
        %p605 = scmp.lt.s32.totalorder %s35, 1
        %s606 = scalar_select %p605, %s35, 1
        %s607 = smul.addr %s606, 8
        %s608 = scalar_lea.vmem %s17, %s607
        %p609 = scmp.lt.s32.totalorder %s35, 1
        %s610 = scalar_select %p609, %s35, 1
        %s611 = smul.addr %s610, 2
        %s612 = smul.addr %s611, 4
        %s613 = scalar_lea.vmem %s0, %s612
        %p614 = scmp.lt.s32.totalorder %s35, 1
        %s615 = scalar_select %p614, %s35, 1
        %s616 = smul.addr %s615, 8
        %s617 = scalar_lea.vmem %s17, %s616
        %v618 = vld [vmem:[%s613] sm:$0x77]
        %v619 = vld [vmem:[#allocation4] sm:$0x1]
        %v620 = vld [vmem:[#allocation2] sm:$0x1]
        %622 = vset.pattern.permute.xlu0 0
        %623 = vperm.xlu0 %622, %v620
        %v624 = vpop.permute.xlu0 %623
        %v626 = vlaneseq
        %v627 = vshrl.u32 %v626, 7
        %v628 = vsub.s32 0, %v627
        %v629 = vrot.slane %v624, %v628
        %v631 = vcombine.high %v618, %v618
        %vm632 = vcmask 23552
        %v634 = vsel %vm632, %v619, 0
        %vm636 = vcmask 1042432
        %v637 = vsel %vm636, %v618, 0
        %v639 = vsel %vm636, %v631, 0
        %641 = vmatprep.subr.mxu0 %v639
        %642 = vmatpush1.msra.mxu0 %v637
        %643 = vmatprep.subr.mxu0 0.0
        %644 = vmatpush1.msra.mxu0 0.0
        %645 = vmatprep.subr.mxu0 0.0
        %646 = vmatpush1.msra.mxu0 0.0
        %647 = vmatprep.subr.mxu0 0.0
        %648 = vmatpush1.msra.mxu0 0.0
        %649 = vmatprep.subr.mxu0 0.0
        %650 = vmatpush1.msra.mxu0 0.0
        %651 = vmatprep.subr.mxu0 0.0
        %652 = vmatpush1.msra.mxu0 0.0
        %653 = vmatprep.subr.mxu0 0.0
        %654 = vmatpush1.msra.mxu0 0.0
        %655 = vmatprep.subr.mxu0 0.0
        %656 = vmatpush1.msra.mxu0 0.0
        %657 = vmatprep.subr.mxu0 0.0
        %658 = vmatpush1.msra.mxu0 0.0
        %659 = vmatprep.subr.mxu0 0.0
        %660 = vmatpush1.msra.mxu0 0.0
        %661 = vmatprep.subr.mxu0 0.0
        %662 = vmatpush1.msra.mxu0 0.0
        %663 = vmatprep.subr.mxu0 0.0
        %664 = vmatpush1.msra.mxu0 0.0
        %665 = vmatprep.subr.mxu0 0.0
        %666 = vmatpush1.msra.mxu0 0.0
        %667 = vmatprep.subr.mxu0 0.0
        %668 = vmatpush1.msra.mxu0 0.0
        %669 = vmatprep.subr.mxu0 0.0
        %670 = vmatpush1.msra.mxu0 0.0
        %671 = vmatprep.subr.mxu0 0.0
        %672 = vmatpush1.msra.mxu0 0.0
        %673 = vmatprep.subr.mxu0 0.0
        %674 = vmatpush1.msra.mxu0 0.0
        %675 = vmatprep.subr.mxu0 0.0
        %676 = vmatpush1.msra.mxu0 0.0
        %677 = vmatprep.subr.mxu0 0.0
        %678 = vmatpush1.msra.mxu0 0.0
        %679 = vmatprep.subr.mxu0 0.0
        %680 = vmatpush1.msra.mxu0 0.0
        %681 = vmatprep.subr.mxu0 0.0
        %682 = vmatpush1.msra.mxu0 0.0
        %683 = vmatprep.subr.mxu0 0.0
        %684 = vmatpush1.msra.mxu0 0.0
        %685 = vmatprep.subr.mxu0 0.0
        %686 = vmatpush1.msra.mxu0 0.0
        %687 = vmatprep.subr.mxu0 0.0
        %688 = vmatpush1.msra.mxu0 0.0
        %689 = vmatprep.subr.mxu0 0.0
        %690 = vmatpush1.msra.mxu0 0.0
        %691 = vmatprep.subr.mxu0 0.0
        %692 = vmatpush1.msra.mxu0 0.0
        %693 = vmatprep.subr.mxu0 0.0
        %694 = vmatpush1.msra.mxu0 0.0
        %695 = vmatprep.subr.mxu0 0.0
        %696 = vmatpush1.msra.mxu0 0.0
        %697 = vmatprep.subr.mxu0 0.0
        %698 = vmatpush1.msra.mxu0 0.0
        %699 = vmatprep.subr.mxu0 0.0
        %700 = vmatpush1.msra.mxu0 0.0
        %701 = vmatprep.subr.mxu0 0.0
        %702 = vmatpush1.msra.mxu0 0.0
        %703 = vmatprep.subr.mxu0 0.0
        %704 = vmatpush1.msra.mxu0 0.0
        %705 = vmatprep.mubr.f32.mxu0 0.0
        %706 = vmatmul.mubr.f32.gmra.mrb[0].mxu0 %v634
        %v707 = vpop.f32.mrb[0].mxu0
        %v708 = vadd.f32 %v629, %v707
        %v709 = vpop.f32.mrb[0].mxu0
        %v710 = vadd.f32 %v629, %v709
        %711 = vdwg.mxu0
        %v712 = vxor.u32 %v708, 2147483648
        %v713 = vxor.u32 %v710, 2147483648
        %v714 = vmul.f32 %v712, 1.442695
        %v715 = vpow.pop %v714
        %v716 = vmul.f32 %v713, 1.442695
        %v717 = vpow.pop %v716
        %v718 = vadd.f32 %v715, 1.0
        %v719 = vadd.f32 %v717, 1.0
        %v720 = vrcp.pop %v718
        %v721 = vmul.f32 1.0, %v720
        %v722 = vrcp.pop %v719
        %v723 = vmul.f32 1.0, %v722
        %v724 = vlaneseq
        %v725 = vshrl.u32 %v724, 7
        %v726 = vsub.s32 0, %v725
        %v727 = vrot.slane %v721, %v726
        %v728 = vlaneseq
        %v729 = vshrl.u32 %v728, 7
        %v730 = vsub.s32 0, %v729
        %v731 = vrot.slane %v723, %v730
        %v734 = vcombine.low %v727, %v731
        %v736 = vmul.f32 %v618, %v734
        %v737 = vsub.f32 1.0, %v721
        %v738 = vsub.f32 1.0, %v723
        %v739 = vlaneseq
        %v740 = vshrl.u32 %v739, 7
        %v741 = vsub.s32 0, %v740
        %v742 = vrot.slane %v737, %v741
        %v743 = vlaneseq
        %v744 = vshrl.u32 %v743, 7
        %v745 = vsub.s32 0, %v744
        %v746 = vrot.slane %v738, %v745
        %v749 = vcombine.low %v742, %v746
        %v751 = vmul.f32 %v618, %v749
        %v752 = vld [vmem:[%s4] sm:$0x7]
        %v753 = vld [vmem:[%s5] sm:$0x7]
        %v755 = vcombine.high %v751, %v751
        %v757 = vsel %vm632, %v753, 0
        %v759 = vsel %vm636, %v751, 0
        %v761 = vsel %vm636, %v755, 0
        %763 = vmatprep.subr.mxu0 %v761
        %764 = vmatpush1.msra.mxu0 %v759
        %765 = vmatprep.subr.mxu0 0.0
        %766 = vmatpush1.msra.mxu0 0.0
        %767 = vmatprep.subr.mxu0 0.0
        %768 = vmatpush1.msra.mxu0 0.0
        %769 = vmatprep.subr.mxu0 0.0
        %770 = vmatpush1.msra.mxu0 0.0
        %771 = vmatprep.subr.mxu0 0.0
        %772 = vmatpush1.msra.mxu0 0.0
        %773 = vmatprep.subr.mxu0 0.0
        %774 = vmatpush1.msra.mxu0 0.0
        %775 = vmatprep.subr.mxu0 0.0
        %776 = vmatpush1.msra.mxu0 0.0
        %777 = vmatprep.subr.mxu0 0.0
        %778 = vmatpush1.msra.mxu0 0.0
        %779 = vmatprep.subr.mxu0 0.0
        %780 = vmatpush1.msra.mxu0 0.0
        %781 = vmatprep.subr.mxu0 0.0
        %782 = vmatpush1.msra.mxu0 0.0
        %783 = vmatprep.subr.mxu0 0.0
        %784 = vmatpush1.msra.mxu0 0.0
        %785 = vmatprep.subr.mxu0 0.0
        %786 = vmatpush1.msra.mxu0 0.0
        %787 = vmatprep.subr.mxu0 0.0
        %788 = vmatpush1.msra.mxu0 0.0
        %789 = vmatprep.subr.mxu0 0.0
        %790 = vmatpush1.msra.mxu0 0.0
        %791 = vmatprep.subr.mxu0 0.0
        %792 = vmatpush1.msra.mxu0 0.0
        %793 = vmatprep.subr.mxu0 0.0
        %794 = vmatpush1.msra.mxu0 0.0
        %795 = vmatprep.subr.mxu0 0.0
        %796 = vmatpush1.msra.mxu0 0.0
        %797 = vmatprep.subr.mxu0 0.0
        %798 = vmatpush1.msra.mxu0 0.0
        %799 = vmatprep.subr.mxu0 0.0
        %800 = vmatpush1.msra.mxu0 0.0
        %801 = vmatprep.subr.mxu0 0.0
        %802 = vmatpush1.msra.mxu0 0.0
        %803 = vmatprep.subr.mxu0 0.0
        %804 = vmatpush1.msra.mxu0 0.0
        %805 = vmatprep.subr.mxu0 0.0
        %806 = vmatpush1.msra.mxu0 0.0
        %807 = vmatprep.subr.mxu0 0.0
        %808 = vmatpush1.msra.mxu0 0.0
        %809 = vmatprep.subr.mxu0 0.0
        %810 = vmatpush1.msra.mxu0 0.0
        %811 = vmatprep.subr.mxu0 0.0
        %812 = vmatpush1.msra.mxu0 0.0
        %813 = vmatprep.subr.mxu0 0.0
        %814 = vmatpush1.msra.mxu0 0.0
        %815 = vmatprep.subr.mxu0 0.0
        %816 = vmatpush1.msra.mxu0 0.0
        %817 = vmatprep.subr.mxu0 0.0
        %818 = vmatpush1.msra.mxu0 0.0
        %819 = vmatprep.subr.mxu0 0.0
        %820 = vmatpush1.msra.mxu0 0.0
        %821 = vmatprep.subr.mxu0 0.0
        %822 = vmatpush1.msra.mxu0 0.0
        %823 = vmatprep.subr.mxu0 0.0
        %824 = vmatpush1.msra.mxu0 0.0
        %825 = vmatprep.subr.mxu0 0.0
        %826 = vmatpush1.msra.mxu0 0.0
        %827 = vmatprep.mubr.f32.mxu0 0.0
        %828 = vmatmul.mubr.f32.gmra.mrb[0].mxu0 %v757
        %v829 = vpop.f32.mrb[0].mxu0
        %v830 = vadd.f32 0.0, %v829
        %v831 = vpop.f32.mrb[0].mxu0
        %v832 = vadd.f32 0.0, %v831
        %833 = vdwg.mxu0
        %v835 = vcombine.high %v736, %v736
        %v837 = vsel %vm632, %v752, 0
        %v839 = vsel %vm636, %v736, 0
        %v841 = vsel %vm636, %v835, 0
        %843 = vmatprep.subr.mxu0 %v841
        %844 = vmatpush1.msra.mxu0 %v839
        %845 = vmatprep.subr.mxu0 0.0
        %846 = vmatpush1.msra.mxu0 0.0
        %847 = vmatprep.subr.mxu0 0.0
        %848 = vmatpush1.msra.mxu0 0.0
        %849 = vmatprep.subr.mxu0 0.0
        %850 = vmatpush1.msra.mxu0 0.0
        %851 = vmatprep.subr.mxu0 0.0
        %852 = vmatpush1.msra.mxu0 0.0
        %853 = vmatprep.subr.mxu0 0.0
        %854 = vmatpush1.msra.mxu0 0.0
        %855 = vmatprep.subr.mxu0 0.0
        %856 = vmatpush1.msra.mxu0 0.0
        %857 = vmatprep.subr.mxu0 0.0
        %858 = vmatpush1.msra.mxu0 0.0
        %859 = vmatprep.subr.mxu0 0.0
        %860 = vmatpush1.msra.mxu0 0.0
        %861 = vmatprep.subr.mxu0 0.0
        %862 = vmatpush1.msra.mxu0 0.0
        %863 = vmatprep.subr.mxu0 0.0
        %864 = vmatpush1.msra.mxu0 0.0
        %865 = vmatprep.subr.mxu0 0.0
        %866 = vmatpush1.msra.mxu0 0.0
        %867 = vmatprep.subr.mxu0 0.0
        %868 = vmatpush1.msra.mxu0 0.0
        %869 = vmatprep.subr.mxu0 0.0
        %870 = vmatpush1.msra.mxu0 0.0
        %871 = vmatprep.subr.mxu0 0.0
        %872 = vmatpush1.msra.mxu0 0.0
        %873 = vmatprep.subr.mxu0 0.0
        %874 = vmatpush1.msra.mxu0 0.0
        %875 = vmatprep.subr.mxu0 0.0
        %876 = vmatpush1.msra.mxu0 0.0
        %877 = vmatprep.subr.mxu0 0.0
        %878 = vmatpush1.msra.mxu0 0.0
        %879 = vmatprep.subr.mxu0 0.0
        %880 = vmatpush1.msra.mxu0 0.0
        %881 = vmatprep.subr.mxu0 0.0
        %882 = vmatpush1.msra.mxu0 0.0
        %883 = vmatprep.subr.mxu0 0.0
        %884 = vmatpush1.msra.mxu0 0.0
        %885 = vmatprep.subr.mxu0 0.0
        %886 = vmatpush1.msra.mxu0 0.0
        %887 = vmatprep.subr.mxu0 0.0
        %888 = vmatpush1.msra.mxu0 0.0
        %889 = vmatprep.subr.mxu0 0.0
        %890 = vmatpush1.msra.mxu0 0.0
        %891 = vmatprep.subr.mxu0 0.0
        %892 = vmatpush1.msra.mxu0 0.0
        %893 = vmatprep.subr.mxu0 0.0
        %894 = vmatpush1.msra.mxu0 0.0
        %895 = vmatprep.subr.mxu0 0.0
        %896 = vmatpush1.msra.mxu0 0.0
        %897 = vmatprep.subr.mxu0 0.0
        %898 = vmatpush1.msra.mxu0 0.0
        %899 = vmatprep.subr.mxu0 0.0
        %900 = vmatpush1.msra.mxu0 0.0
        %901 = vmatprep.subr.mxu0 0.0
        %902 = vmatpush1.msra.mxu0 0.0
        %903 = vmatprep.subr.mxu0 0.0
        %904 = vmatpush1.msra.mxu0 0.0
        %905 = vmatprep.subr.mxu0 0.0
        %906 = vmatpush1.msra.mxu0 0.0
        %907 = vmatprep.mubr.f32.mxu0 0.0
        %908 = vmatmul.mubr.f32.gmra.mrb[0].mxu0 %v837
        %v909 = vpop.f32.mrb[0].mxu0
        %v910 = vadd.f32 %v830, %v909
        %v911 = vpop.f32.mrb[0].mxu0
        %v912 = vadd.f32 %v832, %v911
        %913 = vdwg.mxu0
        %v914 = vld [vmem:[#allocation6] sm:$0xff]
        %v915 = vld [vmem:[#allocation6 + $0x8] sm:$0xff]
        %v916 = vld [vmem:[#allocation6 + $0x10] sm:$0xff]
        %v917 = vld [vmem:[#allocation6 + $0x18] sm:$0xff]
        %v918 = vld [vmem:[#allocation6 + $0x20] sm:$0xff]
        %v919 = vld [vmem:[#allocation6 + $0x28] sm:$0xff]
        %v920 = vld [vmem:[#allocation6 + $0x30] sm:$0xff]
        %v921 = vld [vmem:[#allocation6 + $0x38] sm:$0xff]
        %v922 = vld [vmem:[#allocation6 + $0x40] sm:$0xff]
        %v923 = vld [vmem:[#allocation6 + $0x48] sm:$0xff]
        %v924 = vld [vmem:[#allocation6 + $0x50] sm:$0xff]
        %v925 = vld [vmem:[#allocation6 + $0x58] sm:$0xff]
        %v926 = vld [vmem:[#allocation6 + $0x60] sm:$0xff]
        %v927 = vld [vmem:[#allocation6 + $0x68] sm:$0xff]
        %v928 = vld [vmem:[#allocation6 + $0x70] sm:$0xff]
        %v929 = vld [vmem:[#allocation6 + $0x78] sm:$0xff]
        %v930 = vld [vmem:[#allocation6 + $0x80] sm:$0xff]
        %v931 = vld [vmem:[#allocation6 + $0x88] sm:$0xff]
        %v932 = vld [vmem:[#allocation6 + $0x90] sm:$0xff]
        %v933 = vld [vmem:[#allocation6 + $0x98] sm:$0xff]
        %v934 = vld [vmem:[#allocation6 + $0xa0] sm:$0xff]
        %v935 = vld [vmem:[#allocation6 + $0xa8] sm:$0xff]
        %v936 = vld [vmem:[#allocation6 + $0xb0] sm:$0xff]
        %v937 = vld [vmem:[#allocation6 + $0xb8] sm:$0xff]
        %v938 = vld [vmem:[#allocation6 + $0xc0] sm:$0xff]
        %v939 = vld [vmem:[#allocation6 + $0xc8] sm:$0xff]
        %v940 = vld [vmem:[#allocation6 + $0xd0] sm:$0xff]
        %v941 = vld [vmem:[#allocation6 + $0xd8] sm:$0xff]
        %v942 = vld [vmem:[#allocation6 + $0xe0] sm:$0xff]
        %v943 = vld [vmem:[#allocation6 + $0xe8] sm:$0xff]
        %v944 = vld [vmem:[#allocation6 + $0xf0] sm:$0xff]
        %v945 = vld [vmem:[#allocation6 + $0xf8] sm:$0xff]
        %v946 = vld [vmem:[#allocation6 + $0x100] sm:$0xff]
        %v947 = vld [vmem:[#allocation6 + $0x108] sm:$0xff]
        %v948 = vld [vmem:[#allocation6 + $0x110] sm:$0xff]
        %v949 = vld [vmem:[#allocation6 + $0x118] sm:$0xff]
        %v950 = vld [vmem:[#allocation6 + $0x120] sm:$0xff]
        %v951 = vld [vmem:[#allocation6 + $0x128] sm:$0xff]
        %v952 = vld [vmem:[#allocation6 + $0x130] sm:$0xff]
        %v953 = vld [vmem:[#allocation6 + $0x138] sm:$0xff]
        %v954 = vld [vmem:[#allocation6 + $0x140] sm:$0xff]
        %v955 = vld [vmem:[#allocation6 + $0x148] sm:$0xff]
        %v956 = vld [vmem:[#allocation6 + $0x150] sm:$0xff]
        %v957 = vld [vmem:[#allocation6 + $0x158] sm:$0xff]
        %v958 = vld [vmem:[#allocation6 + $0x160] sm:$0xff]
        %v959 = vld [vmem:[#allocation6 + $0x168] sm:$0xff]
        %v960 = vld [vmem:[#allocation6 + $0x170] sm:$0xff]
        %v961 = vld [vmem:[#allocation6 + $0x178] sm:$0xff]
        %v962 = vld [vmem:[#allocation6 + $0x180] sm:$0xff]
        %v963 = vld [vmem:[#allocation6 + $0x188] sm:$0xff]
        %v964 = vld [vmem:[#allocation6 + $0x190] sm:$0xff]
        %v965 = vld [vmem:[#allocation6 + $0x198] sm:$0xff]
        %v966 = vld [vmem:[#allocation6 + $0x1a0] sm:$0xff]
        %v967 = vld [vmem:[#allocation6 + $0x1a8] sm:$0xff]
        %v968 = vld [vmem:[#allocation6 + $0x1b0] sm:$0xff]
        %v969 = vld [vmem:[#allocation6 + $0x1b8] sm:$0xff]
        %v970 = vld [vmem:[#allocation6 + $0x1c0] sm:$0xff]
        %v971 = vld [vmem:[#allocation6 + $0x1c8] sm:$0xff]
        %v972 = vld [vmem:[#allocation6 + $0x1d0] sm:$0xff]
        %v973 = vld [vmem:[#allocation6 + $0x1d8] sm:$0xff]
        %v974 = vld [vmem:[#allocation6 + $0x1e0] sm:$0xff]
        %v975 = vld [vmem:[#allocation6 + $0x1e8] sm:$0xff]
        %v976 = vld [vmem:[#allocation6 + $0x1f0] sm:$0xff]
        %v977 = vld [vmem:[#allocation6 + $0x1f8] sm:$0xff]
        %s978 = scalar_lea.vmem %s4, 4
        %v979 = vld [vmem:[%s978] sm:$0x7]
        %s980 = scalar_lea.vmem %s5, 4
        %v981 = vld [vmem:[%s980] sm:$0x7]
        %v983 = vsel %vm632, %v981, 0
        %985 = vmatprep.subr.mxu0 %v761
        %986 = vmatpush1.msra.mxu0 %v759
        %987 = vmatprep.subr.mxu0 0.0
        %988 = vmatpush1.msra.mxu0 0.0
        %989 = vmatprep.subr.mxu0 0.0
        %990 = vmatpush1.msra.mxu0 0.0
        %991 = vmatprep.subr.mxu0 0.0
        %992 = vmatpush1.msra.mxu0 0.0
        %993 = vmatprep.subr.mxu0 0.0
        %994 = vmatpush1.msra.mxu0 0.0
        %995 = vmatprep.subr.mxu0 0.0
        %996 = vmatpush1.msra.mxu0 0.0
        %997 = vmatprep.subr.mxu0 0.0
        %998 = vmatpush1.msra.mxu0 0.0
        %999 = vmatprep.subr.mxu0 0.0
        %1000 = vmatpush1.msra.mxu0 0.0
        %1001 = vmatprep.subr.mxu0 0.0
        %1002 = vmatpush1.msra.mxu0 0.0
        %1003 = vmatprep.subr.mxu0 0.0
        %1004 = vmatpush1.msra.mxu0 0.0
        %1005 = vmatprep.subr.mxu0 0.0
        %1006 = vmatpush1.msra.mxu0 0.0
        %1007 = vmatprep.subr.mxu0 0.0
        %1008 = vmatpush1.msra.mxu0 0.0
        %1009 = vmatprep.subr.mxu0 0.0
        %1010 = vmatpush1.msra.mxu0 0.0
        %1011 = vmatprep.subr.mxu0 0.0
        %1012 = vmatpush1.msra.mxu0 0.0
        %1013 = vmatprep.subr.mxu0 0.0
        %1014 = vmatpush1.msra.mxu0 0.0
        %1015 = vmatprep.subr.mxu0 0.0
        %1016 = vmatpush1.msra.mxu0 0.0
        %1017 = vmatprep.subr.mxu0 0.0
        %1018 = vmatpush1.msra.mxu0 0.0
        %1019 = vmatprep.subr.mxu0 0.0
        %1020 = vmatpush1.msra.mxu0 0.0
        %1021 = vmatprep.subr.mxu0 0.0
        %1022 = vmatpush1.msra.mxu0 0.0
        %1023 = vmatprep.subr.mxu0 0.0
        %1024 = vmatpush1.msra.mxu0 0.0
        %1025 = vmatprep.subr.mxu0 0.0
        %1026 = vmatpush1.msra.mxu0 0.0
        %1027 = vmatprep.subr.mxu0 0.0
        %1028 = vmatpush1.msra.mxu0 0.0
        %1029 = vmatprep.subr.mxu0 0.0
        %1030 = vmatpush1.msra.mxu0 0.0
        %1031 = vmatprep.subr.mxu0 0.0
        %1032 = vmatpush1.msra.mxu0 0.0
        %1033 = vmatprep.subr.mxu0 0.0
        %1034 = vmatpush1.msra.mxu0 0.0
        %1035 = vmatprep.subr.mxu0 0.0
        %1036 = vmatpush1.msra.mxu0 0.0
        %1037 = vmatprep.subr.mxu0 0.0
        %1038 = vmatpush1.msra.mxu0 0.0
        %1039 = vmatprep.subr.mxu0 0.0
        %1040 = vmatpush1.msra.mxu0 0.0
        %1041 = vmatprep.subr.mxu0 0.0
        %1042 = vmatpush1.msra.mxu0 0.0
        %1043 = vmatprep.subr.mxu0 0.0
        %1044 = vmatpush1.msra.mxu0 0.0
        %1045 = vmatprep.subr.mxu0 0.0
        %1046 = vmatpush1.msra.mxu0 0.0
        %1047 = vmatprep.subr.mxu0 0.0
        %1048 = vmatpush1.msra.mxu0 0.0
        %1049 = vmatprep.mubr.f32.mxu0 0.0
        %1050 = vmatmul.mubr.f32.gmra.mrb[0].mxu0 %v983
        %v1051 = vpop.f32.mrb[0].mxu0
        %v1052 = vadd.f32 0.0, %v1051
        %v1053 = vpop.f32.mrb[0].mxu0
        %v1054 = vadd.f32 0.0, %v1053
        %1055 = vdwg.mxu0
        %v1057 = vsel %vm632, %v979, 0
        %1059 = vmatprep.subr.mxu0 %v841
        %1060 = vmatpush1.msra.mxu0 %v839
        %1061 = vmatprep.subr.mxu0 0.0
        %1062 = vmatpush1.msra.mxu0 0.0
        %1063 = vmatprep.subr.mxu0 0.0
        %1064 = vmatpush1.msra.mxu0 0.0
        %1065 = vmatprep.subr.mxu0 0.0
        %1066 = vmatpush1.msra.mxu0 0.0
        %1067 = vmatprep.subr.mxu0 0.0
        %1068 = vmatpush1.msra.mxu0 0.0
        %1069 = vmatprep.subr.mxu0 0.0
        %1070 = vmatpush1.msra.mxu0 0.0
        %1071 = vmatprep.subr.mxu0 0.0
        %1072 = vmatpush1.msra.mxu0 0.0
        %1073 = vmatprep.subr.mxu0 0.0
        %1074 = vmatpush1.msra.mxu0 0.0
        %1075 = vmatprep.subr.mxu0 0.0
        %1076 = vmatpush1.msra.mxu0 0.0
        %1077 = vmatprep.subr.mxu0 0.0
        %1078 = vmatpush1.msra.mxu0 0.0
        %1079 = vmatprep.subr.mxu0 0.0
        %1080 = vmatpush1.msra.mxu0 0.0
        %1081 = vmatprep.subr.mxu0 0.0
        %1082 = vmatpush1.msra.mxu0 0.0
        %1083 = vmatprep.subr.mxu0 0.0
        %1084 = vmatpush1.msra.mxu0 0.0
        %1085 = vmatprep.subr.mxu0 0.0
        %1086 = vmatpush1.msra.mxu0 0.0
        %1087 = vmatprep.subr.mxu0 0.0
        %1088 = vmatpush1.msra.mxu0 0.0
        %1089 = vmatprep.subr.mxu0 0.0
        %1090 = vmatpush1.msra.mxu0 0.0
        %1091 = vmatprep.subr.mxu0 0.0
        %1092 = vmatpush1.msra.mxu0 0.0
        %1093 = vmatprep.subr.mxu0 0.0
        %1094 = vmatpush1.msra.mxu0 0.0
        %1095 = vmatprep.subr.mxu0 0.0
        %1096 = vmatpush1.msra.mxu0 0.0
        %1097 = vmatprep.subr.mxu0 0.0
        %1098 = vmatpush1.msra.mxu0 0.0
        %1099 = vmatprep.subr.mxu0 0.0
        %1100 = vmatpush1.msra.mxu0 0.0
        %1101 = vmatprep.subr.mxu0 0.0
        %1102 = vmatpush1.msra.mxu0 0.0
        %1103 = vmatprep.subr.mxu0 0.0
        %1104 = vmatpush1.msra.mxu0 0.0
        %1105 = vmatprep.subr.mxu0 0.0
        %1106 = vmatpush1.msra.mxu0 0.0
        %1107 = vmatprep.subr.mxu0 0.0
        %1108 = vmatpush1.msra.mxu0 0.0
        %1109 = vmatprep.subr.mxu0 0.0
        %1110 = vmatpush1.msra.mxu0 0.0
        %1111 = vmatprep.subr.mxu0 0.0
        %1112 = vmatpush1.msra.mxu0 0.0
        %1113 = vmatprep.subr.mxu0 0.0
        %1114 = vmatpush1.msra.mxu0 0.0
        %1115 = vmatprep.subr.mxu0 0.0
        %1116 = vmatpush1.msra.mxu0 0.0
        %1117 = vmatprep.subr.mxu0 0.0
        %1118 = vmatpush1.msra.mxu0 0.0
        %1119 = vmatprep.subr.mxu0 0.0
        %1120 = vmatpush1.msra.mxu0 0.0
        %1121 = vmatprep.subr.mxu0 0.0
        %1122 = vmatpush1.msra.mxu0 0.0
        %1123 = vmatprep.mubr.f32.mxu0 0.0
        %1124 = vmatmul.mubr.f32.gmra.mrb[0].mxu0 %v1057
        %v1125 = vpop.f32.mrb[0].mxu0
        %v1126 = vadd.f32 %v1052, %v1125
        %v1127 = vpop.f32.mrb[0].mxu0
        %v1128 = vadd.f32 %v1054, %v1127
        %1129 = vdwg.mxu0
        %s1130 = scalar_lea.vmem [#allocation6], 512
        %v1131 = vld [vmem:[%s1130] sm:$0xff]
        %v1132 = vld [vmem:[%s1130 + $0x8] sm:$0xff]
        %v1133 = vld [vmem:[%s1130 + $0x10] sm:$0xff]
        %v1134 = vld [vmem:[%s1130 + $0x18] sm:$0xff]
        %v1135 = vld [vmem:[%s1130 + $0x20] sm:$0xff]
        %v1136 = vld [vmem:[%s1130 + $0x28] sm:$0xff]
        %v1137 = vld [vmem:[%s1130 + $0x30] sm:$0xff]
        %v1138 = vld [vmem:[%s1130 + $0x38] sm:$0xff]
        %v1139 = vld [vmem:[%s1130 + $0x40] sm:$0xff]
        %v1140 = vld [vmem:[%s1130 + $0x48] sm:$0xff]
        %v1141 = vld [vmem:[%s1130 + $0x50] sm:$0xff]
        %v1142 = vld [vmem:[%s1130 + $0x58] sm:$0xff]
        %v1143 = vld [vmem:[%s1130 + $0x60] sm:$0xff]
        %v1144 = vld [vmem:[%s1130 + $0x68] sm:$0xff]
        %v1145 = vld [vmem:[%s1130 + $0x70] sm:$0xff]
        %v1146 = vld [vmem:[%s1130 + $0x78] sm:$0xff]
        %v1147 = vld [vmem:[%s1130 + $0x80] sm:$0xff]
        %v1148 = vld [vmem:[%s1130 + $0x88] sm:$0xff]
        %v1149 = vld [vmem:[%s1130 + $0x90] sm:$0xff]
        %v1150 = vld [vmem:[%s1130 + $0x98] sm:$0xff]
        %v1151 = vld [vmem:[%s1130 + $0xa0] sm:$0xff]
        %v1152 = vld [vmem:[%s1130 + $0xa8] sm:$0xff]
        %v1153 = vld [vmem:[%s1130 + $0xb0] sm:$0xff]
        %v1154 = vld [vmem:[%s1130 + $0xb8] sm:$0xff]
        %v1155 = vld [vmem:[%s1130 + $0xc0] sm:$0xff]
        %v1156 = vld [vmem:[%s1130 + $0xc8] sm:$0xff]
        %v1157 = vld [vmem:[%s1130 + $0xd0] sm:$0xff]
        %v1158 = vld [vmem:[%s1130 + $0xd8] sm:$0xff]
        %v1159 = vld [vmem:[%s1130 + $0xe0] sm:$0xff]
        %v1160 = vld [vmem:[%s1130 + $0xe8] sm:$0xff]
        %v1161 = vld [vmem:[%s1130 + $0xf0] sm:$0xff]
        %v1162 = vld [vmem:[%s1130 + $0xf8] sm:$0xff]
        %v1163 = vld [vmem:[%s1130 + $0x100] sm:$0xff]
        %v1164 = vld [vmem:[%s1130 + $0x108] sm:$0xff]
        %v1165 = vld [vmem:[%s1130 + $0x110] sm:$0xff]
        %v1166 = vld [vmem:[%s1130 + $0x118] sm:$0xff]
        %v1167 = vld [vmem:[%s1130 + $0x120] sm:$0xff]
        %v1168 = vld [vmem:[%s1130 + $0x128] sm:$0xff]
        %v1169 = vld [vmem:[%s1130 + $0x130] sm:$0xff]
        %v1170 = vld [vmem:[%s1130 + $0x138] sm:$0xff]
        %v1171 = vld [vmem:[%s1130 + $0x140] sm:$0xff]
        %v1172 = vld [vmem:[%s1130 + $0x148] sm:$0xff]
        %v1173 = vld [vmem:[%s1130 + $0x150] sm:$0xff]
        %v1174 = vld [vmem:[%s1130 + $0x158] sm:$0xff]
        %v1175 = vld [vmem:[%s1130 + $0x160] sm:$0xff]
        %v1176 = vld [vmem:[%s1130 + $0x168] sm:$0xff]
        %v1177 = vld [vmem:[%s1130 + $0x170] sm:$0xff]
        %v1178 = vld [vmem:[%s1130 + $0x178] sm:$0xff]
        %v1179 = vld [vmem:[%s1130 + $0x180] sm:$0xff]
        %v1180 = vld [vmem:[%s1130 + $0x188] sm:$0xff]
        %v1181 = vld [vmem:[%s1130 + $0x190] sm:$0xff]
        %v1182 = vld [vmem:[%s1130 + $0x198] sm:$0xff]
        %v1183 = vld [vmem:[%s1130 + $0x1a0] sm:$0xff]
        %v1184 = vld [vmem:[%s1130 + $0x1a8] sm:$0xff]
        %v1185 = vld [vmem:[%s1130 + $0x1b0] sm:$0xff]
        %v1186 = vld [vmem:[%s1130 + $0x1b8] sm:$0xff]
        %v1187 = vld [vmem:[%s1130 + $0x1c0] sm:$0xff]
        %v1188 = vld [vmem:[%s1130 + $0x1c8] sm:$0xff]
        %v1189 = vld [vmem:[%s1130 + $0x1d0] sm:$0xff]
        %v1190 = vld [vmem:[%s1130 + $0x1d8] sm:$0xff]
        %v1191 = vld [vmem:[%s1130 + $0x1e0] sm:$0xff]
        %v1192 = vld [vmem:[%s1130 + $0x1e8] sm:$0xff]
        %v1193 = vld [vmem:[%s1130 + $0x1f0] sm:$0xff]
        %v1194 = vld [vmem:[%s1130 + $0x1f8] sm:$0xff]
        %1195 = vmatprep.subr.mxu0 %v1132
        %1196 = vmatpush1.msra.mxu0 %v1131
        %1197 = vmatprep.subr.mxu0 %v1134
        %1198 = vmatpush1.msra.mxu0 %v1133
        %1199 = vmatprep.subr.mxu0 %v1136
        %1200 = vmatpush1.msra.mxu0 %v1135
        %1201 = vmatprep.subr.mxu0 %v1138
        %1202 = vmatpush1.msra.mxu0 %v1137
        %1203 = vmatprep.subr.mxu0 %v1140
        %1204 = vmatpush1.msra.mxu0 %v1139
        %1205 = vmatprep.subr.mxu0 %v1142
        %1206 = vmatpush1.msra.mxu0 %v1141
        %1207 = vmatprep.subr.mxu0 %v1144
        %1208 = vmatpush1.msra.mxu0 %v1143
        %1209 = vmatprep.subr.mxu0 %v1146
        %1210 = vmatpush1.msra.mxu0 %v1145
        %1211 = vmatprep.subr.mxu0 %v1148
        %1212 = vmatpush1.msra.mxu0 %v1147
        %1213 = vmatprep.subr.mxu0 %v1150
        %1214 = vmatpush1.msra.mxu0 %v1149
        %1215 = vmatprep.subr.mxu0 %v1152
        %1216 = vmatpush1.msra.mxu0 %v1151
        %1217 = vmatprep.subr.mxu0 %v1154
        %1218 = vmatpush1.msra.mxu0 %v1153
        %1219 = vmatprep.subr.mxu0 %v1156
        %1220 = vmatpush1.msra.mxu0 %v1155
        %1221 = vmatprep.subr.mxu0 %v1158
        %1222 = vmatpush1.msra.mxu0 %v1157
        %1223 = vmatprep.subr.mxu0 %v1160
        %1224 = vmatpush1.msra.mxu0 %v1159
        %1225 = vmatprep.subr.mxu0 %v1162
        %1226 = vmatpush1.msra.mxu0 %v1161
        %1227 = vmatprep.subr.mxu0 %v1164
        %1228 = vmatpush1.msra.mxu0 %v1163
        %1229 = vmatprep.subr.mxu0 %v1166
        %1230 = vmatpush1.msra.mxu0 %v1165
        %1231 = vmatprep.subr.mxu0 %v1168
        %1232 = vmatpush1.msra.mxu0 %v1167
        %1233 = vmatprep.subr.mxu0 %v1170
        %1234 = vmatpush1.msra.mxu0 %v1169
        %1235 = vmatprep.subr.mxu0 %v1172
        %1236 = vmatpush1.msra.mxu0 %v1171
        %1237 = vmatprep.subr.mxu0 %v1174
        %1238 = vmatpush1.msra.mxu0 %v1173
        %1239 = vmatprep.subr.mxu0 %v1176
        %1240 = vmatpush1.msra.mxu0 %v1175
        %1241 = vmatprep.subr.mxu0 %v1178
        %1242 = vmatpush1.msra.mxu0 %v1177
        %1243 = vmatprep.subr.mxu0 %v1180
        %1244 = vmatpush1.msra.mxu0 %v1179
        %1245 = vmatprep.subr.mxu0 %v1182
        %1246 = vmatpush1.msra.mxu0 %v1181
        %1247 = vmatprep.subr.mxu0 %v1184
        %1248 = vmatpush1.msra.mxu0 %v1183
        %1249 = vmatprep.subr.mxu0 %v1186
        %1250 = vmatpush1.msra.mxu0 %v1185
        %1251 = vmatprep.subr.mxu0 %v1188
        %1252 = vmatpush1.msra.mxu0 %v1187
        %1253 = vmatprep.subr.mxu0 %v1190
        %1254 = vmatpush1.msra.mxu0 %v1189
        %1255 = vmatprep.subr.mxu0 %v1192
        %1256 = vmatpush1.msra.mxu0 %v1191
        %1257 = vmatprep.subr.mxu0 %v1194
        %1258 = vmatpush1.msra.mxu0 %v1193
        %1259 = vmatprep.mubr.f32.mxu0 %v1128
        %1260 = vmatmul.mubr.f32.gmra.mrb[0].mxu0 %v1126
        %v1261 = vpop.f32.mrb[0].mxu0
        %v1262 = vadd.f32 0.0, %v1261
        %v1263 = vpop.f32.mrb[0].mxu0
        %v1264 = vadd.f32 0.0, %v1263
        %1265 = vdwg.mxu0
        %1266 = vmatprep.subr.mxu0 %v915
        %1267 = vmatpush1.msra.mxu0 %v914
        %1268 = vmatprep.subr.mxu0 %v917
        %1269 = vmatpush1.msra.mxu0 %v916
        %1270 = vmatprep.subr.mxu0 %v919
        %1271 = vmatpush1.msra.mxu0 %v918
        %1272 = vmatprep.subr.mxu0 %v921
        %1273 = vmatpush1.msra.mxu0 %v920
        %1274 = vmatprep.subr.mxu0 %v923
        %1275 = vmatpush1.msra.mxu0 %v922
        %1276 = vmatprep.subr.mxu0 %v925
        %1277 = vmatpush1.msra.mxu0 %v924
        %1278 = vmatprep.subr.mxu0 %v927
        %1279 = vmatpush1.msra.mxu0 %v926
        %1280 = vmatprep.subr.mxu0 %v929
        %1281 = vmatpush1.msra.mxu0 %v928
        %1282 = vmatprep.subr.mxu0 %v931
        %1283 = vmatpush1.msra.mxu0 %v930
        %1284 = vmatprep.subr.mxu0 %v933
        %1285 = vmatpush1.msra.mxu0 %v932
        %1286 = vmatprep.subr.mxu0 %v935
        %1287 = vmatpush1.msra.mxu0 %v934
        %1288 = vmatprep.subr.mxu0 %v937
        %1289 = vmatpush1.msra.mxu0 %v936
        %1290 = vmatprep.subr.mxu0 %v939
        %1291 = vmatpush1.msra.mxu0 %v938
        %1292 = vmatprep.subr.mxu0 %v941
        %1293 = vmatpush1.msra.mxu0 %v940
        %1294 = vmatprep.subr.mxu0 %v943
        %1295 = vmatpush1.msra.mxu0 %v942
        %1296 = vmatprep.subr.mxu0 %v945
        %1297 = vmatpush1.msra.mxu0 %v944
        %1298 = vmatprep.subr.mxu0 %v947
        %1299 = vmatpush1.msra.mxu0 %v946
        %1300 = vmatprep.subr.mxu0 %v949
        %1301 = vmatpush1.msra.mxu0 %v948
        %1302 = vmatprep.subr.mxu0 %v951
        %1303 = vmatpush1.msra.mxu0 %v950
        %1304 = vmatprep.subr.mxu0 %v953
        %1305 = vmatpush1.msra.mxu0 %v952
        %1306 = vmatprep.subr.mxu0 %v955
        %1307 = vmatpush1.msra.mxu0 %v954
        %1308 = vmatprep.subr.mxu0 %v957
        %1309 = vmatpush1.msra.mxu0 %v956
        %1310 = vmatprep.subr.mxu0 %v959
        %1311 = vmatpush1.msra.mxu0 %v958
        %1312 = vmatprep.subr.mxu0 %v961
        %1313 = vmatpush1.msra.mxu0 %v960
        %1314 = vmatprep.subr.mxu0 %v963
        %1315 = vmatpush1.msra.mxu0 %v962
        %1316 = vmatprep.subr.mxu0 %v965
        %1317 = vmatpush1.msra.mxu0 %v964
        %1318 = vmatprep.subr.mxu0 %v967
        %1319 = vmatpush1.msra.mxu0 %v966
        %1320 = vmatprep.subr.mxu0 %v969
        %1321 = vmatpush1.msra.mxu0 %v968
        %1322 = vmatprep.subr.mxu0 %v971
        %1323 = vmatpush1.msra.mxu0 %v970
        %1324 = vmatprep.subr.mxu0 %v973
        %1325 = vmatpush1.msra.mxu0 %v972
        %1326 = vmatprep.subr.mxu0 %v975
        %1327 = vmatpush1.msra.mxu0 %v974
        %1328 = vmatprep.subr.mxu0 %v977
        %1329 = vmatpush1.msra.mxu0 %v976
        %1330 = vmatprep.mubr.f32.mxu0 %v912
        %1331 = vmatmul.mubr.f32.gmra.mrb[0].mxu0 %v910
        %v1332 = vpop.f32.mrb[0].mxu0
        %v1333 = vadd.f32 %v1262, %v1332
        %v1334 = vpop.f32.mrb[0].mxu0
        %v1335 = vadd.f32 %v1264, %v1334
        %1336 = vdwg.mxu0
        %s1337 = scalar_lea.vmem %s4, 8
        %v1338 = vld [vmem:[%s1337] sm:$0x7]
        %s1339 = scalar_lea.vmem %s5, 8
        %v1340 = vld [vmem:[%s1339] sm:$0x7]
        %v1342 = vsel %vm632, %v1340, 0
        %1344 = vmatprep.subr.mxu0 %v761
        %1345 = vmatpush1.msra.mxu0 %v759
        %1346 = vmatprep.subr.mxu0 0.0
        %1347 = vmatpush1.msra.mxu0 0.0
        %1348 = vmatprep.subr.mxu0 0.0
        %1349 = vmatpush1.msra.mxu0 0.0
        %1350 = vmatprep.subr.mxu0 0.0
        %1351 = vmatpush1.msra.mxu0 0.0
        %1352 = vmatprep.subr.mxu0 0.0
        %1353 = vmatpush1.msra.mxu0 0.0
        %1354 = vmatprep.subr.mxu0 0.0
        %1355 = vmatpush1.msra.mxu0 0.0
        %1356 = vmatprep.subr.mxu0 0.0
        %1357 = vmatpush1.msra.mxu0 0.0
        %1358 = vmatprep.subr.mxu0 0.0
        %1359 = vmatpush1.msra.mxu0 0.0
        %1360 = vmatprep.subr.mxu0 0.0
        %1361 = vmatpush1.msra.mxu0 0.0
        %1362 = vmatprep.subr.mxu0 0.0
        %1363 = vmatpush1.msra.mxu0 0.0
        %1364 = vmatprep.subr.mxu0 0.0
        %1365 = vmatpush1.msra.mxu0 0.0
        %1366 = vmatprep.subr.mxu0 0.0
        %1367 = vmatpush1.msra.mxu0 0.0
        %1368 = vmatprep.subr.mxu0 0.0
        %1369 = vmatpush1.msra.mxu0 0.0
        %1370 = vmatprep.subr.mxu0 0.0
        %1371 = vmatpush1.msra.mxu0 0.0
        %1372 = vmatprep.subr.mxu0 0.0
        %1373 = vmatpush1.msra.mxu0 0.0
        %1374 = vmatprep.subr.mxu0 0.0
        %1375 = vmatpush1.msra.mxu0 0.0
        %1376 = vmatprep.subr.mxu0 0.0
        %1377 = vmatpush1.msra.mxu0 0.0
        %1378 = vmatprep.subr.mxu0 0.0
        %1379 = vmatpush1.msra.mxu0 0.0
        %1380 = vmatprep.subr.mxu0 0.0
        %1381 = vmatpush1.msra.mxu0 0.0
        %1382 = vmatprep.subr.mxu0 0.0
        %1383 = vmatpush1.msra.mxu0 0.0
        %1384 = vmatprep.subr.mxu0 0.0
        %1385 = vmatpush1.msra.mxu0 0.0
        %1386 = vmatprep.subr.mxu0 0.0
        %1387 = vmatpush1.msra.mxu0 0.0
        %1388 = vmatprep.subr.mxu0 0.0
        %1389 = vmatpush1.msra.mxu0 0.0
        %1390 = vmatprep.subr.mxu0 0.0
        %1391 = vmatpush1.msra.mxu0 0.0
        %1392 = vmatprep.subr.mxu0 0.0
        %1393 = vmatpush1.msra.mxu0 0.0
        %1394 = vmatprep.subr.mxu0 0.0
        %1395 = vmatpush1.msra.mxu0 0.0
        %1396 = vmatprep.subr.mxu0 0.0
        %1397 = vmatpush1.msra.mxu0 0.0
        %1398 = vmatprep.subr.mxu0 0.0
        %1399 = vmatpush1.msra.mxu0 0.0
        %1400 = vmatprep.subr.mxu0 0.0
        %1401 = vmatpush1.msra.mxu0 0.0
        %1402 = vmatprep.subr.mxu0 0.0
        %1403 = vmatpush1.msra.mxu0 0.0
        %1404 = vmatprep.subr.mxu0 0.0
        %1405 = vmatpush1.msra.mxu0 0.0
        %1406 = vmatprep.subr.mxu0 0.0
        %1407 = vmatpush1.msra.mxu0 0.0
        %1408 = vmatprep.mubr.f32.mxu0 0.0
        %1409 = vmatmul.mubr.f32.gmra.mrb[0].mxu0 %v1342
        %v1410 = vpop.f32.mrb[0].mxu0
        %v1411 = vadd.f32 0.0, %v1410
        %v1412 = vpop.f32.mrb[0].mxu0
        %v1413 = vadd.f32 0.0, %v1412
        %1414 = vdwg.mxu0
        %v1416 = vsel %vm632, %v1338, 0
        %1418 = vmatprep.subr.mxu0 %v841
        %1419 = vmatpush1.msra.mxu0 %v839
        %1420 = vmatprep.subr.mxu0 0.0
        %1421 = vmatpush1.msra.mxu0 0.0
        %1422 = vmatprep.subr.mxu0 0.0
        %1423 = vmatpush1.msra.mxu0 0.0
        %1424 = vmatprep.subr.mxu0 0.0
        %1425 = vmatpush1.msra.mxu0 0.0
        %1426 = vmatprep.subr.mxu0 0.0
        %1427 = vmatpush1.msra.mxu0 0.0
        %1428 = vmatprep.subr.mxu0 0.0
        %1429 = vmatpush1.msra.mxu0 0.0
        %1430 = vmatprep.subr.mxu0 0.0
        %1431 = vmatpush1.msra.mxu0 0.0
        %1432 = vmatprep.subr.mxu0 0.0
        %1433 = vmatpush1.msra.mxu0 0.0
        %1434 = vmatprep.subr.mxu0 0.0
        %1435 = vmatpush1.msra.mxu0 0.0
        %1436 = vmatprep.subr.mxu0 0.0
        %1437 = vmatpush1.msra.mxu0 0.0
        %1438 = vmatprep.subr.mxu0 0.0
        %1439 = vmatpush1.msra.mxu0 0.0
        %1440 = vmatprep.subr.mxu0 0.0
        %1441 = vmatpush1.msra.mxu0 0.0
        %1442 = vmatprep.subr.mxu0 0.0
        %1443 = vmatpush1.msra.mxu0 0.0
        %1444 = vmatprep.subr.mxu0 0.0
        %1445 = vmatpush1.msra.mxu0 0.0
        %1446 = vmatprep.subr.mxu0 0.0
        %1447 = vmatpush1.msra.mxu0 0.0
        %1448 = vmatprep.subr.mxu0 0.0
        %1449 = vmatpush1.msra.mxu0 0.0
        %1450 = vmatprep.subr.mxu0 0.0
        %1451 = vmatpush1.msra.mxu0 0.0
        %1452 = vmatprep.subr.mxu0 0.0
        %1453 = vmatpush1.msra.mxu0 0.0
        %1454 = vmatprep.subr.mxu0 0.0
        %1455 = vmatpush1.msra.mxu0 0.0
        %1456 = vmatprep.subr.mxu0 0.0
        %1457 = vmatpush1.msra.mxu0 0.0
        %1458 = vmatprep.subr.mxu0 0.0
        %1459 = vmatpush1.msra.mxu0 0.0
        %1460 = vmatprep.subr.mxu0 0.0
        %1461 = vmatpush1.msra.mxu0 0.0
        %1462 = vmatprep.subr.mxu0 0.0
        %1463 = vmatpush1.msra.mxu0 0.0
        %1464 = vmatprep.subr.mxu0 0.0
        %1465 = vmatpush1.msra.mxu0 0.0
        %1466 = vmatprep.subr.mxu0 0.0
        %1467 = vmatpush1.msra.mxu0 0.0
        %1468 = vmatprep.subr.mxu0 0.0
        %1469 = vmatpush1.msra.mxu0 0.0
        %1470 = vmatprep.subr.mxu0 0.0
        %1471 = vmatpush1.msra.mxu0 0.0
        %1472 = vmatprep.subr.mxu0 0.0
        %1473 = vmatpush1.msra.mxu0 0.0
        %1474 = vmatprep.subr.mxu0 0.0
        %1475 = vmatpush1.msra.mxu0 0.0
        %1476 = vmatprep.subr.mxu0 0.0
        %1477 = vmatpush1.msra.mxu0 0.0
        %1478 = vmatprep.subr.mxu0 0.0
        %1479 = vmatpush1.msra.mxu0 0.0
        %1480 = vmatprep.subr.mxu0 0.0
        %1481 = vmatpush1.msra.mxu0 0.0
        %1482 = vmatprep.mubr.f32.mxu0 0.0
        %1483 = vmatmul.mubr.f32.gmra.mrb[0].mxu0 %v1416
        %v1484 = vpop.f32.mrb[0].mxu0
        %v1485 = vadd.f32 %v1411, %v1484
        %v1486 = vpop.f32.mrb[0].mxu0
        %v1487 = vadd.f32 %v1413, %v1486
        %1488 = vdwg.mxu0
        %s1489 = scalar_lea.vmem [#allocation6], 1024
        %v1490 = vld [vmem:[%s1489] sm:$0xff]
        %v1491 = vld [vmem:[%s1489 + $0x8] sm:$0xff]
        %v1492 = vld [vmem:[%s1489 + $0x10] sm:$0xff]
        %v1493 = vld [vmem:[%s1489 + $0x18] sm:$0xff]
        %v1494 = vld [vmem:[%s1489 + $0x20] sm:$0xff]
        %v1495 = vld [vmem:[%s1489 + $0x28] sm:$0xff]
        %v1496 = vld [vmem:[%s1489 + $0x30] sm:$0xff]
        %v1497 = vld [vmem:[%s1489 + $0x38] sm:$0xff]
        %v1498 = vld [vmem:[%s1489 + $0x40] sm:$0xff]
        %v1499 = vld [vmem:[%s1489 + $0x48] sm:$0xff]
        %v1500 = vld [vmem:[%s1489 + $0x50] sm:$0xff]
        %v1501 = vld [vmem:[%s1489 + $0x58] sm:$0xff]
        %v1502 = vld [vmem:[%s1489 + $0x60] sm:$0xff]
        %v1503 = vld [vmem:[%s1489 + $0x68] sm:$0xff]
        %v1504 = vld [vmem:[%s1489 + $0x70] sm:$0xff]
        %v1505 = vld [vmem:[%s1489 + $0x78] sm:$0xff]
        %v1506 = vld [vmem:[%s1489 + $0x80] sm:$0xff]
        %v1507 = vld [vmem:[%s1489 + $0x88] sm:$0xff]
        %v1508 = vld [vmem:[%s1489 + $0x90] sm:$0xff]
        %v1509 = vld [vmem:[%s1489 + $0x98] sm:$0xff]
        %v1510 = vld [vmem:[%s1489 + $0xa0] sm:$0xff]
        %v1511 = vld [vmem:[%s1489 + $0xa8] sm:$0xff]
        %v1512 = vld [vmem:[%s1489 + $0xb0] sm:$0xff]
        %v1513 = vld [vmem:[%s1489 + $0xb8] sm:$0xff]
        %v1514 = vld [vmem:[%s1489 + $0xc0] sm:$0xff]
        %v1515 = vld [vmem:[%s1489 + $0xc8] sm:$0xff]
        %v1516 = vld [vmem:[%s1489 + $0xd0] sm:$0xff]
        %v1517 = vld [vmem:[%s1489 + $0xd8] sm:$0xff]
        %v1518 = vld [vmem:[%s1489 + $0xe0] sm:$0xff]
        %v1519 = vld [vmem:[%s1489 + $0xe8] sm:$0xff]
        %v1520 = vld [vmem:[%s1489 + $0xf0] sm:$0xff]
        %v1521 = vld [vmem:[%s1489 + $0xf8] sm:$0xff]
        %v1522 = vld [vmem:[%s1489 + $0x100] sm:$0xff]
        %v1523 = vld [vmem:[%s1489 + $0x108] sm:$0xff]
        %v1524 = vld [vmem:[%s1489 + $0x110] sm:$0xff]
        %v1525 = vld [vmem:[%s1489 + $0x118] sm:$0xff]
        %v1526 = vld [vmem:[%s1489 + $0x120] sm:$0xff]
        %v1527 = vld [vmem:[%s1489 + $0x128] sm:$0xff]
        %v1528 = vld [vmem:[%s1489 + $0x130] sm:$0xff]
        %v1529 = vld [vmem:[%s1489 + $0x138] sm:$0xff]
        %v1530 = vld [vmem:[%s1489 + $0x140] sm:$0xff]
        %v1531 = vld [vmem:[%s1489 + $0x148] sm:$0xff]
        %v1532 = vld [vmem:[%s1489 + $0x150] sm:$0xff]
        %v1533 = vld [vmem:[%s1489 + $0x158] sm:$0xff]
        %v1534 = vld [vmem:[%s1489 + $0x160] sm:$0xff]
        %v1535 = vld [vmem:[%s1489 + $0x168] sm:$0xff]
        %v1536 = vld [vmem:[%s1489 + $0x170] sm:$0xff]
        %v1537 = vld [vmem:[%s1489 + $0x178] sm:$0xff]
        %v1538 = vld [vmem:[%s1489 + $0x180] sm:$0xff]
        %v1539 = vld [vmem:[%s1489 + $0x188] sm:$0xff]
        %v1540 = vld [vmem:[%s1489 + $0x190] sm:$0xff]
        %v1541 = vld [vmem:[%s1489 + $0x198] sm:$0xff]
        %v1542 = vld [vmem:[%s1489 + $0x1a0] sm:$0xff]
        %v1543 = vld [vmem:[%s1489 + $0x1a8] sm:$0xff]
        %v1544 = vld [vmem:[%s1489 + $0x1b0] sm:$0xff]
        %v1545 = vld [vmem:[%s1489 + $0x1b8] sm:$0xff]
        %v1546 = vld [vmem:[%s1489 + $0x1c0] sm:$0xff]
        %v1547 = vld [vmem:[%s1489 + $0x1c8] sm:$0xff]
        %v1548 = vld [vmem:[%s1489 + $0x1d0] sm:$0xff]
        %v1549 = vld [vmem:[%s1489 + $0x1d8] sm:$0xff]
        %v1550 = vld [vmem:[%s1489 + $0x1e0] sm:$0xff]
        %v1551 = vld [vmem:[%s1489 + $0x1e8] sm:$0xff]
        %v1552 = vld [vmem:[%s1489 + $0x1f0] sm:$0xff]
        %v1553 = vld [vmem:[%s1489 + $0x1f8] sm:$0xff]
        %1554 = vmatprep.subr.mxu0 %v1491
        %1555 = vmatpush1.msra.mxu0 %v1490
        %1556 = vmatprep.subr.mxu0 %v1493
        %1557 = vmatpush1.msra.mxu0 %v1492
        %1558 = vmatprep.subr.mxu0 %v1495
        %1559 = vmatpush1.msra.mxu0 %v1494
        %1560 = vmatprep.subr.mxu0 %v1497
        %1561 = vmatpush1.msra.mxu0 %v1496
        %1562 = vmatprep.subr.mxu0 %v1499
        %1563 = vmatpush1.msra.mxu0 %v1498
        %1564 = vmatprep.subr.mxu0 %v1501
        %1565 = vmatpush1.msra.mxu0 %v1500
        %1566 = vmatprep.subr.mxu0 %v1503
        %1567 = vmatpush1.msra.mxu0 %v1502
        %1568 = vmatprep.subr.mxu0 %v1505
        %1569 = vmatpush1.msra.mxu0 %v1504
        %1570 = vmatprep.subr.mxu0 %v1507
        %1571 = vmatpush1.msra.mxu0 %v1506
        %1572 = vmatprep.subr.mxu0 %v1509
        %1573 = vmatpush1.msra.mxu0 %v1508
        %1574 = vmatprep.subr.mxu0 %v1511
        %1575 = vmatpush1.msra.mxu0 %v1510
        %1576 = vmatprep.subr.mxu0 %v1513
        %1577 = vmatpush1.msra.mxu0 %v1512
        %1578 = vmatprep.subr.mxu0 %v1515
        %1579 = vmatpush1.msra.mxu0 %v1514
        %1580 = vmatprep.subr.mxu0 %v1517
        %1581 = vmatpush1.msra.mxu0 %v1516
        %1582 = vmatprep.subr.mxu0 %v1519
        %1583 = vmatpush1.msra.mxu0 %v1518
        %1584 = vmatprep.subr.mxu0 %v1521
        %1585 = vmatpush1.msra.mxu0 %v1520
        %1586 = vmatprep.subr.mxu0 %v1523
        %1587 = vmatpush1.msra.mxu0 %v1522
        %1588 = vmatprep.subr.mxu0 %v1525
        %1589 = vmatpush1.msra.mxu0 %v1524
        %1590 = vmatprep.subr.mxu0 %v1527
        %1591 = vmatpush1.msra.mxu0 %v1526
        %1592 = vmatprep.subr.mxu0 %v1529
        %1593 = vmatpush1.msra.mxu0 %v1528
        %1594 = vmatprep.subr.mxu0 %v1531
        %1595 = vmatpush1.msra.mxu0 %v1530
        %1596 = vmatprep.subr.mxu0 %v1533
        %1597 = vmatpush1.msra.mxu0 %v1532
        %1598 = vmatprep.subr.mxu0 %v1535
        %1599 = vmatpush1.msra.mxu0 %v1534
        %1600 = vmatprep.subr.mxu0 %v1537
        %1601 = vmatpush1.msra.mxu0 %v1536
        %1602 = vmatprep.subr.mxu0 %v1539
        %1603 = vmatpush1.msra.mxu0 %v1538
        %1604 = vmatprep.subr.mxu0 %v1541
        %1605 = vmatpush1.msra.mxu0 %v1540
        %1606 = vmatprep.subr.mxu0 %v1543
        %1607 = vmatpush1.msra.mxu0 %v1542
        %1608 = vmatprep.subr.mxu0 %v1545
        %1609 = vmatpush1.msra.mxu0 %v1544
        %1610 = vmatprep.subr.mxu0 %v1547
        %1611 = vmatpush1.msra.mxu0 %v1546
        %1612 = vmatprep.subr.mxu0 %v1549
        %1613 = vmatpush1.msra.mxu0 %v1548
        %1614 = vmatprep.subr.mxu0 %v1551
        %1615 = vmatpush1.msra.mxu0 %v1550
        %1616 = vmatprep.subr.mxu0 %v1553
        %1617 = vmatpush1.msra.mxu0 %v1552
        %1618 = vmatprep.mubr.f32.mxu0 %v1487
        %1619 = vmatmul.mubr.f32.gmra.mrb[0].mxu0 %v1485
        %v1620 = vpop.f32.mrb[0].mxu0
        %v1621 = vadd.f32 0.0, %v1620
        %v1622 = vpop.f32.mrb[0].mxu0
        %v1623 = vadd.f32 0.0, %v1622
        %1624 = vdwg.mxu0
        %v1625 = vadd.f32 %v1333, %v1621
        %v1626 = vadd.f32 %v1335, %v1623
        %s1627 = scalar_lea.vmem %s4, 12
        %v1628 = vld [vmem:[%s1627] sm:$0x7]
        %s1629 = scalar_lea.vmem %s5, 12
        %v1630 = vld [vmem:[%s1629] sm:$0x7]
        %v1632 = vsel %vm632, %v1630, 0
        %1634 = vmatprep.subr.mxu0 %v761
        %1635 = vmatpush1.msra.mxu0 %v759
        %1636 = vmatprep.subr.mxu0 0.0
        %1637 = vmatpush1.msra.mxu0 0.0
        %1638 = vmatprep.subr.mxu0 0.0
        %1639 = vmatpush1.msra.mxu0 0.0
        %1640 = vmatprep.subr.mxu0 0.0
        %1641 = vmatpush1.msra.mxu0 0.0
        %1642 = vmatprep.subr.mxu0 0.0
        %1643 = vmatpush1.msra.mxu0 0.0
        %1644 = vmatprep.subr.mxu0 0.0
        %1645 = vmatpush1.msra.mxu0 0.0
        %1646 = vmatprep.subr.mxu0 0.0
        %1647 = vmatpush1.msra.mxu0 0.0
        %1648 = vmatprep.subr.mxu0 0.0
        %1649 = vmatpush1.msra.mxu0 0.0
        %1650 = vmatprep.subr.mxu0 0.0
        %1651 = vmatpush1.msra.mxu0 0.0
        %1652 = vmatprep.subr.mxu0 0.0
        %1653 = vmatpush1.msra.mxu0 0.0
        %1654 = vmatprep.subr.mxu0 0.0
        %1655 = vmatpush1.msra.mxu0 0.0
        %1656 = vmatprep.subr.mxu0 0.0
        %1657 = vmatpush1.msra.mxu0 0.0
        %1658 = vmatprep.subr.mxu0 0.0
        %1659 = vmatpush1.msra.mxu0 0.0
        %1660 = vmatprep.subr.mxu0 0.0
        %1661 = vmatpush1.msra.mxu0 0.0
        %1662 = vmatprep.subr.mxu0 0.0
        %1663 = vmatpush1.msra.mxu0 0.0
        %1664 = vmatprep.subr.mxu0 0.0
        %1665 = vmatpush1.msra.mxu0 0.0
        %1666 = vmatprep.subr.mxu0 0.0
        %1667 = vmatpush1.msra.mxu0 0.0
        %1668 = vmatprep.subr.mxu0 0.0
        %1669 = vmatpush1.msra.mxu0 0.0
        %1670 = vmatprep.subr.mxu0 0.0
        %1671 = vmatpush1.msra.mxu0 0.0
        %1672 = vmatprep.subr.mxu0 0.0
        %1673 = vmatpush1.msra.mxu0 0.0
        %1674 = vmatprep.subr.mxu0 0.0
        %1675 = vmatpush1.msra.mxu0 0.0
        %1676 = vmatprep.subr.mxu0 0.0
        %1677 = vmatpush1.msra.mxu0 0.0
        %1678 = vmatprep.subr.mxu0 0.0
        %1679 = vmatpush1.msra.mxu0 0.0
        %1680 = vmatprep.subr.mxu0 0.0
        %1681 = vmatpush1.msra.mxu0 0.0
        %1682 = vmatprep.subr.mxu0 0.0
        %1683 = vmatpush1.msra.mxu0 0.0
        %1684 = vmatprep.subr.mxu0 0.0
        %1685 = vmatpush1.msra.mxu0 0.0
        %1686 = vmatprep.subr.mxu0 0.0
        %1687 = vmatpush1.msra.mxu0 0.0
        %1688 = vmatprep.subr.mxu0 0.0
        %1689 = vmatpush1.msra.mxu0 0.0
        %1690 = vmatprep.subr.mxu0 0.0
        %1691 = vmatpush1.msra.mxu0 0.0
        %1692 = vmatprep.subr.mxu0 0.0
        %1693 = vmatpush1.msra.mxu0 0.0
        %1694 = vmatprep.subr.mxu0 0.0
        %1695 = vmatpush1.msra.mxu0 0.0
        %1696 = vmatprep.subr.mxu0 0.0
        %1697 = vmatpush1.msra.mxu0 0.0
        %1698 = vmatprep.mubr.f32.mxu0 0.0
        %1699 = vmatmul.mubr.f32.gmra.mrb[0].mxu0 %v1632
        %v1700 = vpop.f32.mrb[0].mxu0
        %v1701 = vadd.f32 0.0, %v1700
        %v1702 = vpop.f32.mrb[0].mxu0
        %v1703 = vadd.f32 0.0, %v1702
        %1704 = vdwg.mxu0
        %v1706 = vsel %vm632, %v1628, 0
        %1708 = vmatprep.subr.mxu0 %v841
        %1709 = vmatpush1.msra.mxu0 %v839
        %1710 = vmatprep.subr.mxu0 0.0
        %1711 = vmatpush1.msra.mxu0 0.0
        %1712 = vmatprep.subr.mxu0 0.0
        %1713 = vmatpush1.msra.mxu0 0.0
        %1714 = vmatprep.subr.mxu0 0.0
        %1715 = vmatpush1.msra.mxu0 0.0
        %1716 = vmatprep.subr.mxu0 0.0
        %1717 = vmatpush1.msra.mxu0 0.0
        %1718 = vmatprep.subr.mxu0 0.0
        %1719 = vmatpush1.msra.mxu0 0.0
        %1720 = vmatprep.subr.mxu0 0.0
        %1721 = vmatpush1.msra.mxu0 0.0
        %1722 = vmatprep.subr.mxu0 0.0
        %1723 = vmatpush1.msra.mxu0 0.0
        %1724 = vmatprep.subr.mxu0 0.0
        %1725 = vmatpush1.msra.mxu0 0.0
        %1726 = vmatprep.subr.mxu0 0.0
        %1727 = vmatpush1.msra.mxu0 0.0
        %1728 = vmatprep.subr.mxu0 0.0
        %1729 = vmatpush1.msra.mxu0 0.0
        %1730 = vmatprep.subr.mxu0 0.0
        %1731 = vmatpush1.msra.mxu0 0.0
        %1732 = vmatprep.subr.mxu0 0.0
        %1733 = vmatpush1.msra.mxu0 0.0
        %1734 = vmatprep.subr.mxu0 0.0
        %1735 = vmatpush1.msra.mxu0 0.0
        %1736 = vmatprep.subr.mxu0 0.0
        %1737 = vmatpush1.msra.mxu0 0.0
        %1738 = vmatprep.subr.mxu0 0.0
        %1739 = vmatpush1.msra.mxu0 0.0
        %1740 = vmatprep.subr.mxu0 0.0
        %1741 = vmatpush1.msra.mxu0 0.0
        %1742 = vmatprep.subr.mxu0 0.0
        %1743 = vmatpush1.msra.mxu0 0.0
        %1744 = vmatprep.subr.mxu0 0.0
        %1745 = vmatpush1.msra.mxu0 0.0
        %1746 = vmatprep.subr.mxu0 0.0
        %1747 = vmatpush1.msra.mxu0 0.0
        %1748 = vmatprep.subr.mxu0 0.0
        %1749 = vmatpush1.msra.mxu0 0.0
        %1750 = vmatprep.subr.mxu0 0.0
        %1751 = vmatpush1.msra.mxu0 0.0
        %1752 = vmatprep.subr.mxu0 0.0
        %1753 = vmatpush1.msra.mxu0 0.0
        %1754 = vmatprep.subr.mxu0 0.0
        %1755 = vmatpush1.msra.mxu0 0.0
        %1756 = vmatprep.subr.mxu0 0.0
        %1757 = vmatpush1.msra.mxu0 0.0
        %1758 = vmatprep.subr.mxu0 0.0
        %1759 = vmatpush1.msra.mxu0 0.0
        %1760 = vmatprep.subr.mxu0 0.0
        %1761 = vmatpush1.msra.mxu0 0.0
        %1762 = vmatprep.subr.mxu0 0.0
        %1763 = vmatpush1.msra.mxu0 0.0
        %1764 = vmatprep.subr.mxu0 0.0
        %1765 = vmatpush1.msra.mxu0 0.0
        %1766 = vmatprep.subr.mxu0 0.0
        %1767 = vmatpush1.msra.mxu0 0.0
        %1768 = vmatprep.subr.mxu0 0.0
        %1769 = vmatpush1.msra.mxu0 0.0
        %1770 = vmatprep.subr.mxu0 0.0
        %1771 = vmatpush1.msra.mxu0 0.0
        %1772 = vmatprep.mubr.f32.mxu0 0.0
        %1773 = vmatmul.mubr.f32.gmra.mrb[0].mxu0 %v1706
        %v1774 = vpop.f32.mrb[0].mxu0
        %v1775 = vadd.f32 %v1701, %v1774
        %v1776 = vpop.f32.mrb[0].mxu0
        %v1777 = vadd.f32 %v1703, %v1776
        %1778 = vdwg.mxu0
        %s1779 = scalar_lea.vmem [#allocation6], 1536
        %v1780 = vld [vmem:[%s1779] sm:$0xff]
        %v1781 = vld [vmem:[%s1779 + $0x8] sm:$0xff]
        %v1782 = vld [vmem:[%s1779 + $0x10] sm:$0xff]
        %v1783 = vld [vmem:[%s1779 + $0x18] sm:$0xff]
        %v1784 = vld [vmem:[%s1779 + $0x20] sm:$0xff]
        %v1785 = vld [vmem:[%s1779 + $0x28] sm:$0xff]
        %v1786 = vld [vmem:[%s1779 + $0x30] sm:$0xff]
        %v1787 = vld [vmem:[%s1779 + $0x38] sm:$0xff]
        %v1788 = vld [vmem:[%s1779 + $0x40] sm:$0xff]
        %v1789 = vld [vmem:[%s1779 + $0x48] sm:$0xff]
        %v1790 = vld [vmem:[%s1779 + $0x50] sm:$0xff]
        %v1791 = vld [vmem:[%s1779 + $0x58] sm:$0xff]
        %v1792 = vld [vmem:[%s1779 + $0x60] sm:$0xff]
        %v1793 = vld [vmem:[%s1779 + $0x68] sm:$0xff]
        %v1794 = vld [vmem:[%s1779 + $0x70] sm:$0xff]
        %v1795 = vld [vmem:[%s1779 + $0x78] sm:$0xff]
        %v1796 = vld [vmem:[%s1779 + $0x80] sm:$0xff]
        %v1797 = vld [vmem:[%s1779 + $0x88] sm:$0xff]
        %v1798 = vld [vmem:[%s1779 + $0x90] sm:$0xff]
        %v1799 = vld [vmem:[%s1779 + $0x98] sm:$0xff]
        %v1800 = vld [vmem:[%s1779 + $0xa0] sm:$0xff]
        %v1801 = vld [vmem:[%s1779 + $0xa8] sm:$0xff]
        %v1802 = vld [vmem:[%s1779 + $0xb0] sm:$0xff]
        %v1803 = vld [vmem:[%s1779 + $0xb8] sm:$0xff]
        %v1804 = vld [vmem:[%s1779 + $0xc0] sm:$0xff]
        %v1805 = vld [vmem:[%s1779 + $0xc8] sm:$0xff]
        %v1806 = vld [vmem:[%s1779 + $0xd0] sm:$0xff]
        %v1807 = vld [vmem:[%s1779 + $0xd8] sm:$0xff]
        %v1808 = vld [vmem:[%s1779 + $0xe0] sm:$0xff]
        %v1809 = vld [vmem:[%s1779 + $0xe8] sm:$0xff]
        %v1810 = vld [vmem:[%s1779 + $0xf0] sm:$0xff]
        %v1811 = vld [vmem:[%s1779 + $0xf8] sm:$0xff]
        %v1812 = vld [vmem:[%s1779 + $0x100] sm:$0xff]
        %v1813 = vld [vmem:[%s1779 + $0x108] sm:$0xff]
        %v1814 = vld [vmem:[%s1779 + $0x110] sm:$0xff]
        %v1815 = vld [vmem:[%s1779 + $0x118] sm:$0xff]
        %v1816 = vld [vmem:[%s1779 + $0x120] sm:$0xff]
        %v1817 = vld [vmem:[%s1779 + $0x128] sm:$0xff]
        %v1818 = vld [vmem:[%s1779 + $0x130] sm:$0xff]
        %v1819 = vld [vmem:[%s1779 + $0x138] sm:$0xff]
        %v1820 = vld [vmem:[%s1779 + $0x140] sm:$0xff]
        %v1821 = vld [vmem:[%s1779 + $0x148] sm:$0xff]
        %v1822 = vld [vmem:[%s1779 + $0x150] sm:$0xff]
        %v1823 = vld [vmem:[%s1779 + $0x158] sm:$0xff]
        %v1824 = vld [vmem:[%s1779 + $0x160] sm:$0xff]
        %v1825 = vld [vmem:[%s1779 + $0x168] sm:$0xff]
        %v1826 = vld [vmem:[%s1779 + $0x170] sm:$0xff]
        %v1827 = vld [vmem:[%s1779 + $0x178] sm:$0xff]
        %v1828 = vld [vmem:[%s1779 + $0x180] sm:$0xff]
        %v1829 = vld [vmem:[%s1779 + $0x188] sm:$0xff]
        %v1830 = vld [vmem:[%s1779 + $0x190] sm:$0xff]
        %v1831 = vld [vmem:[%s1779 + $0x198] sm:$0xff]
        %v1832 = vld [vmem:[%s1779 + $0x1a0] sm:$0xff]
        %v1833 = vld [vmem:[%s1779 + $0x1a8] sm:$0xff]
        %v1834 = vld [vmem:[%s1779 + $0x1b0] sm:$0xff]
        %v1835 = vld [vmem:[%s1779 + $0x1b8] sm:$0xff]
        %v1836 = vld [vmem:[%s1779 + $0x1c0] sm:$0xff]
        %v1837 = vld [vmem:[%s1779 + $0x1c8] sm:$0xff]
        %v1838 = vld [vmem:[%s1779 + $0x1d0] sm:$0xff]
        %v1839 = vld [vmem:[%s1779 + $0x1d8] sm:$0xff]
        %v1840 = vld [vmem:[%s1779 + $0x1e0] sm:$0xff]
        %v1841 = vld [vmem:[%s1779 + $0x1e8] sm:$0xff]
        %v1842 = vld [vmem:[%s1779 + $0x1f0] sm:$0xff]
        %v1843 = vld [vmem:[%s1779 + $0x1f8] sm:$0xff]
        %1844 = vmatprep.subr.mxu0 %v1781
        %1845 = vmatpush1.msra.mxu0 %v1780
        %1846 = vmatprep.subr.mxu0 %v1783
        %1847 = vmatpush1.msra.mxu0 %v1782
        %1848 = vmatprep.subr.mxu0 %v1785
        %1849 = vmatpush1.msra.mxu0 %v1784
        %1850 = vmatprep.subr.mxu0 %v1787
        %1851 = vmatpush1.msra.mxu0 %v1786
        %1852 = vmatprep.subr.mxu0 %v1789
        %1853 = vmatpush1.msra.mxu0 %v1788
        %1854 = vmatprep.subr.mxu0 %v1791
        %1855 = vmatpush1.msra.mxu0 %v1790
        %1856 = vmatprep.subr.mxu0 %v1793
        %1857 = vmatpush1.msra.mxu0 %v1792
        %1858 = vmatprep.subr.mxu0 %v1795
        %1859 = vmatpush1.msra.mxu0 %v1794
        %1860 = vmatprep.subr.mxu0 %v1797
        %1861 = vmatpush1.msra.mxu0 %v1796
        %1862 = vmatprep.subr.mxu0 %v1799
        %1863 = vmatpush1.msra.mxu0 %v1798
        %1864 = vmatprep.subr.mxu0 %v1801
        %1865 = vmatpush1.msra.mxu0 %v1800
        %1866 = vmatprep.subr.mxu0 %v1803
        %1867 = vmatpush1.msra.mxu0 %v1802
        %1868 = vmatprep.subr.mxu0 %v1805
        %1869 = vmatpush1.msra.mxu0 %v1804
        %1870 = vmatprep.subr.mxu0 %v1807
        %1871 = vmatpush1.msra.mxu0 %v1806
        %1872 = vmatprep.subr.mxu0 %v1809
        %1873 = vmatpush1.msra.mxu0 %v1808
        %1874 = vmatprep.subr.mxu0 %v1811
        %1875 = vmatpush1.msra.mxu0 %v1810
        %1876 = vmatprep.subr.mxu0 %v1813
        %1877 = vmatpush1.msra.mxu0 %v1812
        %1878 = vmatprep.subr.mxu0 %v1815
        %1879 = vmatpush1.msra.mxu0 %v1814
        %1880 = vmatprep.subr.mxu0 %v1817
        %1881 = vmatpush1.msra.mxu0 %v1816
        %1882 = vmatprep.subr.mxu0 %v1819
        %1883 = vmatpush1.msra.mxu0 %v1818
        %1884 = vmatprep.subr.mxu0 %v1821
        %1885 = vmatpush1.msra.mxu0 %v1820
        %1886 = vmatprep.subr.mxu0 %v1823
        %1887 = vmatpush1.msra.mxu0 %v1822
        %1888 = vmatprep.subr.mxu0 %v1825
        %1889 = vmatpush1.msra.mxu0 %v1824
        %1890 = vmatprep.subr.mxu0 %v1827
        %1891 = vmatpush1.msra.mxu0 %v1826
        %1892 = vmatprep.subr.mxu0 %v1829
        %1893 = vmatpush1.msra.mxu0 %v1828
        %1894 = vmatprep.subr.mxu0 %v1831
        %1895 = vmatpush1.msra.mxu0 %v1830
        %1896 = vmatprep.subr.mxu0 %v1833
        %1897 = vmatpush1.msra.mxu0 %v1832
        %1898 = vmatprep.subr.mxu0 %v1835
        %1899 = vmatpush1.msra.mxu0 %v1834
        %1900 = vmatprep.subr.mxu0 %v1837
        %1901 = vmatpush1.msra.mxu0 %v1836
        %1902 = vmatprep.subr.mxu0 %v1839
        %1903 = vmatpush1.msra.mxu0 %v1838
        %1904 = vmatprep.subr.mxu0 %v1841
        %1905 = vmatpush1.msra.mxu0 %v1840
        %1906 = vmatprep.subr.mxu0 %v1843
        %1907 = vmatpush1.msra.mxu0 %v1842
        %1908 = vmatprep.mubr.f32.mxu0 %v1777
        %1909 = vmatmul.mubr.f32.gmra.mrb[0].mxu0 %v1775
        %v1910 = vpop.f32.mrb[0].mxu0
        %v1911 = vadd.f32 0.0, %v1910
        %v1912 = vpop.f32.mrb[0].mxu0
        %v1913 = vadd.f32 0.0, %v1912
        %1914 = vdwg.mxu0
        %v1915 = vadd.f32 %v1625, %v1911
        %v1916 = vadd.f32 %v1626, %v1913
        %s1917 = scalar_lea.vmem %s4, 16
        %v1918 = vld [vmem:[%s1917] sm:$0x7]
        %s1919 = scalar_lea.vmem %s5, 16
        %v1920 = vld [vmem:[%s1919] sm:$0x7]
        %v1922 = vsel %vm632, %v1920, 0
        %1924 = vmatprep.subr.mxu0 %v761
        %1925 = vmatpush1.msra.mxu0 %v759
        %1926 = vmatprep.subr.mxu0 0.0
        %1927 = vmatpush1.msra.mxu0 0.0
        %1928 = vmatprep.subr.mxu0 0.0
        %1929 = vmatpush1.msra.mxu0 0.0
        %1930 = vmatprep.subr.mxu0 0.0
        %1931 = vmatpush1.msra.mxu0 0.0
        %1932 = vmatprep.subr.mxu0 0.0
        %1933 = vmatpush1.msra.mxu0 0.0
        %1934 = vmatprep.subr.mxu0 0.0
        %1935 = vmatpush1.msra.mxu0 0.0
        %1936 = vmatprep.subr.mxu0 0.0
        %1937 = vmatpush1.msra.mxu0 0.0
        %1938 = vmatprep.subr.mxu0 0.0
        %1939 = vmatpush1.msra.mxu0 0.0
        %1940 = vmatprep.subr.mxu0 0.0
        %1941 = vmatpush1.msra.mxu0 0.0
        %1942 = vmatprep.subr.mxu0 0.0
        %1943 = vmatpush1.msra.mxu0 0.0
        %1944 = vmatprep.subr.mxu0 0.0
        %1945 = vmatpush1.msra.mxu0 0.0
        %1946 = vmatprep.subr.mxu0 0.0
        %1947 = vmatpush1.msra.mxu0 0.0
        %1948 = vmatprep.subr.mxu0 0.0
        %1949 = vmatpush1.msra.mxu0 0.0
        %1950 = vmatprep.subr.mxu0 0.0
        %1951 = vmatpush1.msra.mxu0 0.0
        %1952 = vmatprep.subr.mxu0 0.0
        %1953 = vmatpush1.msra.mxu0 0.0
        %1954 = vmatprep.subr.mxu0 0.0
        %1955 = vmatpush1.msra.mxu0 0.0
        %1956 = vmatprep.subr.mxu0 0.0
        %1957 = vmatpush1.msra.mxu0 0.0
        %1958 = vmatprep.subr.mxu0 0.0
        %1959 = vmatpush1.msra.mxu0 0.0
        %1960 = vmatprep.subr.mxu0 0.0
        %1961 = vmatpush1.msra.mxu0 0.0
        %1962 = vmatprep.subr.mxu0 0.0
        %1963 = vmatpush1.msra.mxu0 0.0
        %1964 = vmatprep.subr.mxu0 0.0
        %1965 = vmatpush1.msra.mxu0 0.0
        %1966 = vmatprep.subr.mxu0 0.0
        %1967 = vmatpush1.msra.mxu0 0.0
        %1968 = vmatprep.subr.mxu0 0.0
        %1969 = vmatpush1.msra.mxu0 0.0
        %1970 = vmatprep.subr.mxu0 0.0
        %1971 = vmatpush1.msra.mxu0 0.0
        %1972 = vmatprep.subr.mxu0 0.0
        %1973 = vmatpush1.msra.mxu0 0.0
        %1974 = vmatprep.subr.mxu0 0.0
        %1975 = vmatpush1.msra.mxu0 0.0
        %1976 = vmatprep.subr.mxu0 0.0
        %1977 = vmatpush1.msra.mxu0 0.0
        %1978 = vmatprep.subr.mxu0 0.0
        %1979 = vmatpush1.msra.mxu0 0.0
        %1980 = vmatprep.subr.mxu0 0.0
        %1981 = vmatpush1.msra.mxu0 0.0
        %1982 = vmatprep.subr.mxu0 0.0
        %1983 = vmatpush1.msra.mxu0 0.0
        %1984 = vmatprep.subr.mxu0 0.0
        %1985 = vmatpush1.msra.mxu0 0.0
        %1986 = vmatprep.subr.mxu0 0.0
        %1987 = vmatpush1.msra.mxu0 0.0
        %1988 = vmatprep.mubr.f32.mxu0 0.0
        %1989 = vmatmul.mubr.f32.gmra.mrb[0].mxu0 %v1922
        %v1990 = vpop.f32.mrb[0].mxu0
        %v1991 = vadd.f32 0.0, %v1990
        %v1992 = vpop.f32.mrb[0].mxu0
        %v1993 = vadd.f32 0.0, %v1992
        %1994 = vdwg.mxu0
        %v1996 = vsel %vm632, %v1918, 0
        %1998 = vmatprep.subr.mxu0 %v841
        %1999 = vmatpush1.msra.mxu0 %v839
        %2000 = vmatprep.subr.mxu0 0.0
        %2001 = vmatpush1.msra.mxu0 0.0
        %2002 = vmatprep.subr.mxu0 0.0
        %2003 = vmatpush1.msra.mxu0 0.0
        %2004 = vmatprep.subr.mxu0 0.0
        %2005 = vmatpush1.msra.mxu0 0.0
        %2006 = vmatprep.subr.mxu0 0.0
        %2007 = vmatpush1.msra.mxu0 0.0
        %2008 = vmatprep.subr.mxu0 0.0
        %2009 = vmatpush1.msra.mxu0 0.0
        %2010 = vmatprep.subr.mxu0 0.0
        %2011 = vmatpush1.msra.mxu0 0.0
        %2012 = vmatprep.subr.mxu0 0.0
        %2013 = vmatpush1.msra.mxu0 0.0
        %2014 = vmatprep.subr.mxu0 0.0
        %2015 = vmatpush1.msra.mxu0 0.0
        %2016 = vmatprep.subr.mxu0 0.0
        %2017 = vmatpush1.msra.mxu0 0.0
        %2018 = vmatprep.subr.mxu0 0.0
        %2019 = vmatpush1.msra.mxu0 0.0
        %2020 = vmatprep.subr.mxu0 0.0
        %2021 = vmatpush1.msra.mxu0 0.0
        %2022 = vmatprep.subr.mxu0 0.0
        %2023 = vmatpush1.msra.mxu0 0.0
        %2024 = vmatprep.subr.mxu0 0.0
        %2025 = vmatpush1.msra.mxu0 0.0
        %2026 = vmatprep.subr.mxu0 0.0
        %2027 = vmatpush1.msra.mxu0 0.0
        %2028 = vmatprep.subr.mxu0 0.0
        %2029 = vmatpush1.msra.mxu0 0.0
        %2030 = vmatprep.subr.mxu0 0.0
        %2031 = vmatpush1.msra.mxu0 0.0
        %2032 = vmatprep.subr.mxu0 0.0
        %2033 = vmatpush1.msra.mxu0 0.0
        %2034 = vmatprep.subr.mxu0 0.0
        %2035 = vmatpush1.msra.mxu0 0.0
        %2036 = vmatprep.subr.mxu0 0.0
        %2037 = vmatpush1.msra.mxu0 0.0
        %2038 = vmatprep.subr.mxu0 0.0
        %2039 = vmatpush1.msra.mxu0 0.0
        %2040 = vmatprep.subr.mxu0 0.0
        %2041 = vmatpush1.msra.mxu0 0.0
        %2042 = vmatprep.subr.mxu0 0.0
        %2043 = vmatpush1.msra.mxu0 0.0
        %2044 = vmatprep.subr.mxu0 0.0
        %2045 = vmatpush1.msra.mxu0 0.0
        %2046 = vmatprep.subr.mxu0 0.0
        %2047 = vmatpush1.msra.mxu0 0.0
        %2048 = vmatprep.subr.mxu0 0.0
        %2049 = vmatpush1.msra.mxu0 0.0
        %2050 = vmatprep.subr.mxu0 0.0
        %2051 = vmatpush1.msra.mxu0 0.0
        %2052 = vmatprep.subr.mxu0 0.0
        %2053 = vmatpush1.msra.mxu0 0.0
        %2054 = vmatprep.subr.mxu0 0.0
        %2055 = vmatpush1.msra.mxu0 0.0
        %2056 = vmatprep.subr.mxu0 0.0
        %2057 = vmatpush1.msra.mxu0 0.0
        %2058 = vmatprep.subr.mxu0 0.0
        %2059 = vmatpush1.msra.mxu0 0.0
        %2060 = vmatprep.subr.mxu0 0.0
        %2061 = vmatpush1.msra.mxu0 0.0
        %2062 = vmatprep.mubr.f32.mxu0 0.0
        %2063 = vmatmul.mubr.f32.gmra.mrb[0].mxu0 %v1996
        %v2064 = vpop.f32.mrb[0].mxu0
        %v2065 = vadd.f32 %v1991, %v2064
        %v2066 = vpop.f32.mrb[0].mxu0
        %v2067 = vadd.f32 %v1993, %v2066
        %2068 = vdwg.mxu0
        %s2069 = scalar_lea.vmem [#allocation6], 2048
        %v2070 = vld [vmem:[%s2069] sm:$0xff]
        %v2071 = vld [vmem:[%s2069 + $0x8] sm:$0xff]
        %v2072 = vld [vmem:[%s2069 + $0x10] sm:$0xff]
        %v2073 = vld [vmem:[%s2069 + $0x18] sm:$0xff]
        %v2074 = vld [vmem:[%s2069 + $0x20] sm:$0xff]
        %v2075 = vld [vmem:[%s2069 + $0x28] sm:$0xff]
        %v2076 = vld [vmem:[%s2069 + $0x30] sm:$0xff]
        %v2077 = vld [vmem:[%s2069 + $0x38] sm:$0xff]
        %v2078 = vld [vmem:[%s2069 + $0x40] sm:$0xff]
        %v2079 = vld [vmem:[%s2069 + $0x48] sm:$0xff]
        %v2080 = vld [vmem:[%s2069 + $0x50] sm:$0xff]
        %v2081 = vld [vmem:[%s2069 + $0x58] sm:$0xff]
        %v2082 = vld [vmem:[%s2069 + $0x60] sm:$0xff]
        %v2083 = vld [vmem:[%s2069 + $0x68] sm:$0xff]
        %v2084 = vld [vmem:[%s2069 + $0x70] sm:$0xff]
        %v2085 = vld [vmem:[%s2069 + $0x78] sm:$0xff]
        %v2086 = vld [vmem:[%s2069 + $0x80] sm:$0xff]
        %v2087 = vld [vmem:[%s2069 + $0x88] sm:$0xff]
        %v2088 = vld [vmem:[%s2069 + $0x90] sm:$0xff]
        %v2089 = vld [vmem:[%s2069 + $0x98] sm:$0xff]
        %v2090 = vld [vmem:[%s2069 + $0xa0] sm:$0xff]
        %v2091 = vld [vmem:[%s2069 + $0xa8] sm:$0xff]
        %v2092 = vld [vmem:[%s2069 + $0xb0] sm:$0xff]
        %v2093 = vld [vmem:[%s2069 + $0xb8] sm:$0xff]
        %v2094 = vld [vmem:[%s2069 + $0xc0] sm:$0xff]
        %v2095 = vld [vmem:[%s2069 + $0xc8] sm:$0xff]
        %v2096 = vld [vmem:[%s2069 + $0xd0] sm:$0xff]
        %v2097 = vld [vmem:[%s2069 + $0xd8] sm:$0xff]
        %v2098 = vld [vmem:[%s2069 + $0xe0] sm:$0xff]
        %v2099 = vld [vmem:[%s2069 + $0xe8] sm:$0xff]
        %v2100 = vld [vmem:[%s2069 + $0xf0] sm:$0xff]
        %v2101 = vld [vmem:[%s2069 + $0xf8] sm:$0xff]
        %v2102 = vld [vmem:[%s2069 + $0x100] sm:$0xff]
        %v2103 = vld [vmem:[%s2069 + $0x108] sm:$0xff]
        %v2104 = vld [vmem:[%s2069 + $0x110] sm:$0xff]
        %v2105 = vld [vmem:[%s2069 + $0x118] sm:$0xff]
        %v2106 = vld [vmem:[%s2069 + $0x120] sm:$0xff]
        %v2107 = vld [vmem:[%s2069 + $0x128] sm:$0xff]
        %v2108 = vld [vmem:[%s2069 + $0x130] sm:$0xff]
        %v2109 = vld [vmem:[%s2069 + $0x138] sm:$0xff]
        %v2110 = vld [vmem:[%s2069 + $0x140] sm:$0xff]
        %v2111 = vld [vmem:[%s2069 + $0x148] sm:$0xff]
        %v2112 = vld [vmem:[%s2069 + $0x150] sm:$0xff]
        %v2113 = vld [vmem:[%s2069 + $0x158] sm:$0xff]
        %v2114 = vld [vmem:[%s2069 + $0x160] sm:$0xff]
        %v2115 = vld [vmem:[%s2069 + $0x168] sm:$0xff]
        %v2116 = vld [vmem:[%s2069 + $0x170] sm:$0xff]
        %v2117 = vld [vmem:[%s2069 + $0x178] sm:$0xff]
        %v2118 = vld [vmem:[%s2069 + $0x180] sm:$0xff]
        %v2119 = vld [vmem:[%s2069 + $0x188] sm:$0xff]
        %v2120 = vld [vmem:[%s2069 + $0x190] sm:$0xff]
        %v2121 = vld [vmem:[%s2069 + $0x198] sm:$0xff]
        %v2122 = vld [vmem:[%s2069 + $0x1a0] sm:$0xff]
        %v2123 = vld [vmem:[%s2069 + $0x1a8] sm:$0xff]
        %v2124 = vld [vmem:[%s2069 + $0x1b0] sm:$0xff]
        %v2125 = vld [vmem:[%s2069 + $0x1b8] sm:$0xff]
        %v2126 = vld [vmem:[%s2069 + $0x1c0] sm:$0xff]
        %v2127 = vld [vmem:[%s2069 + $0x1c8] sm:$0xff]
        %v2128 = vld [vmem:[%s2069 + $0x1d0] sm:$0xff]
        %v2129 = vld [vmem:[%s2069 + $0x1d8] sm:$0xff]
        %v2130 = vld [vmem:[%s2069 + $0x1e0] sm:$0xff]
        %v2131 = vld [vmem:[%s2069 + $0x1e8] sm:$0xff]
        %v2132 = vld [vmem:[%s2069 + $0x1f0] sm:$0xff]
        %v2133 = vld [vmem:[%s2069 + $0x1f8] sm:$0xff]
        %2134 = vmatprep.subr.mxu0 %v2071
        %2135 = vmatpush1.msra.mxu0 %v2070
        %2136 = vmatprep.subr.mxu0 %v2073
        %2137 = vmatpush1.msra.mxu0 %v2072
        %2138 = vmatprep.subr.mxu0 %v2075
        %2139 = vmatpush1.msra.mxu0 %v2074
        %2140 = vmatprep.subr.mxu0 %v2077
        %2141 = vmatpush1.msra.mxu0 %v2076
        %2142 = vmatprep.subr.mxu0 %v2079
        %2143 = vmatpush1.msra.mxu0 %v2078
        %2144 = vmatprep.subr.mxu0 %v2081
        %2145 = vmatpush1.msra.mxu0 %v2080
        %2146 = vmatprep.subr.mxu0 %v2083
        %2147 = vmatpush1.msra.mxu0 %v2082
        %2148 = vmatprep.subr.mxu0 %v2085
        %2149 = vmatpush1.msra.mxu0 %v2084
        %2150 = vmatprep.subr.mxu0 %v2087
        %2151 = vmatpush1.msra.mxu0 %v2086
        %2152 = vmatprep.subr.mxu0 %v2089
        %2153 = vmatpush1.msra.mxu0 %v2088
        %2154 = vmatprep.subr.mxu0 %v2091
        %2155 = vmatpush1.msra.mxu0 %v2090
        %2156 = vmatprep.subr.mxu0 %v2093
        %2157 = vmatpush1.msra.mxu0 %v2092
        %2158 = vmatprep.subr.mxu0 %v2095
        %2159 = vmatpush1.msra.mxu0 %v2094
        %2160 = vmatprep.subr.mxu0 %v2097
        %2161 = vmatpush1.msra.mxu0 %v2096
        %2162 = vmatprep.subr.mxu0 %v2099
        %2163 = vmatpush1.msra.mxu0 %v2098
        %2164 = vmatprep.subr.mxu0 %v2101
        %2165 = vmatpush1.msra.mxu0 %v2100
        %2166 = vmatprep.subr.mxu0 %v2103
        %2167 = vmatpush1.msra.mxu0 %v2102
        %2168 = vmatprep.subr.mxu0 %v2105
        %2169 = vmatpush1.msra.mxu0 %v2104
        %2170 = vmatprep.subr.mxu0 %v2107
        %2171 = vmatpush1.msra.mxu0 %v2106
        %2172 = vmatprep.subr.mxu0 %v2109
        %2173 = vmatpush1.msra.mxu0 %v2108
        %2174 = vmatprep.subr.mxu0 %v2111
        %2175 = vmatpush1.msra.mxu0 %v2110
        %2176 = vmatprep.subr.mxu0 %v2113
        %2177 = vmatpush1.msra.mxu0 %v2112
        %2178 = vmatprep.subr.mxu0 %v2115
        %2179 = vmatpush1.msra.mxu0 %v2114
        %2180 = vmatprep.subr.mxu0 %v2117
        %2181 = vmatpush1.msra.mxu0 %v2116
        %2182 = vmatprep.subr.mxu0 %v2119
        %2183 = vmatpush1.msra.mxu0 %v2118
        %2184 = vmatprep.subr.mxu0 %v2121
        %2185 = vmatpush1.msra.mxu0 %v2120
        %2186 = vmatprep.subr.mxu0 %v2123
        %2187 = vmatpush1.msra.mxu0 %v2122
        %2188 = vmatprep.subr.mxu0 %v2125
        %2189 = vmatpush1.msra.mxu0 %v2124
        %2190 = vmatprep.subr.mxu0 %v2127
        %2191 = vmatpush1.msra.mxu0 %v2126
        %2192 = vmatprep.subr.mxu0 %v2129
        %2193 = vmatpush1.msra.mxu0 %v2128
        %2194 = vmatprep.subr.mxu0 %v2131
        %2195 = vmatpush1.msra.mxu0 %v2130
        %2196 = vmatprep.subr.mxu0 %v2133
        %2197 = vmatpush1.msra.mxu0 %v2132
        %2198 = vmatprep.mubr.f32.mxu0 %v2067
        %2199 = vmatmul.mubr.f32.gmra.mrb[0].mxu0 %v2065
        %v2200 = vpop.f32.mrb[0].mxu0
        %v2201 = vadd.f32 0.0, %v2200
        %v2202 = vpop.f32.mrb[0].mxu0
        %v2203 = vadd.f32 0.0, %v2202
        %2204 = vdwg.mxu0
        %v2205 = vadd.f32 %v1915, %v2201
        %v2206 = vadd.f32 %v1916, %v2203
        %s2207 = scalar_lea.vmem %s4, 20
        %v2208 = vld [vmem:[%s2207] sm:$0x7]
        %s2209 = scalar_lea.vmem %s5, 20
        %v2210 = vld [vmem:[%s2209] sm:$0x7]
        %v2212 = vsel %vm632, %v2210, 0
        %2214 = vmatprep.subr.mxu0 %v761
        %2215 = vmatpush1.msra.mxu0 %v759
        %2216 = vmatprep.subr.mxu0 0.0
        %2217 = vmatpush1.msra.mxu0 0.0
        %2218 = vmatprep.subr.mxu0 0.0
        %2219 = vmatpush1.msra.mxu0 0.0
        %2220 = vmatprep.subr.mxu0 0.0
        %2221 = vmatpush1.msra.mxu0 0.0
        %2222 = vmatprep.subr.mxu0 0.0
        %2223 = vmatpush1.msra.mxu0 0.0
        %2224 = vmatprep.subr.mxu0 0.0
        %2225 = vmatpush1.msra.mxu0 0.0
        %2226 = vmatprep.subr.mxu0 0.0
        %2227 = vmatpush1.msra.mxu0 0.0
        %2228 = vmatprep.subr.mxu0 0.0
        %2229 = vmatpush1.msra.mxu0 0.0
        %2230 = vmatprep.subr.mxu0 0.0
        %2231 = vmatpush1.msra.mxu0 0.0
        %2232 = vmatprep.subr.mxu0 0.0
        %2233 = vmatpush1.msra.mxu0 0.0
        %2234 = vmatprep.subr.mxu0 0.0
        %2235 = vmatpush1.msra.mxu0 0.0
        %2236 = vmatprep.subr.mxu0 0.0
        %2237 = vmatpush1.msra.mxu0 0.0
        %2238 = vmatprep.subr.mxu0 0.0
        %2239 = vmatpush1.msra.mxu0 0.0
        %2240 = vmatprep.subr.mxu0 0.0
        %2241 = vmatpush1.msra.mxu0 0.0
        %2242 = vmatprep.subr.mxu0 0.0
        %2243 = vmatpush1.msra.mxu0 0.0
        %2244 = vmatprep.subr.mxu0 0.0
        %2245 = vmatpush1.msra.mxu0 0.0
        %2246 = vmatprep.subr.mxu0 0.0
        %2247 = vmatpush1.msra.mxu0 0.0
        %2248 = vmatprep.subr.mxu0 0.0
        %2249 = vmatpush1.msra.mxu0 0.0
        %2250 = vmatprep.subr.mxu0 0.0
        %2251 = vmatpush1.msra.mxu0 0.0
        %2252 = vmatprep.subr.mxu0 0.0
        %2253 = vmatpush1.msra.mxu0 0.0
        %2254 = vmatprep.subr.mxu0 0.0
        %2255 = vmatpush1.msra.mxu0 0.0
        %2256 = vmatprep.subr.mxu0 0.0
        %2257 = vmatpush1.msra.mxu0 0.0
        %2258 = vmatprep.subr.mxu0 0.0
        %2259 = vmatpush1.msra.mxu0 0.0
        %2260 = vmatprep.subr.mxu0 0.0
        %2261 = vmatpush1.msra.mxu0 0.0
        %2262 = vmatprep.subr.mxu0 0.0
        %2263 = vmatpush1.msra.mxu0 0.0
        %2264 = vmatprep.subr.mxu0 0.0
        %2265 = vmatpush1.msra.mxu0 0.0
        %2266 = vmatprep.subr.mxu0 0.0
        %2267 = vmatpush1.msra.mxu0 0.0
        %2268 = vmatprep.subr.mxu0 0.0
        %2269 = vmatpush1.msra.mxu0 0.0
        %2270 = vmatprep.subr.mxu0 0.0
        %2271 = vmatpush1.msra.mxu0 0.0
        %2272 = vmatprep.subr.mxu0 0.0
        %2273 = vmatpush1.msra.mxu0 0.0
        %2274 = vmatprep.subr.mxu0 0.0
        %2275 = vmatpush1.msra.mxu0 0.0
        %2276 = vmatprep.subr.mxu0 0.0
        %2277 = vmatpush1.msra.mxu0 0.0
        %2278 = vmatprep.mubr.f32.mxu0 0.0
        %2279 = vmatmul.mubr.f32.gmra.mrb[0].mxu0 %v2212
        %v2280 = vpop.f32.mrb[0].mxu0
        %v2281 = vadd.f32 0.0, %v2280
        %v2282 = vpop.f32.mrb[0].mxu0
        %v2283 = vadd.f32 0.0, %v2282
        %2284 = vdwg.mxu0
        %v2286 = vsel %vm632, %v2208, 0
        %2288 = vmatprep.subr.mxu0 %v841
        %2289 = vmatpush1.msra.mxu0 %v839
        %2290 = vmatprep.subr.mxu0 0.0
        %2291 = vmatpush1.msra.mxu0 0.0
        %2292 = vmatprep.subr.mxu0 0.0
        %2293 = vmatpush1.msra.mxu0 0.0
        %2294 = vmatprep.subr.mxu0 0.0
        %2295 = vmatpush1.msra.mxu0 0.0
        %2296 = vmatprep.subr.mxu0 0.0
        %2297 = vmatpush1.msra.mxu0 0.0
        %2298 = vmatprep.subr.mxu0 0.0
        %2299 = vmatpush1.msra.mxu0 0.0
        %2300 = vmatprep.subr.mxu0 0.0
        %2301 = vmatpush1.msra.mxu0 0.0
        %2302 = vmatprep.subr.mxu0 0.0
        %2303 = vmatpush1.msra.mxu0 0.0
        %2304 = vmatprep.subr.mxu0 0.0
        %2305 = vmatpush1.msra.mxu0 0.0
        %2306 = vmatprep.subr.mxu0 0.0
        %2307 = vmatpush1.msra.mxu0 0.0
        %2308 = vmatprep.subr.mxu0 0.0
        %2309 = vmatpush1.msra.mxu0 0.0
        %2310 = vmatprep.subr.mxu0 0.0
        %2311 = vmatpush1.msra.mxu0 0.0
        %2312 = vmatprep.subr.mxu0 0.0
        %2313 = vmatpush1.msra.mxu0 0.0
        %2314 = vmatprep.subr.mxu0 0.0
        %2315 = vmatpush1.msra.mxu0 0.0
        %2316 = vmatprep.subr.mxu0 0.0
        %2317 = vmatpush1.msra.mxu0 0.0
        %2318 = vmatprep.subr.mxu0 0.0
        %2319 = vmatpush1.msra.mxu0 0.0
        %2320 = vmatprep.subr.mxu0 0.0
        %2321 = vmatpush1.msra.mxu0 0.0
        %2322 = vmatprep.subr.mxu0 0.0
        %2323 = vmatpush1.msra.mxu0 0.0
        %2324 = vmatprep.subr.mxu0 0.0
        %2325 = vmatpush1.msra.mxu0 0.0
        %2326 = vmatprep.subr.mxu0 0.0
        %2327 = vmatpush1.msra.mxu0 0.0
        %2328 = vmatprep.subr.mxu0 0.0
        %2329 = vmatpush1.msra.mxu0 0.0
        %2330 = vmatprep.subr.mxu0 0.0
        %2331 = vmatpush1.msra.mxu0 0.0
        %2332 = vmatprep.subr.mxu0 0.0
        %2333 = vmatpush1.msra.mxu0 0.0
        %2334 = vmatprep.subr.mxu0 0.0
        %2335 = vmatpush1.msra.mxu0 0.0
        %2336 = vmatprep.subr.mxu0 0.0
        %2337 = vmatpush1.msra.mxu0 0.0
        %2338 = vmatprep.subr.mxu0 0.0
        %2339 = vmatpush1.msra.mxu0 0.0
        %2340 = vmatprep.subr.mxu0 0.0
        %2341 = vmatpush1.msra.mxu0 0.0
        %2342 = vmatprep.subr.mxu0 0.0
        %2343 = vmatpush1.msra.mxu0 0.0
        %2344 = vmatprep.subr.mxu0 0.0
        %2345 = vmatpush1.msra.mxu0 0.0
        %2346 = vmatprep.subr.mxu0 0.0
        %2347 = vmatpush1.msra.mxu0 0.0
        %2348 = vmatprep.subr.mxu0 0.0
        %2349 = vmatpush1.msra.mxu0 0.0
        %2350 = vmatprep.subr.mxu0 0.0
        %2351 = vmatpush1.msra.mxu0 0.0
        %2352 = vmatprep.mubr.f32.mxu0 0.0
        %2353 = vmatmul.mubr.f32.gmra.mrb[0].mxu0 %v2286
        %v2354 = vpop.f32.mrb[0].mxu0
        %v2355 = vadd.f32 %v2281, %v2354
        %v2356 = vpop.f32.mrb[0].mxu0
        %v2357 = vadd.f32 %v2283, %v2356
        %2358 = vdwg.mxu0
        %s2359 = scalar_lea.vmem [#allocation6], 2560
        %v2360 = vld [vmem:[%s2359] sm:$0xff]
        %v2361 = vld [vmem:[%s2359 + $0x8] sm:$0xff]
        %v2362 = vld [vmem:[%s2359 + $0x10] sm:$0xff]
        %v2363 = vld [vmem:[%s2359 + $0x18] sm:$0xff]
        %v2364 = vld [vmem:[%s2359 + $0x20] sm:$0xff]
        %v2365 = vld [vmem:[%s2359 + $0x28] sm:$0xff]
        %v2366 = vld [vmem:[%s2359 + $0x30] sm:$0xff]
        %v2367 = vld [vmem:[%s2359 + $0x38] sm:$0xff]
        %v2368 = vld [vmem:[%s2359 + $0x40] sm:$0xff]
        %v2369 = vld [vmem:[%s2359 + $0x48] sm:$0xff]
        %v2370 = vld [vmem:[%s2359 + $0x50] sm:$0xff]
        %v2371 = vld [vmem:[%s2359 + $0x58] sm:$0xff]
        %v2372 = vld [vmem:[%s2359 + $0x60] sm:$0xff]
        %v2373 = vld [vmem:[%s2359 + $0x68] sm:$0xff]
        %v2374 = vld [vmem:[%s2359 + $0x70] sm:$0xff]
        %v2375 = vld [vmem:[%s2359 + $0x78] sm:$0xff]
        %v2376 = vld [vmem:[%s2359 + $0x80] sm:$0xff]
        %v2377 = vld [vmem:[%s2359 + $0x88] sm:$0xff]
        %v2378 = vld [vmem:[%s2359 + $0x90] sm:$0xff]
        %v2379 = vld [vmem:[%s2359 + $0x98] sm:$0xff]
        %v2380 = vld [vmem:[%s2359 + $0xa0] sm:$0xff]
        %v2381 = vld [vmem:[%s2359 + $0xa8] sm:$0xff]
        %v2382 = vld [vmem:[%s2359 + $0xb0] sm:$0xff]
        %v2383 = vld [vmem:[%s2359 + $0xb8] sm:$0xff]
        %v2384 = vld [vmem:[%s2359 + $0xc0] sm:$0xff]
        %v2385 = vld [vmem:[%s2359 + $0xc8] sm:$0xff]
        %v2386 = vld [vmem:[%s2359 + $0xd0] sm:$0xff]
        %v2387 = vld [vmem:[%s2359 + $0xd8] sm:$0xff]
        %v2388 = vld [vmem:[%s2359 + $0xe0] sm:$0xff]
        %v2389 = vld [vmem:[%s2359 + $0xe8] sm:$0xff]
        %v2390 = vld [vmem:[%s2359 + $0xf0] sm:$0xff]
        %v2391 = vld [vmem:[%s2359 + $0xf8] sm:$0xff]
        %v2392 = vld [vmem:[%s2359 + $0x100] sm:$0xff]
        %v2393 = vld [vmem:[%s2359 + $0x108] sm:$0xff]
        %v2394 = vld [vmem:[%s2359 + $0x110] sm:$0xff]
        %v2395 = vld [vmem:[%s2359 + $0x118] sm:$0xff]
        %v2396 = vld [vmem:[%s2359 + $0x120] sm:$0xff]
        %v2397 = vld [vmem:[%s2359 + $0x128] sm:$0xff]
        %v2398 = vld [vmem:[%s2359 + $0x130] sm:$0xff]
        %v2399 = vld [vmem:[%s2359 + $0x138] sm:$0xff]
        %v2400 = vld [vmem:[%s2359 + $0x140] sm:$0xff]
        %v2401 = vld [vmem:[%s2359 + $0x148] sm:$0xff]
        %v2402 = vld [vmem:[%s2359 + $0x150] sm:$0xff]
        %v2403 = vld [vmem:[%s2359 + $0x158] sm:$0xff]
        %v2404 = vld [vmem:[%s2359 + $0x160] sm:$0xff]
        %v2405 = vld [vmem:[%s2359 + $0x168] sm:$0xff]
        %v2406 = vld [vmem:[%s2359 + $0x170] sm:$0xff]
        %v2407 = vld [vmem:[%s2359 + $0x178] sm:$0xff]
        %v2408 = vld [vmem:[%s2359 + $0x180] sm:$0xff]
        %v2409 = vld [vmem:[%s2359 + $0x188] sm:$0xff]
        %v2410 = vld [vmem:[%s2359 + $0x190] sm:$0xff]
        %v2411 = vld [vmem:[%s2359 + $0x198] sm:$0xff]
        %v2412 = vld [vmem:[%s2359 + $0x1a0] sm:$0xff]
        %v2413 = vld [vmem:[%s2359 + $0x1a8] sm:$0xff]
        %v2414 = vld [vmem:[%s2359 + $0x1b0] sm:$0xff]
        %v2415 = vld [vmem:[%s2359 + $0x1b8] sm:$0xff]
        %v2416 = vld [vmem:[%s2359 + $0x1c0] sm:$0xff]
        %v2417 = vld [vmem:[%s2359 + $0x1c8] sm:$0xff]
        %v2418 = vld [vmem:[%s2359 + $0x1d0] sm:$0xff]
        %v2419 = vld [vmem:[%s2359 + $0x1d8] sm:$0xff]
        %v2420 = vld [vmem:[%s2359 + $0x1e0] sm:$0xff]
        %v2421 = vld [vmem:[%s2359 + $0x1e8] sm:$0xff]
        %v2422 = vld [vmem:[%s2359 + $0x1f0] sm:$0xff]
        %v2423 = vld [vmem:[%s2359 + $0x1f8] sm:$0xff]
        %2424 = vmatprep.subr.mxu0 %v2361
        %2425 = vmatpush1.msra.mxu0 %v2360
        %2426 = vmatprep.subr.mxu0 %v2363
        %2427 = vmatpush1.msra.mxu0 %v2362
        %2428 = vmatprep.subr.mxu0 %v2365
        %2429 = vmatpush1.msra.mxu0 %v2364
        %2430 = vmatprep.subr.mxu0 %v2367
        %2431 = vmatpush1.msra.mxu0 %v2366
        %2432 = vmatprep.subr.mxu0 %v2369
        %2433 = vmatpush1.msra.mxu0 %v2368
        %2434 = vmatprep.subr.mxu0 %v2371
        %2435 = vmatpush1.msra.mxu0 %v2370
        %2436 = vmatprep.subr.mxu0 %v2373
        %2437 = vmatpush1.msra.mxu0 %v2372
        %2438 = vmatprep.subr.mxu0 %v2375
        %2439 = vmatpush1.msra.mxu0 %v2374
        %2440 = vmatprep.subr.mxu0 %v2377
        %2441 = vmatpush1.msra.mxu0 %v2376
        %2442 = vmatprep.subr.mxu0 %v2379
        %2443 = vmatpush1.msra.mxu0 %v2378
        %2444 = vmatprep.subr.mxu0 %v2381
        %2445 = vmatpush1.msra.mxu0 %v2380
        %2446 = vmatprep.subr.mxu0 %v2383
        %2447 = vmatpush1.msra.mxu0 %v2382
        %2448 = vmatprep.subr.mxu0 %v2385
        %2449 = vmatpush1.msra.mxu0 %v2384
        %2450 = vmatprep.subr.mxu0 %v2387
        %2451 = vmatpush1.msra.mxu0 %v2386
        %2452 = vmatprep.subr.mxu0 %v2389
        %2453 = vmatpush1.msra.mxu0 %v2388
        %2454 = vmatprep.subr.mxu0 %v2391
        %2455 = vmatpush1.msra.mxu0 %v2390
        %2456 = vmatprep.subr.mxu0 %v2393
        %2457 = vmatpush1.msra.mxu0 %v2392
        %2458 = vmatprep.subr.mxu0 %v2395
        %2459 = vmatpush1.msra.mxu0 %v2394
        %2460 = vmatprep.subr.mxu0 %v2397
        %2461 = vmatpush1.msra.mxu0 %v2396
        %2462 = vmatprep.subr.mxu0 %v2399
        %2463 = vmatpush1.msra.mxu0 %v2398
        %2464 = vmatprep.subr.mxu0 %v2401
        %2465 = vmatpush1.msra.mxu0 %v2400
        %2466 = vmatprep.subr.mxu0 %v2403
        %2467 = vmatpush1.msra.mxu0 %v2402
        %2468 = vmatprep.subr.mxu0 %v2405
        %2469 = vmatpush1.msra.mxu0 %v2404
        %2470 = vmatprep.subr.mxu0 %v2407
        %2471 = vmatpush1.msra.mxu0 %v2406
        %2472 = vmatprep.subr.mxu0 %v2409
        %2473 = vmatpush1.msra.mxu0 %v2408
        %2474 = vmatprep.subr.mxu0 %v2411
        %2475 = vmatpush1.msra.mxu0 %v2410
        %2476 = vmatprep.subr.mxu0 %v2413
        %2477 = vmatpush1.msra.mxu0 %v2412
        %2478 = vmatprep.subr.mxu0 %v2415
        %2479 = vmatpush1.msra.mxu0 %v2414
        %2480 = vmatprep.subr.mxu0 %v2417
        %2481 = vmatpush1.msra.mxu0 %v2416
        %2482 = vmatprep.subr.mxu0 %v2419
        %2483 = vmatpush1.msra.mxu0 %v2418
        %2484 = vmatprep.subr.mxu0 %v2421
        %2485 = vmatpush1.msra.mxu0 %v2420
        %2486 = vmatprep.subr.mxu0 %v2423
        %2487 = vmatpush1.msra.mxu0 %v2422
        %2488 = vmatprep.mubr.f32.mxu0 %v2357
        %2489 = vmatmul.mubr.f32.gmra.mrb[0].mxu0 %v2355
        %v2490 = vpop.f32.mrb[0].mxu0
        %v2491 = vadd.f32 0.0, %v2490
        %v2492 = vpop.f32.mrb[0].mxu0
        %v2493 = vadd.f32 0.0, %v2492
        %2494 = vdwg.mxu0
        %v2495 = vadd.f32 %v2205, %v2491
        %v2496 = vadd.f32 %v2206, %v2493
        %s2497 = scalar_lea.vmem %s4, 24
        %v2498 = vld [vmem:[%s2497] sm:$0x7]
        %s2499 = scalar_lea.vmem %s5, 24
        %v2500 = vld [vmem:[%s2499] sm:$0x7]
        %v2502 = vsel %vm632, %v2500, 0
        %2504 = vmatprep.subr.mxu0 %v761
        %2505 = vmatpush1.msra.mxu0 %v759
        %2506 = vmatprep.subr.mxu0 0.0
        %2507 = vmatpush1.msra.mxu0 0.0
        %2508 = vmatprep.subr.mxu0 0.0
        %2509 = vmatpush1.msra.mxu0 0.0
        %2510 = vmatprep.subr.mxu0 0.0
        %2511 = vmatpush1.msra.mxu0 0.0
        %2512 = vmatprep.subr.mxu0 0.0
        %2513 = vmatpush1.msra.mxu0 0.0
        %2514 = vmatprep.subr.mxu0 0.0
        %2515 = vmatpush1.msra.mxu0 0.0
        %2516 = vmatprep.subr.mxu0 0.0
        %2517 = vmatpush1.msra.mxu0 0.0
        %2518 = vmatprep.subr.mxu0 0.0
        %2519 = vmatpush1.msra.mxu0 0.0
        %2520 = vmatprep.subr.mxu0 0.0
        %2521 = vmatpush1.msra.mxu0 0.0
        %2522 = vmatprep.subr.mxu0 0.0
        %2523 = vmatpush1.msra.mxu0 0.0
        %2524 = vmatprep.subr.mxu0 0.0
        %2525 = vmatpush1.msra.mxu0 0.0
        %2526 = vmatprep.subr.mxu0 0.0
        %2527 = vmatpush1.msra.mxu0 0.0
        %2528 = vmatprep.subr.mxu0 0.0
        %2529 = vmatpush1.msra.mxu0 0.0
        %2530 = vmatprep.subr.mxu0 0.0
        %2531 = vmatpush1.msra.mxu0 0.0
        %2532 = vmatprep.subr.mxu0 0.0
        %2533 = vmatpush1.msra.mxu0 0.0
        %2534 = vmatprep.subr.mxu0 0.0
        %2535 = vmatpush1.msra.mxu0 0.0
        %2536 = vmatprep.subr.mxu0 0.0
        %2537 = vmatpush1.msra.mxu0 0.0
        %2538 = vmatprep.subr.mxu0 0.0
        %2539 = vmatpush1.msra.mxu0 0.0
        %2540 = vmatprep.subr.mxu0 0.0
        %2541 = vmatpush1.msra.mxu0 0.0
        %2542 = vmatprep.subr.mxu0 0.0
        %2543 = vmatpush1.msra.mxu0 0.0
        %2544 = vmatprep.subr.mxu0 0.0
        %2545 = vmatpush1.msra.mxu0 0.0
        %2546 = vmatprep.subr.mxu0 0.0
        %2547 = vmatpush1.msra.mxu0 0.0
        %2548 = vmatprep.subr.mxu0 0.0
        %2549 = vmatpush1.msra.mxu0 0.0
        %2550 = vmatprep.subr.mxu0 0.0
        %2551 = vmatpush1.msra.mxu0 0.0
        %2552 = vmatprep.subr.mxu0 0.0
        %2553 = vmatpush1.msra.mxu0 0.0
        %2554 = vmatprep.subr.mxu0 0.0
        %2555 = vmatpush1.msra.mxu0 0.0
        %2556 = vmatprep.subr.mxu0 0.0
        %2557 = vmatpush1.msra.mxu0 0.0
        %2558 = vmatprep.subr.mxu0 0.0
        %2559 = vmatpush1.msra.mxu0 0.0
        %2560 = vmatprep.subr.mxu0 0.0
        %2561 = vmatpush1.msra.mxu0 0.0
        %2562 = vmatprep.subr.mxu0 0.0
        %2563 = vmatpush1.msra.mxu0 0.0
        %2564 = vmatprep.subr.mxu0 0.0
        %2565 = vmatpush1.msra.mxu0 0.0
        %2566 = vmatprep.subr.mxu0 0.0
        %2567 = vmatpush1.msra.mxu0 0.0
        %2568 = vmatprep.mubr.f32.mxu0 0.0
        %2569 = vmatmul.mubr.f32.gmra.mrb[0].mxu0 %v2502
        %v2570 = vpop.f32.mrb[0].mxu0
        %v2571 = vadd.f32 0.0, %v2570
        %v2572 = vpop.f32.mrb[0].mxu0
        %v2573 = vadd.f32 0.0, %v2572
        %2574 = vdwg.mxu0
        %v2576 = vsel %vm632, %v2498, 0
        %2578 = vmatprep.subr.mxu0 %v841
        %2579 = vmatpush1.msra.mxu0 %v839
        %2580 = vmatprep.subr.mxu0 0.0
        %2581 = vmatpush1.msra.mxu0 0.0
        %2582 = vmatprep.subr.mxu0 0.0
        %2583 = vmatpush1.msra.mxu0 0.0
        %2584 = vmatprep.subr.mxu0 0.0
        %2585 = vmatpush1.msra.mxu0 0.0
        %2586 = vmatprep.subr.mxu0 0.0
        %2587 = vmatpush1.msra.mxu0 0.0
        %2588 = vmatprep.subr.mxu0 0.0
        %2589 = vmatpush1.msra.mxu0 0.0
        %2590 = vmatprep.subr.mxu0 0.0
        %2591 = vmatpush1.msra.mxu0 0.0
        %2592 = vmatprep.subr.mxu0 0.0
        %2593 = vmatpush1.msra.mxu0 0.0
        %2594 = vmatprep.subr.mxu0 0.0
        %2595 = vmatpush1.msra.mxu0 0.0
        %2596 = vmatprep.subr.mxu0 0.0
        %2597 = vmatpush1.msra.mxu0 0.0
        %2598 = vmatprep.subr.mxu0 0.0
        %2599 = vmatpush1.msra.mxu0 0.0
        %2600 = vmatprep.subr.mxu0 0.0
        %2601 = vmatpush1.msra.mxu0 0.0
        %2602 = vmatprep.subr.mxu0 0.0
        %2603 = vmatpush1.msra.mxu0 0.0
        %2604 = vmatprep.subr.mxu0 0.0
        %2605 = vmatpush1.msra.mxu0 0.0
        %2606 = vmatprep.subr.mxu0 0.0
        %2607 = vmatpush1.msra.mxu0 0.0
        %2608 = vmatprep.subr.mxu0 0.0
        %2609 = vmatpush1.msra.mxu0 0.0
        %2610 = vmatprep.subr.mxu0 0.0
        %2611 = vmatpush1.msra.mxu0 0.0
        %2612 = vmatprep.subr.mxu0 0.0
        %2613 = vmatpush1.msra.mxu0 0.0
        %2614 = vmatprep.subr.mxu0 0.0
        %2615 = vmatpush1.msra.mxu0 0.0
        %2616 = vmatprep.subr.mxu0 0.0
        %2617 = vmatpush1.msra.mxu0 0.0
        %2618 = vmatprep.subr.mxu0 0.0
        %2619 = vmatpush1.msra.mxu0 0.0
        %2620 = vmatprep.subr.mxu0 0.0
        %2621 = vmatpush1.msra.mxu0 0.0
        %2622 = vmatprep.subr.mxu0 0.0
        %2623 = vmatpush1.msra.mxu0 0.0
        %2624 = vmatprep.subr.mxu0 0.0
        %2625 = vmatpush1.msra.mxu0 0.0
        %2626 = vmatprep.subr.mxu0 0.0
        %2627 = vmatpush1.msra.mxu0 0.0
        %2628 = vmatprep.subr.mxu0 0.0
        %2629 = vmatpush1.msra.mxu0 0.0
        %2630 = vmatprep.subr.mxu0 0.0
        %2631 = vmatpush1.msra.mxu0 0.0
        %2632 = vmatprep.subr.mxu0 0.0
        %2633 = vmatpush1.msra.mxu0 0.0
        %2634 = vmatprep.subr.mxu0 0.0
        %2635 = vmatpush1.msra.mxu0 0.0
        %2636 = vmatprep.subr.mxu0 0.0
        %2637 = vmatpush1.msra.mxu0 0.0
        %2638 = vmatprep.subr.mxu0 0.0
        %2639 = vmatpush1.msra.mxu0 0.0
        %2640 = vmatprep.subr.mxu0 0.0
        %2641 = vmatpush1.msra.mxu0 0.0
        %2642 = vmatprep.mubr.f32.mxu0 0.0
        %2643 = vmatmul.mubr.f32.gmra.mrb[0].mxu0 %v2576
        %v2644 = vpop.f32.mrb[0].mxu0
        %v2645 = vadd.f32 %v2571, %v2644
        %v2646 = vpop.f32.mrb[0].mxu0
        %v2647 = vadd.f32 %v2573, %v2646
        %2648 = vdwg.mxu0
        %s2649 = scalar_lea.vmem [#allocation6], 3072
        %v2650 = vld [vmem:[%s2649] sm:$0xff]
        %v2651 = vld [vmem:[%s2649 + $0x8] sm:$0xff]
        %v2652 = vld [vmem:[%s2649 + $0x10] sm:$0xff]
        %v2653 = vld [vmem:[%s2649 + $0x18] sm:$0xff]
        %v2654 = vld [vmem:[%s2649 + $0x20] sm:$0xff]
        %v2655 = vld [vmem:[%s2649 + $0x28] sm:$0xff]
        %v2656 = vld [vmem:[%s2649 + $0x30] sm:$0xff]
        %v2657 = vld [vmem:[%s2649 + $0x38] sm:$0xff]
        %v2658 = vld [vmem:[%s2649 + $0x40] sm:$0xff]
        %v2659 = vld [vmem:[%s2649 + $0x48] sm:$0xff]
        %v2660 = vld [vmem:[%s2649 + $0x50] sm:$0xff]
        %v2661 = vld [vmem:[%s2649 + $0x58] sm:$0xff]
        %v2662 = vld [vmem:[%s2649 + $0x60] sm:$0xff]
        %v2663 = vld [vmem:[%s2649 + $0x68] sm:$0xff]
        %v2664 = vld [vmem:[%s2649 + $0x70] sm:$0xff]
        %v2665 = vld [vmem:[%s2649 + $0x78] sm:$0xff]
        %v2666 = vld [vmem:[%s2649 + $0x80] sm:$0xff]
        %v2667 = vld [vmem:[%s2649 + $0x88] sm:$0xff]
        %v2668 = vld [vmem:[%s2649 + $0x90] sm:$0xff]
        %v2669 = vld [vmem:[%s2649 + $0x98] sm:$0xff]
        %v2670 = vld [vmem:[%s2649 + $0xa0] sm:$0xff]
        %v2671 = vld [vmem:[%s2649 + $0xa8] sm:$0xff]
        %v2672 = vld [vmem:[%s2649 + $0xb0] sm:$0xff]
        %v2673 = vld [vmem:[%s2649 + $0xb8] sm:$0xff]
        %v2674 = vld [vmem:[%s2649 + $0xc0] sm:$0xff]
        %v2675 = vld [vmem:[%s2649 + $0xc8] sm:$0xff]
        %v2676 = vld [vmem:[%s2649 + $0xd0] sm:$0xff]
        %v2677 = vld [vmem:[%s2649 + $0xd8] sm:$0xff]
        %v2678 = vld [vmem:[%s2649 + $0xe0] sm:$0xff]
        %v2679 = vld [vmem:[%s2649 + $0xe8] sm:$0xff]
        %v2680 = vld [vmem:[%s2649 + $0xf0] sm:$0xff]
        %v2681 = vld [vmem:[%s2649 + $0xf8] sm:$0xff]
        %v2682 = vld [vmem:[%s2649 + $0x100] sm:$0xff]
        %v2683 = vld [vmem:[%s2649 + $0x108] sm:$0xff]
        %v2684 = vld [vmem:[%s2649 + $0x110] sm:$0xff]
        %v2685 = vld [vmem:[%s2649 + $0x118] sm:$0xff]
        %v2686 = vld [vmem:[%s2649 + $0x120] sm:$0xff]
        %v2687 = vld [vmem:[%s2649 + $0x128] sm:$0xff]
        %v2688 = vld [vmem:[%s2649 + $0x130] sm:$0xff]
        %v2689 = vld [vmem:[%s2649 + $0x138] sm:$0xff]
        %v2690 = vld [vmem:[%s2649 + $0x140] sm:$0xff]
        %v2691 = vld [vmem:[%s2649 + $0x148] sm:$0xff]
        %v2692 = vld [vmem:[%s2649 + $0x150] sm:$0xff]
        %v2693 = vld [vmem:[%s2649 + $0x158] sm:$0xff]
        %v2694 = vld [vmem:[%s2649 + $0x160] sm:$0xff]
        %v2695 = vld [vmem:[%s2649 + $0x168] sm:$0xff]
        %v2696 = vld [vmem:[%s2649 + $0x170] sm:$0xff]
        %v2697 = vld [vmem:[%s2649 + $0x178] sm:$0xff]
        %v2698 = vld [vmem:[%s2649 + $0x180] sm:$0xff]
        %v2699 = vld [vmem:[%s2649 + $0x188] sm:$0xff]
        %v2700 = vld [vmem:[%s2649 + $0x190] sm:$0xff]
        %v2701 = vld [vmem:[%s2649 + $0x198] sm:$0xff]
        %v2702 = vld [vmem:[%s2649 + $0x1a0] sm:$0xff]
        %v2703 = vld [vmem:[%s2649 + $0x1a8] sm:$0xff]
        %v2704 = vld [vmem:[%s2649 + $0x1b0] sm:$0xff]
        %v2705 = vld [vmem:[%s2649 + $0x1b8] sm:$0xff]
        %v2706 = vld [vmem:[%s2649 + $0x1c0] sm:$0xff]
        %v2707 = vld [vmem:[%s2649 + $0x1c8] sm:$0xff]
        %v2708 = vld [vmem:[%s2649 + $0x1d0] sm:$0xff]
        %v2709 = vld [vmem:[%s2649 + $0x1d8] sm:$0xff]
        %v2710 = vld [vmem:[%s2649 + $0x1e0] sm:$0xff]
        %v2711 = vld [vmem:[%s2649 + $0x1e8] sm:$0xff]
        %v2712 = vld [vmem:[%s2649 + $0x1f0] sm:$0xff]
        %v2713 = vld [vmem:[%s2649 + $0x1f8] sm:$0xff]
        %2714 = vmatprep.subr.mxu0 %v2651
        %2715 = vmatpush1.msra.mxu0 %v2650
        %2716 = vmatprep.subr.mxu0 %v2653
        %2717 = vmatpush1.msra.mxu0 %v2652
        %2718 = vmatprep.subr.mxu0 %v2655
        %2719 = vmatpush1.msra.mxu0 %v2654
        %2720 = vmatprep.subr.mxu0 %v2657
        %2721 = vmatpush1.msra.mxu0 %v2656
        %2722 = vmatprep.subr.mxu0 %v2659
        %2723 = vmatpush1.msra.mxu0 %v2658
        %2724 = vmatprep.subr.mxu0 %v2661
        %2725 = vmatpush1.msra.mxu0 %v2660
        %2726 = vmatprep.subr.mxu0 %v2663
        %2727 = vmatpush1.msra.mxu0 %v2662
        %2728 = vmatprep.subr.mxu0 %v2665
        %2729 = vmatpush1.msra.mxu0 %v2664
        %2730 = vmatprep.subr.mxu0 %v2667
        %2731 = vmatpush1.msra.mxu0 %v2666
        %2732 = vmatprep.subr.mxu0 %v2669
        %2733 = vmatpush1.msra.mxu0 %v2668
        %2734 = vmatprep.subr.mxu0 %v2671
        %2735 = vmatpush1.msra.mxu0 %v2670
        %2736 = vmatprep.subr.mxu0 %v2673
        %2737 = vmatpush1.msra.mxu0 %v2672
        %2738 = vmatprep.subr.mxu0 %v2675
        %2739 = vmatpush1.msra.mxu0 %v2674
        %2740 = vmatprep.subr.mxu0 %v2677
        %2741 = vmatpush1.msra.mxu0 %v2676
        %2742 = vmatprep.subr.mxu0 %v2679
        %2743 = vmatpush1.msra.mxu0 %v2678
        %2744 = vmatprep.subr.mxu0 %v2681
        %2745 = vmatpush1.msra.mxu0 %v2680
        %2746 = vmatprep.subr.mxu0 %v2683
        %2747 = vmatpush1.msra.mxu0 %v2682
        %2748 = vmatprep.subr.mxu0 %v2685
        %2749 = vmatpush1.msra.mxu0 %v2684
        %2750 = vmatprep.subr.mxu0 %v2687
        %2751 = vmatpush1.msra.mxu0 %v2686
        %2752 = vmatprep.subr.mxu0 %v2689
        %2753 = vmatpush1.msra.mxu0 %v2688
        %2754 = vmatprep.subr.mxu0 %v2691
        %2755 = vmatpush1.msra.mxu0 %v2690
        %2756 = vmatprep.subr.mxu0 %v2693
        %2757 = vmatpush1.msra.mxu0 %v2692
        %2758 = vmatprep.subr.mxu0 %v2695
        %2759 = vmatpush1.msra.mxu0 %v2694
        %2760 = vmatprep.subr.mxu0 %v2697
        %2761 = vmatpush1.msra.mxu0 %v2696
        %2762 = vmatprep.subr.mxu0 %v2699
        %2763 = vmatpush1.msra.mxu0 %v2698
        %2764 = vmatprep.subr.mxu0 %v2701
        %2765 = vmatpush1.msra.mxu0 %v2700
        %2766 = vmatprep.subr.mxu0 %v2703
        %2767 = vmatpush1.msra.mxu0 %v2702
        %2768 = vmatprep.subr.mxu0 %v2705
        %2769 = vmatpush1.msra.mxu0 %v2704
        %2770 = vmatprep.subr.mxu0 %v2707
        %2771 = vmatpush1.msra.mxu0 %v2706
        %2772 = vmatprep.subr.mxu0 %v2709
        %2773 = vmatpush1.msra.mxu0 %v2708
        %2774 = vmatprep.subr.mxu0 %v2711
        %2775 = vmatpush1.msra.mxu0 %v2710
        %2776 = vmatprep.subr.mxu0 %v2713
        %2777 = vmatpush1.msra.mxu0 %v2712
        %2778 = vmatprep.mubr.f32.mxu0 %v2647
        %2779 = vmatmul.mubr.f32.gmra.mrb[0].mxu0 %v2645
        %v2780 = vpop.f32.mrb[0].mxu0
        %v2781 = vadd.f32 0.0, %v2780
        %v2782 = vpop.f32.mrb[0].mxu0
        %v2783 = vadd.f32 0.0, %v2782
        %2784 = vdwg.mxu0
        %v2785 = vadd.f32 %v2495, %v2781
        %v2786 = vadd.f32 %v2496, %v2783
        %s2787 = scalar_lea.vmem %s4, 28
        %v2788 = vld [vmem:[%s2787] sm:$0x7]
        %s2789 = scalar_lea.vmem %s5, 28
        %v2790 = vld [vmem:[%s2789] sm:$0x7]
        %v2792 = vsel %vm632, %v2790, 0
        %2794 = vmatprep.subr.mxu0 %v761
        %2795 = vmatpush1.msra.mxu0 %v759
        %2796 = vmatprep.subr.mxu0 0.0
        %2797 = vmatpush1.msra.mxu0 0.0
        %2798 = vmatprep.subr.mxu0 0.0
        %2799 = vmatpush1.msra.mxu0 0.0
        %2800 = vmatprep.subr.mxu0 0.0
        %2801 = vmatpush1.msra.mxu0 0.0
        %2802 = vmatprep.subr.mxu0 0.0
        %2803 = vmatpush1.msra.mxu0 0.0
        %2804 = vmatprep.subr.mxu0 0.0
        %2805 = vmatpush1.msra.mxu0 0.0
        %2806 = vmatprep.subr.mxu0 0.0
        %2807 = vmatpush1.msra.mxu0 0.0
        %2808 = vmatprep.subr.mxu0 0.0
        %2809 = vmatpush1.msra.mxu0 0.0
        %2810 = vmatprep.subr.mxu0 0.0
        %2811 = vmatpush1.msra.mxu0 0.0
        %2812 = vmatprep.subr.mxu0 0.0
        %2813 = vmatpush1.msra.mxu0 0.0
        %2814 = vmatprep.subr.mxu0 0.0
        %2815 = vmatpush1.msra.mxu0 0.0
        %2816 = vmatprep.subr.mxu0 0.0
        %2817 = vmatpush1.msra.mxu0 0.0
        %2818 = vmatprep.subr.mxu0 0.0
        %2819 = vmatpush1.msra.mxu0 0.0
        %2820 = vmatprep.subr.mxu0 0.0
        %2821 = vmatpush1.msra.mxu0 0.0
        %2822 = vmatprep.subr.mxu0 0.0
        %2823 = vmatpush1.msra.mxu0 0.0
        %2824 = vmatprep.subr.mxu0 0.0
        %2825 = vmatpush1.msra.mxu0 0.0
        %2826 = vmatprep.subr.mxu0 0.0
        %2827 = vmatpush1.msra.mxu0 0.0
        %2828 = vmatprep.subr.mxu0 0.0
        %2829 = vmatpush1.msra.mxu0 0.0
        %2830 = vmatprep.subr.mxu0 0.0
        %2831 = vmatpush1.msra.mxu0 0.0
        %2832 = vmatprep.subr.mxu0 0.0
        %2833 = vmatpush1.msra.mxu0 0.0
        %2834 = vmatprep.subr.mxu0 0.0
        %2835 = vmatpush1.msra.mxu0 0.0
        %2836 = vmatprep.subr.mxu0 0.0
        %2837 = vmatpush1.msra.mxu0 0.0
        %2838 = vmatprep.subr.mxu0 0.0
        %2839 = vmatpush1.msra.mxu0 0.0
        %2840 = vmatprep.subr.mxu0 0.0
        %2841 = vmatpush1.msra.mxu0 0.0
        %2842 = vmatprep.subr.mxu0 0.0
        %2843 = vmatpush1.msra.mxu0 0.0
        %2844 = vmatprep.subr.mxu0 0.0
        %2845 = vmatpush1.msra.mxu0 0.0
        %2846 = vmatprep.subr.mxu0 0.0
        %2847 = vmatpush1.msra.mxu0 0.0
        %2848 = vmatprep.subr.mxu0 0.0
        %2849 = vmatpush1.msra.mxu0 0.0
        %2850 = vmatprep.subr.mxu0 0.0
        %2851 = vmatpush1.msra.mxu0 0.0
        %2852 = vmatprep.subr.mxu0 0.0
        %2853 = vmatpush1.msra.mxu0 0.0
        %2854 = vmatprep.subr.mxu0 0.0
        %2855 = vmatpush1.msra.mxu0 0.0
        %2856 = vmatprep.subr.mxu0 0.0
        %2857 = vmatpush1.msra.mxu0 0.0
        %2858 = vmatprep.mubr.f32.mxu0 0.0
        %2859 = vmatmul.mubr.f32.gmra.mrb[0].mxu0 %v2792
        %v2860 = vpop.f32.mrb[0].mxu0
        %v2861 = vadd.f32 0.0, %v2860
        %v2862 = vpop.f32.mrb[0].mxu0
        %v2863 = vadd.f32 0.0, %v2862
        %2864 = vdwg.mxu0
        %v2866 = vsel %vm632, %v2788, 0
        %2868 = vmatprep.subr.mxu0 %v841
        %2869 = vmatpush1.msra.mxu0 %v839
        %2870 = vmatprep.subr.mxu0 0.0
        %2871 = vmatpush1.msra.mxu0 0.0
        %2872 = vmatprep.subr.mxu0 0.0
        %2873 = vmatpush1.msra.mxu0 0.0
        %2874 = vmatprep.subr.mxu0 0.0
        %2875 = vmatpush1.msra.mxu0 0.0
        %2876 = vmatprep.subr.mxu0 0.0
        %2877 = vmatpush1.msra.mxu0 0.0
        %2878 = vmatprep.subr.mxu0 0.0
        %2879 = vmatpush1.msra.mxu0 0.0
        %2880 = vmatprep.subr.mxu0 0.0
        %2881 = vmatpush1.msra.mxu0 0.0
        %2882 = vmatprep.subr.mxu0 0.0
        %2883 = vmatpush1.msra.mxu0 0.0
        %2884 = vmatprep.subr.mxu0 0.0
        %2885 = vmatpush1.msra.mxu0 0.0
        %2886 = vmatprep.subr.mxu0 0.0
        %2887 = vmatpush1.msra.mxu0 0.0
        %2888 = vmatprep.subr.mxu0 0.0
        %2889 = vmatpush1.msra.mxu0 0.0
        %2890 = vmatprep.subr.mxu0 0.0
        %2891 = vmatpush1.msra.mxu0 0.0
        %2892 = vmatprep.subr.mxu0 0.0
        %2893 = vmatpush1.msra.mxu0 0.0
        %2894 = vmatprep.subr.mxu0 0.0
        %2895 = vmatpush1.msra.mxu0 0.0
        %2896 = vmatprep.subr.mxu0 0.0
        %2897 = vmatpush1.msra.mxu0 0.0
        %2898 = vmatprep.subr.mxu0 0.0
        %2899 = vmatpush1.msra.mxu0 0.0
        %2900 = vmatprep.subr.mxu0 0.0
        %2901 = vmatpush1.msra.mxu0 0.0
        %2902 = vmatprep.subr.mxu0 0.0
        %2903 = vmatpush1.msra.mxu0 0.0
        %2904 = vmatprep.subr.mxu0 0.0
        %2905 = vmatpush1.msra.mxu0 0.0
        %2906 = vmatprep.subr.mxu0 0.0
        %2907 = vmatpush1.msra.mxu0 0.0
        %2908 = vmatprep.subr.mxu0 0.0
        %2909 = vmatpush1.msra.mxu0 0.0
        %2910 = vmatprep.subr.mxu0 0.0
        %2911 = vmatpush1.msra.mxu0 0.0
        %2912 = vmatprep.subr.mxu0 0.0
        %2913 = vmatpush1.msra.mxu0 0.0
        %2914 = vmatprep.subr.mxu0 0.0
        %2915 = vmatpush1.msra.mxu0 0.0
        %2916 = vmatprep.subr.mxu0 0.0
        %2917 = vmatpush1.msra.mxu0 0.0
        %2918 = vmatprep.subr.mxu0 0.0
        %2919 = vmatpush1.msra.mxu0 0.0
        %2920 = vmatprep.subr.mxu0 0.0
        %2921 = vmatpush1.msra.mxu0 0.0
        %2922 = vmatprep.subr.mxu0 0.0
        %2923 = vmatpush1.msra.mxu0 0.0
        %2924 = vmatprep.subr.mxu0 0.0
        %2925 = vmatpush1.msra.mxu0 0.0
        %2926 = vmatprep.subr.mxu0 0.0
        %2927 = vmatpush1.msra.mxu0 0.0
        %2928 = vmatprep.subr.mxu0 0.0
        %2929 = vmatpush1.msra.mxu0 0.0
        %2930 = vmatprep.subr.mxu0 0.0
        %2931 = vmatpush1.msra.mxu0 0.0
        %2932 = vmatprep.mubr.f32.mxu0 0.0
        %2933 = vmatmul.mubr.f32.gmra.mrb[0].mxu0 %v2866
        %v2934 = vpop.f32.mrb[0].mxu0
        %v2935 = vadd.f32 %v2861, %v2934
        %v2936 = vpop.f32.mrb[0].mxu0
        %v2937 = vadd.f32 %v2863, %v2936
        %2938 = vdwg.mxu0
        %s2939 = scalar_lea.vmem [#allocation6], 3584
        %v2940 = vld [vmem:[%s2939] sm:$0xff]
        %v2941 = vld [vmem:[%s2939 + $0x8] sm:$0xff]
        %v2942 = vld [vmem:[%s2939 + $0x10] sm:$0xff]
        %v2943 = vld [vmem:[%s2939 + $0x18] sm:$0xff]
        %v2944 = vld [vmem:[%s2939 + $0x20] sm:$0xff]
        %v2945 = vld [vmem:[%s2939 + $0x28] sm:$0xff]
        %v2946 = vld [vmem:[%s2939 + $0x30] sm:$0xff]
        %v2947 = vld [vmem:[%s2939 + $0x38] sm:$0xff]
        %v2948 = vld [vmem:[%s2939 + $0x40] sm:$0xff]
        %v2949 = vld [vmem:[%s2939 + $0x48] sm:$0xff]
        %v2950 = vld [vmem:[%s2939 + $0x50] sm:$0xff]
        %v2951 = vld [vmem:[%s2939 + $0x58] sm:$0xff]
        %v2952 = vld [vmem:[%s2939 + $0x60] sm:$0xff]
        %v2953 = vld [vmem:[%s2939 + $0x68] sm:$0xff]
        %v2954 = vld [vmem:[%s2939 + $0x70] sm:$0xff]
        %v2955 = vld [vmem:[%s2939 + $0x78] sm:$0xff]
        %v2956 = vld [vmem:[%s2939 + $0x80] sm:$0xff]
        %v2957 = vld [vmem:[%s2939 + $0x88] sm:$0xff]
        %v2958 = vld [vmem:[%s2939 + $0x90] sm:$0xff]
        %v2959 = vld [vmem:[%s2939 + $0x98] sm:$0xff]
        %v2960 = vld [vmem:[%s2939 + $0xa0] sm:$0xff]
        %v2961 = vld [vmem:[%s2939 + $0xa8] sm:$0xff]
        %v2962 = vld [vmem:[%s2939 + $0xb0] sm:$0xff]
        %v2963 = vld [vmem:[%s2939 + $0xb8] sm:$0xff]
        %v2964 = vld [vmem:[%s2939 + $0xc0] sm:$0xff]
        %v2965 = vld [vmem:[%s2939 + $0xc8] sm:$0xff]
        %v2966 = vld [vmem:[%s2939 + $0xd0] sm:$0xff]
        %v2967 = vld [vmem:[%s2939 + $0xd8] sm:$0xff]
        %v2968 = vld [vmem:[%s2939 + $0xe0] sm:$0xff]
        %v2969 = vld [vmem:[%s2939 + $0xe8] sm:$0xff]
        %v2970 = vld [vmem:[%s2939 + $0xf0] sm:$0xff]
        %v2971 = vld [vmem:[%s2939 + $0xf8] sm:$0xff]
        %v2972 = vld [vmem:[%s2939 + $0x100] sm:$0xff]
        %v2973 = vld [vmem:[%s2939 + $0x108] sm:$0xff]
        %v2974 = vld [vmem:[%s2939 + $0x110] sm:$0xff]
        %v2975 = vld [vmem:[%s2939 + $0x118] sm:$0xff]
        %v2976 = vld [vmem:[%s2939 + $0x120] sm:$0xff]
        %v2977 = vld [vmem:[%s2939 + $0x128] sm:$0xff]
        %v2978 = vld [vmem:[%s2939 + $0x130] sm:$0xff]
        %v2979 = vld [vmem:[%s2939 + $0x138] sm:$0xff]
        %v2980 = vld [vmem:[%s2939 + $0x140] sm:$0xff]
        %v2981 = vld [vmem:[%s2939 + $0x148] sm:$0xff]
        %v2982 = vld [vmem:[%s2939 + $0x150] sm:$0xff]
        %v2983 = vld [vmem:[%s2939 + $0x158] sm:$0xff]
        %v2984 = vld [vmem:[%s2939 + $0x160] sm:$0xff]
        %v2985 = vld [vmem:[%s2939 + $0x168] sm:$0xff]
        %v2986 = vld [vmem:[%s2939 + $0x170] sm:$0xff]
        %v2987 = vld [vmem:[%s2939 + $0x178] sm:$0xff]
        %v2988 = vld [vmem:[%s2939 + $0x180] sm:$0xff]
        %v2989 = vld [vmem:[%s2939 + $0x188] sm:$0xff]
        %v2990 = vld [vmem:[%s2939 + $0x190] sm:$0xff]
        %v2991 = vld [vmem:[%s2939 + $0x198] sm:$0xff]
        %v2992 = vld [vmem:[%s2939 + $0x1a0] sm:$0xff]
        %v2993 = vld [vmem:[%s2939 + $0x1a8] sm:$0xff]
        %v2994 = vld [vmem:[%s2939 + $0x1b0] sm:$0xff]
        %v2995 = vld [vmem:[%s2939 + $0x1b8] sm:$0xff]
        %v2996 = vld [vmem:[%s2939 + $0x1c0] sm:$0xff]
        %v2997 = vld [vmem:[%s2939 + $0x1c8] sm:$0xff]
        %v2998 = vld [vmem:[%s2939 + $0x1d0] sm:$0xff]
        %v2999 = vld [vmem:[%s2939 + $0x1d8] sm:$0xff]
        %v3000 = vld [vmem:[%s2939 + $0x1e0] sm:$0xff]
        %v3001 = vld [vmem:[%s2939 + $0x1e8] sm:$0xff]
        %v3002 = vld [vmem:[%s2939 + $0x1f0] sm:$0xff]
        %v3003 = vld [vmem:[%s2939 + $0x1f8] sm:$0xff]
        %3004 = vmatprep.subr.mxu0 %v2941
        %3005 = vmatpush1.msra.mxu0 %v2940
        %3006 = vmatprep.subr.mxu0 %v2943
        %3007 = vmatpush1.msra.mxu0 %v2942
        %3008 = vmatprep.subr.mxu0 %v2945
        %3009 = vmatpush1.msra.mxu0 %v2944
        %3010 = vmatprep.subr.mxu0 %v2947
        %3011 = vmatpush1.msra.mxu0 %v2946
        %3012 = vmatprep.subr.mxu0 %v2949
        %3013 = vmatpush1.msra.mxu0 %v2948
        %3014 = vmatprep.subr.mxu0 %v2951
        %3015 = vmatpush1.msra.mxu0 %v2950
        %3016 = vmatprep.subr.mxu0 %v2953
        %3017 = vmatpush1.msra.mxu0 %v2952
        %3018 = vmatprep.subr.mxu0 %v2955
        %3019 = vmatpush1.msra.mxu0 %v2954
        %3020 = vmatprep.subr.mxu0 %v2957
        %3021 = vmatpush1.msra.mxu0 %v2956
        %3022 = vmatprep.subr.mxu0 %v2959
        %3023 = vmatpush1.msra.mxu0 %v2958
        %3024 = vmatprep.subr.mxu0 %v2961
        %3025 = vmatpush1.msra.mxu0 %v2960
        %3026 = vmatprep.subr.mxu0 %v2963
        %3027 = vmatpush1.msra.mxu0 %v2962
        %3028 = vmatprep.subr.mxu0 %v2965
        %3029 = vmatpush1.msra.mxu0 %v2964
        %3030 = vmatprep.subr.mxu0 %v2967
        %3031 = vmatpush1.msra.mxu0 %v2966
        %3032 = vmatprep.subr.mxu0 %v2969
        %3033 = vmatpush1.msra.mxu0 %v2968
        %3034 = vmatprep.subr.mxu0 %v2971
        %3035 = vmatpush1.msra.mxu0 %v2970
        %3036 = vmatprep.subr.mxu0 %v2973
        %3037 = vmatpush1.msra.mxu0 %v2972
        %3038 = vmatprep.subr.mxu0 %v2975
        %3039 = vmatpush1.msra.mxu0 %v2974
        %3040 = vmatprep.subr.mxu0 %v2977
        %3041 = vmatpush1.msra.mxu0 %v2976
        %3042 = vmatprep.subr.mxu0 %v2979
        %3043 = vmatpush1.msra.mxu0 %v2978
        %3044 = vmatprep.subr.mxu0 %v2981
        %3045 = vmatpush1.msra.mxu0 %v2980
        %3046 = vmatprep.subr.mxu0 %v2983
        %3047 = vmatpush1.msra.mxu0 %v2982
        %3048 = vmatprep.subr.mxu0 %v2985
        %3049 = vmatpush1.msra.mxu0 %v2984
        %3050 = vmatprep.subr.mxu0 %v2987
        %3051 = vmatpush1.msra.mxu0 %v2986
        %3052 = vmatprep.subr.mxu0 %v2989
        %3053 = vmatpush1.msra.mxu0 %v2988
        %3054 = vmatprep.subr.mxu0 %v2991
        %3055 = vmatpush1.msra.mxu0 %v2990
        %3056 = vmatprep.subr.mxu0 %v2993
        %3057 = vmatpush1.msra.mxu0 %v2992
        %3058 = vmatprep.subr.mxu0 %v2995
        %3059 = vmatpush1.msra.mxu0 %v2994
        %3060 = vmatprep.subr.mxu0 %v2997
        %3061 = vmatpush1.msra.mxu0 %v2996
        %3062 = vmatprep.subr.mxu0 %v2999
        %3063 = vmatpush1.msra.mxu0 %v2998
        %3064 = vmatprep.subr.mxu0 %v3001
        %3065 = vmatpush1.msra.mxu0 %v3000
        %3066 = vmatprep.subr.mxu0 %v3003
        %3067 = vmatpush1.msra.mxu0 %v3002
        %3068 = vmatprep.mubr.f32.mxu0 %v2937
        %3069 = vmatmul.mubr.f32.gmra.mrb[0].mxu0 %v2935
        %v3070 = vpop.f32.mrb[0].mxu0
        %v3071 = vadd.f32 0.0, %v3070
        %v3072 = vpop.f32.mrb[0].mxu0
        %v3073 = vadd.f32 0.0, %v3072
        %3074 = vdwg.mxu0
        %v3075 = vadd.f32 %v2785, %v3071
        %v3076 = vadd.f32 %v2786, %v3073
        %s3077 = scalar_lea.vmem %s4, 32
        %v3078 = vld [vmem:[%s3077] sm:$0x7]
        %s3079 = scalar_lea.vmem %s5, 32
        %v3080 = vld [vmem:[%s3079] sm:$0x7]
        %v3082 = vsel %vm632, %v3080, 0
        %3084 = vmatprep.subr.mxu0 %v761
        %3085 = vmatpush1.msra.mxu0 %v759
        %3086 = vmatprep.subr.mxu0 0.0
        %3087 = vmatpush1.msra.mxu0 0.0
        %3088 = vmatprep.subr.mxu0 0.0
        %3089 = vmatpush1.msra.mxu0 0.0
        %3090 = vmatprep.subr.mxu0 0.0
        %3091 = vmatpush1.msra.mxu0 0.0
        %3092 = vmatprep.subr.mxu0 0.0
        %3093 = vmatpush1.msra.mxu0 0.0
        %3094 = vmatprep.subr.mxu0 0.0
        %3095 = vmatpush1.msra.mxu0 0.0
        %3096 = vmatprep.subr.mxu0 0.0
        %3097 = vmatpush1.msra.mxu0 0.0
        %3098 = vmatprep.subr.mxu0 0.0
        %3099 = vmatpush1.msra.mxu0 0.0
        %3100 = vmatprep.subr.mxu0 0.0
        %3101 = vmatpush1.msra.mxu0 0.0
        %3102 = vmatprep.subr.mxu0 0.0
        %3103 = vmatpush1.msra.mxu0 0.0
        %3104 = vmatprep.subr.mxu0 0.0
        %3105 = vmatpush1.msra.mxu0 0.0
        %3106 = vmatprep.subr.mxu0 0.0
        %3107 = vmatpush1.msra.mxu0 0.0
        %3108 = vmatprep.subr.mxu0 0.0
        %3109 = vmatpush1.msra.mxu0 0.0
        %3110 = vmatprep.subr.mxu0 0.0
        %3111 = vmatpush1.msra.mxu0 0.0
        %3112 = vmatprep.subr.mxu0 0.0
        %3113 = vmatpush1.msra.mxu0 0.0
        %3114 = vmatprep.subr.mxu0 0.0
        %3115 = vmatpush1.msra.mxu0 0.0
        %3116 = vmatprep.subr.mxu0 0.0
        %3117 = vmatpush1.msra.mxu0 0.0
        %3118 = vmatprep.subr.mxu0 0.0
        %3119 = vmatpush1.msra.mxu0 0.0
        %3120 = vmatprep.subr.mxu0 0.0
        %3121 = vmatpush1.msra.mxu0 0.0
        %3122 = vmatprep.subr.mxu0 0.0
        %3123 = vmatpush1.msra.mxu0 0.0
        %3124 = vmatprep.subr.mxu0 0.0
        %3125 = vmatpush1.msra.mxu0 0.0
        %3126 = vmatprep.subr.mxu0 0.0
        %3127 = vmatpush1.msra.mxu0 0.0
        %3128 = vmatprep.subr.mxu0 0.0
        %3129 = vmatpush1.msra.mxu0 0.0
        %3130 = vmatprep.subr.mxu0 0.0
        %3131 = vmatpush1.msra.mxu0 0.0
        %3132 = vmatprep.subr.mxu0 0.0
        %3133 = vmatpush1.msra.mxu0 0.0
        %3134 = vmatprep.subr.mxu0 0.0
        %3135 = vmatpush1.msra.mxu0 0.0
        %3136 = vmatprep.subr.mxu0 0.0
        %3137 = vmatpush1.msra.mxu0 0.0
        %3138 = vmatprep.subr.mxu0 0.0
        %3139 = vmatpush1.msra.mxu0 0.0
        %3140 = vmatprep.subr.mxu0 0.0
        %3141 = vmatpush1.msra.mxu0 0.0
        %3142 = vmatprep.subr.mxu0 0.0
        %3143 = vmatpush1.msra.mxu0 0.0
        %3144 = vmatprep.subr.mxu0 0.0
        %3145 = vmatpush1.msra.mxu0 0.0
        %3146 = vmatprep.subr.mxu0 0.0
        %3147 = vmatpush1.msra.mxu0 0.0
        %3148 = vmatprep.mubr.f32.mxu0 0.0
        %3149 = vmatmul.mubr.f32.gmra.mrb[0].mxu0 %v3082
        %v3150 = vpop.f32.mrb[0].mxu0
        %v3151 = vadd.f32 0.0, %v3150
        %v3152 = vpop.f32.mrb[0].mxu0
        %v3153 = vadd.f32 0.0, %v3152
        %3154 = vdwg.mxu0
        %v3156 = vsel %vm632, %v3078, 0
        %3158 = vmatprep.subr.mxu0 %v841
        %3159 = vmatpush1.msra.mxu0 %v839
        %3160 = vmatprep.subr.mxu0 0.0
        %3161 = vmatpush1.msra.mxu0 0.0
        %3162 = vmatprep.subr.mxu0 0.0
        %3163 = vmatpush1.msra.mxu0 0.0
        %3164 = vmatprep.subr.mxu0 0.0
        %3165 = vmatpush1.msra.mxu0 0.0
        %3166 = vmatprep.subr.mxu0 0.0
        %3167 = vmatpush1.msra.mxu0 0.0
        %3168 = vmatprep.subr.mxu0 0.0
        %3169 = vmatpush1.msra.mxu0 0.0
        %3170 = vmatprep.subr.mxu0 0.0
        %3171 = vmatpush1.msra.mxu0 0.0
        %3172 = vmatprep.subr.mxu0 0.0
        %3173 = vmatpush1.msra.mxu0 0.0
        %3174 = vmatprep.subr.mxu0 0.0
        %3175 = vmatpush1.msra.mxu0 0.0
        %3176 = vmatprep.subr.mxu0 0.0
        %3177 = vmatpush1.msra.mxu0 0.0
        %3178 = vmatprep.subr.mxu0 0.0
        %3179 = vmatpush1.msra.mxu0 0.0
        %3180 = vmatprep.subr.mxu0 0.0
        %3181 = vmatpush1.msra.mxu0 0.0
        %3182 = vmatprep.subr.mxu0 0.0
        %3183 = vmatpush1.msra.mxu0 0.0
        %3184 = vmatprep.subr.mxu0 0.0
        %3185 = vmatpush1.msra.mxu0 0.0
        %3186 = vmatprep.subr.mxu0 0.0
        %3187 = vmatpush1.msra.mxu0 0.0
        %3188 = vmatprep.subr.mxu0 0.0
        %3189 = vmatpush1.msra.mxu0 0.0
        %3190 = vmatprep.subr.mxu0 0.0
        %3191 = vmatpush1.msra.mxu0 0.0
        %3192 = vmatprep.subr.mxu0 0.0
        %3193 = vmatpush1.msra.mxu0 0.0
        %3194 = vmatprep.subr.mxu0 0.0
        %3195 = vmatpush1.msra.mxu0 0.0
        %3196 = vmatprep.subr.mxu0 0.0
        %3197 = vmatpush1.msra.mxu0 0.0
        %3198 = vmatprep.subr.mxu0 0.0
        %3199 = vmatpush1.msra.mxu0 0.0
        %3200 = vmatprep.subr.mxu0 0.0
        %3201 = vmatpush1.msra.mxu0 0.0
        %3202 = vmatprep.subr.mxu0 0.0
        %3203 = vmatpush1.msra.mxu0 0.0
        %3204 = vmatprep.subr.mxu0 0.0
        %3205 = vmatpush1.msra.mxu0 0.0
        %3206 = vmatprep.subr.mxu0 0.0
        %3207 = vmatpush1.msra.mxu0 0.0
        %3208 = vmatprep.subr.mxu0 0.0
        %3209 = vmatpush1.msra.mxu0 0.0
        %3210 = vmatprep.subr.mxu0 0.0
        %3211 = vmatpush1.msra.mxu0 0.0
        %3212 = vmatprep.subr.mxu0 0.0
        %3213 = vmatpush1.msra.mxu0 0.0
        %3214 = vmatprep.subr.mxu0 0.0
        %3215 = vmatpush1.msra.mxu0 0.0
        %3216 = vmatprep.subr.mxu0 0.0
        %3217 = vmatpush1.msra.mxu0 0.0
        %3218 = vmatprep.subr.mxu0 0.0
        %3219 = vmatpush1.msra.mxu0 0.0
        %3220 = vmatprep.subr.mxu0 0.0
        %3221 = vmatpush1.msra.mxu0 0.0
        %3222 = vmatprep.mubr.f32.mxu0 0.0
        %3223 = vmatmul.mubr.f32.gmra.mrb[0].mxu0 %v3156
        %v3224 = vpop.f32.mrb[0].mxu0
        %v3225 = vadd.f32 %v3151, %v3224
        %v3226 = vpop.f32.mrb[0].mxu0
        %v3227 = vadd.f32 %v3153, %v3226
        %3228 = vdwg.mxu0
        %s3229 = scalar_lea.vmem [#allocation6], 4096
        %v3230 = vld [vmem:[%s3229] sm:$0xff]
        %v3231 = vld [vmem:[%s3229 + $0x8] sm:$0xff]
        %v3232 = vld [vmem:[%s3229 + $0x10] sm:$0xff]
        %v3233 = vld [vmem:[%s3229 + $0x18] sm:$0xff]
        %v3234 = vld [vmem:[%s3229 + $0x20] sm:$0xff]
        %v3235 = vld [vmem:[%s3229 + $0x28] sm:$0xff]
        %v3236 = vld [vmem:[%s3229 + $0x30] sm:$0xff]
        %v3237 = vld [vmem:[%s3229 + $0x38] sm:$0xff]
        %v3238 = vld [vmem:[%s3229 + $0x40] sm:$0xff]
        %v3239 = vld [vmem:[%s3229 + $0x48] sm:$0xff]
        %v3240 = vld [vmem:[%s3229 + $0x50] sm:$0xff]
        %v3241 = vld [vmem:[%s3229 + $0x58] sm:$0xff]
        %v3242 = vld [vmem:[%s3229 + $0x60] sm:$0xff]
        %v3243 = vld [vmem:[%s3229 + $0x68] sm:$0xff]
        %v3244 = vld [vmem:[%s3229 + $0x70] sm:$0xff]
        %v3245 = vld [vmem:[%s3229 + $0x78] sm:$0xff]
        %v3246 = vld [vmem:[%s3229 + $0x80] sm:$0xff]
        %v3247 = vld [vmem:[%s3229 + $0x88] sm:$0xff]
        %v3248 = vld [vmem:[%s3229 + $0x90] sm:$0xff]
        %v3249 = vld [vmem:[%s3229 + $0x98] sm:$0xff]
        %v3250 = vld [vmem:[%s3229 + $0xa0] sm:$0xff]
        %v3251 = vld [vmem:[%s3229 + $0xa8] sm:$0xff]
        %v3252 = vld [vmem:[%s3229 + $0xb0] sm:$0xff]
        %v3253 = vld [vmem:[%s3229 + $0xb8] sm:$0xff]
        %v3254 = vld [vmem:[%s3229 + $0xc0] sm:$0xff]
        %v3255 = vld [vmem:[%s3229 + $0xc8] sm:$0xff]
        %v3256 = vld [vmem:[%s3229 + $0xd0] sm:$0xff]
        %v3257 = vld [vmem:[%s3229 + $0xd8] sm:$0xff]
        %v3258 = vld [vmem:[%s3229 + $0xe0] sm:$0xff]
        %v3259 = vld [vmem:[%s3229 + $0xe8] sm:$0xff]
        %v3260 = vld [vmem:[%s3229 + $0xf0] sm:$0xff]
        %v3261 = vld [vmem:[%s3229 + $0xf8] sm:$0xff]
        %v3262 = vld [vmem:[%s3229 + $0x100] sm:$0xff]
        %v3263 = vld [vmem:[%s3229 + $0x108] sm:$0xff]
        %v3264 = vld [vmem:[%s3229 + $0x110] sm:$0xff]
        %v3265 = vld [vmem:[%s3229 + $0x118] sm:$0xff]
        %v3266 = vld [vmem:[%s3229 + $0x120] sm:$0xff]
        %v3267 = vld [vmem:[%s3229 + $0x128] sm:$0xff]
        %v3268 = vld [vmem:[%s3229 + $0x130] sm:$0xff]
        %v3269 = vld [vmem:[%s3229 + $0x138] sm:$0xff]
        %v3270 = vld [vmem:[%s3229 + $0x140] sm:$0xff]
        %v3271 = vld [vmem:[%s3229 + $0x148] sm:$0xff]
        %v3272 = vld [vmem:[%s3229 + $0x150] sm:$0xff]
        %v3273 = vld [vmem:[%s3229 + $0x158] sm:$0xff]
        %v3274 = vld [vmem:[%s3229 + $0x160] sm:$0xff]
        %v3275 = vld [vmem:[%s3229 + $0x168] sm:$0xff]
        %v3276 = vld [vmem:[%s3229 + $0x170] sm:$0xff]
        %v3277 = vld [vmem:[%s3229 + $0x178] sm:$0xff]
        %v3278 = vld [vmem:[%s3229 + $0x180] sm:$0xff]
        %v3279 = vld [vmem:[%s3229 + $0x188] sm:$0xff]
        %v3280 = vld [vmem:[%s3229 + $0x190] sm:$0xff]
        %v3281 = vld [vmem:[%s3229 + $0x198] sm:$0xff]
        %v3282 = vld [vmem:[%s3229 + $0x1a0] sm:$0xff]
        %v3283 = vld [vmem:[%s3229 + $0x1a8] sm:$0xff]
        %v3284 = vld [vmem:[%s3229 + $0x1b0] sm:$0xff]
        %v3285 = vld [vmem:[%s3229 + $0x1b8] sm:$0xff]
        %v3286 = vld [vmem:[%s3229 + $0x1c0] sm:$0xff]
        %v3287 = vld [vmem:[%s3229 + $0x1c8] sm:$0xff]
        %v3288 = vld [vmem:[%s3229 + $0x1d0] sm:$0xff]
        %v3289 = vld [vmem:[%s3229 + $0x1d8] sm:$0xff]
        %v3290 = vld [vmem:[%s3229 + $0x1e0] sm:$0xff]
        %v3291 = vld [vmem:[%s3229 + $0x1e8] sm:$0xff]
        %v3292 = vld [vmem:[%s3229 + $0x1f0] sm:$0xff]
        %v3293 = vld [vmem:[%s3229 + $0x1f8] sm:$0xff]
        %3294 = vmatprep.subr.mxu0 %v3231
        %3295 = vmatpush1.msra.mxu0 %v3230
        %3296 = vmatprep.subr.mxu0 %v3233
        %3297 = vmatpush1.msra.mxu0 %v3232
        %3298 = vmatprep.subr.mxu0 %v3235
        %3299 = vmatpush1.msra.mxu0 %v3234
        %3300 = vmatprep.subr.mxu0 %v3237
        %3301 = vmatpush1.msra.mxu0 %v3236
        %3302 = vmatprep.subr.mxu0 %v3239
        %3303 = vmatpush1.msra.mxu0 %v3238
        %3304 = vmatprep.subr.mxu0 %v3241
        %3305 = vmatpush1.msra.mxu0 %v3240
        %3306 = vmatprep.subr.mxu0 %v3243
        %3307 = vmatpush1.msra.mxu0 %v3242
        %3308 = vmatprep.subr.mxu0 %v3245
        %3309 = vmatpush1.msra.mxu0 %v3244
        %3310 = vmatprep.subr.mxu0 %v3247
        %3311 = vmatpush1.msra.mxu0 %v3246
        %3312 = vmatprep.subr.mxu0 %v3249
        %3313 = vmatpush1.msra.mxu0 %v3248
        %3314 = vmatprep.subr.mxu0 %v3251
        %3315 = vmatpush1.msra.mxu0 %v3250
        %3316 = vmatprep.subr.mxu0 %v3253
        %3317 = vmatpush1.msra.mxu0 %v3252
        %3318 = vmatprep.subr.mxu0 %v3255
        %3319 = vmatpush1.msra.mxu0 %v3254
        %3320 = vmatprep.subr.mxu0 %v3257
        %3321 = vmatpush1.msra.mxu0 %v3256
        %3322 = vmatprep.subr.mxu0 %v3259
        %3323 = vmatpush1.msra.mxu0 %v3258
        %3324 = vmatprep.subr.mxu0 %v3261
        %3325 = vmatpush1.msra.mxu0 %v3260
        %3326 = vmatprep.subr.mxu0 %v3263
        %3327 = vmatpush1.msra.mxu0 %v3262
        %3328 = vmatprep.subr.mxu0 %v3265
        %3329 = vmatpush1.msra.mxu0 %v3264
        %3330 = vmatprep.subr.mxu0 %v3267
        %3331 = vmatpush1.msra.mxu0 %v3266
        %3332 = vmatprep.subr.mxu0 %v3269
        %3333 = vmatpush1.msra.mxu0 %v3268
        %3334 = vmatprep.subr.mxu0 %v3271
        %3335 = vmatpush1.msra.mxu0 %v3270
        %3336 = vmatprep.subr.mxu0 %v3273
        %3337 = vmatpush1.msra.mxu0 %v3272
        %3338 = vmatprep.subr.mxu0 %v3275
        %3339 = vmatpush1.msra.mxu0 %v3274
        %3340 = vmatprep.subr.mxu0 %v3277
        %3341 = vmatpush1.msra.mxu0 %v3276
        %3342 = vmatprep.subr.mxu0 %v3279
        %3343 = vmatpush1.msra.mxu0 %v3278
        %3344 = vmatprep.subr.mxu0 %v3281
        %3345 = vmatpush1.msra.mxu0 %v3280
        %3346 = vmatprep.subr.mxu0 %v3283
        %3347 = vmatpush1.msra.mxu0 %v3282
        %3348 = vmatprep.subr.mxu0 %v3285
        %3349 = vmatpush1.msra.mxu0 %v3284
        %3350 = vmatprep.subr.mxu0 %v3287
        %3351 = vmatpush1.msra.mxu0 %v3286
        %3352 = vmatprep.subr.mxu0 %v3289
        %3353 = vmatpush1.msra.mxu0 %v3288
        %3354 = vmatprep.subr.mxu0 %v3291
        %3355 = vmatpush1.msra.mxu0 %v3290
        %3356 = vmatprep.subr.mxu0 %v3293
        %3357 = vmatpush1.msra.mxu0 %v3292
        %3358 = vmatprep.mubr.f32.mxu0 %v3227
        %3359 = vmatmul.mubr.f32.gmra.mrb[0].mxu0 %v3225
        %v3360 = vpop.f32.mrb[0].mxu0
        %v3361 = vadd.f32 0.0, %v3360
        %v3362 = vpop.f32.mrb[0].mxu0
        %v3363 = vadd.f32 0.0, %v3362
        %3364 = vdwg.mxu0
        %v3365 = vadd.f32 %v3075, %v3361
        %v3366 = vadd.f32 %v3076, %v3363
        %v3367 = vld [vmem:[%s6] sm:$0x7]
        %3369 = vset.pattern.permute.xlu0 0
        %3370 = vperm.xlu0 %3369, %v3367
        %v3371 = vpop.permute.xlu0 %3370
        %v3373 = vadd.f32 %v3365, %v3371
        %v3374 = vadd.f32 %v3366, %v3371
        %v3375 = vld [vmem:[%s7] sm:$0xff]
        %v3376 = vld [vmem:[%s7 + $0x8] sm:$0xff]
        %v3377 = vld [vmem:[%s7 + $0x10] sm:$0xff]
        %v3378 = vld [vmem:[%s7 + $0x18] sm:$0xff]
        %v3379 = vld [vmem:[%s7 + $0x20] sm:$0xff]
        %v3380 = vld [vmem:[%s7 + $0x28] sm:$0xff]
        %v3381 = vld [vmem:[%s7 + $0x30] sm:$0xff]
        %v3382 = vld [vmem:[%s7 + $0x38] sm:$0xff]
        %v3383 = vld [vmem:[%s8] sm:$0xff]
        %v3384 = vld [vmem:[%s8 + $0x8] sm:$0xff]
        %v3385 = vld [vmem:[%s8 + $0x10] sm:$0xff]
        %v3386 = vld [vmem:[%s8 + $0x18] sm:$0xff]
        %v3387 = vld [vmem:[%s8 + $0x20] sm:$0xff]
        %v3388 = vld [vmem:[%s8 + $0x28] sm:$0xff]
        %v3389 = vld [vmem:[%s8 + $0x30] sm:$0xff]
        %v3390 = vld [vmem:[%s8 + $0x38] sm:$0xff]
        %3392 = vset.pattern.permute.xlu0 0
        %3393 = vperm.xlu0 %3392, %v3383
        %v3394 = vpop.permute.xlu0 %3393
        %3397 = vset.pattern.permute.xlu0 0
        %3398 = vperm.xlu0 %3397, %v3384
        %v3399 = vpop.permute.xlu0 %3398
        %3402 = vset.pattern.permute.xlu0 0
        %3403 = vperm.xlu0 %3402, %v3385
        %v3404 = vpop.permute.xlu0 %3403
        %3407 = vset.pattern.permute.xlu0 0
        %3408 = vperm.xlu0 %3407, %v3386
        %v3409 = vpop.permute.xlu0 %3408
        %3412 = vset.pattern.permute.xlu0 0
        %3413 = vperm.xlu0 %3412, %v3387
        %v3414 = vpop.permute.xlu0 %3413
        %3417 = vset.pattern.permute.xlu0 0
        %3418 = vperm.xlu0 %3417, %v3388
        %v3419 = vpop.permute.xlu0 %3418
        %3422 = vset.pattern.permute.xlu0 0
        %3423 = vperm.xlu0 %3422, %v3389
        %v3424 = vpop.permute.xlu0 %3423
        %3427 = vset.pattern.permute.xlu0 0
        %3428 = vperm.xlu0 %3427, %v3390
        %v3429 = vpop.permute.xlu0 %3428
        %v3432 = vsel %vm632, %v3375, 0
        %v3435 = vsel %vm632, %v3376, 0
        %v3438 = vsel %vm632, %v3377, 0
        %v3441 = vsel %vm632, %v3378, 0
        %v3444 = vsel %vm632, %v3379, 0
        %v3447 = vsel %vm632, %v3380, 0
        %v3450 = vsel %vm632, %v3381, 0
        %v3453 = vsel %vm632, %v3382, 0
        %v3456 = vsel %vm636, %v3373, 0
        %v3459 = vsel %vm636, %v3374, 0
        %3461 = vmatprep.subr.mxu0 %v3459
        %3462 = vmatpush1.msra.mxu0 %v3456
        %3463 = vmatprep.subr.mxu0 0.0
        %3464 = vmatpush1.msra.mxu0 0.0
        %3465 = vmatprep.subr.mxu0 0.0
        %3466 = vmatpush1.msra.mxu0 0.0
        %3467 = vmatprep.subr.mxu0 0.0
        %3468 = vmatpush1.msra.mxu0 0.0
        %3469 = vmatprep.subr.mxu0 0.0
        %3470 = vmatpush1.msra.mxu0 0.0
        %3471 = vmatprep.subr.mxu0 0.0
        %3472 = vmatpush1.msra.mxu0 0.0
        %3473 = vmatprep.subr.mxu0 0.0
        %3474 = vmatpush1.msra.mxu0 0.0
        %3475 = vmatprep.subr.mxu0 0.0
        %3476 = vmatpush1.msra.mxu0 0.0
        %3477 = vmatprep.subr.mxu0 0.0
        %3478 = vmatpush1.msra.mxu0 0.0
        %3479 = vmatprep.subr.mxu0 0.0
        %3480 = vmatpush1.msra.mxu0 0.0
        %3481 = vmatprep.subr.mxu0 0.0
        %3482 = vmatpush1.msra.mxu0 0.0
        %3483 = vmatprep.subr.mxu0 0.0
        %3484 = vmatpush1.msra.mxu0 0.0
        %3485 = vmatprep.subr.mxu0 0.0
        %3486 = vmatpush1.msra.mxu0 0.0
        %3487 = vmatprep.subr.mxu0 0.0
        %3488 = vmatpush1.msra.mxu0 0.0
        %3489 = vmatprep.subr.mxu0 0.0
        %3490 = vmatpush1.msra.mxu0 0.0
        %3491 = vmatprep.subr.mxu0 0.0
        %3492 = vmatpush1.msra.mxu0 0.0
        %3493 = vmatprep.subr.mxu0 0.0
        %3494 = vmatpush1.msra.mxu0 0.0
        %3495 = vmatprep.subr.mxu0 0.0
        %3496 = vmatpush1.msra.mxu0 0.0
        %3497 = vmatprep.subr.mxu0 0.0
        %3498 = vmatpush1.msra.mxu0 0.0
        %3499 = vmatprep.subr.mxu0 0.0
        %3500 = vmatpush1.msra.mxu0 0.0
        %3501 = vmatprep.subr.mxu0 0.0
        %3502 = vmatpush1.msra.mxu0 0.0
        %3503 = vmatprep.subr.mxu0 0.0
        %3504 = vmatpush1.msra.mxu0 0.0
        %3505 = vmatprep.subr.mxu0 0.0
        %3506 = vmatpush1.msra.mxu0 0.0
        %3507 = vmatprep.subr.mxu0 0.0
        %3508 = vmatpush1.msra.mxu0 0.0
        %3509 = vmatprep.subr.mxu0 0.0
        %3510 = vmatpush1.msra.mxu0 0.0
        %3511 = vmatprep.subr.mxu0 0.0
        %3512 = vmatpush1.msra.mxu0 0.0
        %3513 = vmatprep.subr.mxu0 0.0
        %3514 = vmatpush1.msra.mxu0 0.0
        %3515 = vmatprep.subr.mxu0 0.0
        %3516 = vmatpush1.msra.mxu0 0.0
        %3517 = vmatprep.subr.mxu0 0.0
        %3518 = vmatpush1.msra.mxu0 0.0
        %3519 = vmatprep.subr.mxu0 0.0
        %3520 = vmatpush1.msra.mxu0 0.0
        %3521 = vmatprep.subr.mxu0 0.0
        %3522 = vmatpush1.msra.mxu0 0.0
        %3523 = vmatprep.subr.mxu0 0.0
        %3524 = vmatpush1.msra.mxu0 0.0
        %3525 = vmatprep.mubr.f32.mxu0 0.0
        %3526 = vmatmul.mubr.f32.gmra.mrb[0].mxu0 %v3432
        %v3527 = vpop.f32.mrb[0].mxu0
        %v3528 = vadd.f32 %v3394, %v3527
        %v3529 = vpop.f32.mrb[0].mxu0
        %v3530 = vadd.f32 %v3394, %v3529
        %3531 = vmatprep.mubr.f32.mxu0 0.0
        %3532 = vmatmul.mubr.f32.gmra.mrb[0].mxu0 %v3435
        %v3533 = vpop.f32.mrb[0].mxu0
        %v3534 = vadd.f32 %v3399, %v3533
        %v3535 = vpop.f32.mrb[0].mxu0
        %v3536 = vadd.f32 %v3399, %v3535
        %3537 = vmatprep.mubr.f32.mxu0 0.0
        %3538 = vmatmul.mubr.f32.gmra.mrb[0].mxu0 %v3438
        %v3539 = vpop.f32.mrb[0].mxu0
        %v3540 = vadd.f32 %v3404, %v3539
        %v3541 = vpop.f32.mrb[0].mxu0
        %v3542 = vadd.f32 %v3404, %v3541
        %3543 = vmatprep.mubr.f32.mxu0 0.0
        %3544 = vmatmul.mubr.f32.gmra.mrb[0].mxu0 %v3441
        %v3545 = vpop.f32.mrb[0].mxu0
        %v3546 = vadd.f32 %v3409, %v3545
        %v3547 = vpop.f32.mrb[0].mxu0
        %v3548 = vadd.f32 %v3409, %v3547
        %3549 = vmatprep.mubr.f32.mxu0 0.0
        %3550 = vmatmul.mubr.f32.gmra.mrb[0].mxu0 %v3444
        %v3551 = vpop.f32.mrb[0].mxu0
        %v3552 = vadd.f32 %v3414, %v3551
        %v3553 = vpop.f32.mrb[0].mxu0
        %v3554 = vadd.f32 %v3414, %v3553
        %3555 = vmatprep.mubr.f32.mxu0 0.0
        %3556 = vmatmul.mubr.f32.gmra.mrb[0].mxu0 %v3447
        %v3557 = vpop.f32.mrb[0].mxu0
        %v3558 = vadd.f32 %v3419, %v3557
        %v3559 = vpop.f32.mrb[0].mxu0
        %v3560 = vadd.f32 %v3419, %v3559
        %3561 = vmatprep.mubr.f32.mxu0 0.0
        %3562 = vmatmul.mubr.f32.gmra.mrb[0].mxu0 %v3450
        %v3563 = vpop.f32.mrb[0].mxu0
        %v3564 = vadd.f32 %v3424, %v3563
        %v3565 = vpop.f32.mrb[0].mxu0
        %v3566 = vadd.f32 %v3424, %v3565
        %3567 = vmatprep.mubr.f32.mxu0 0.0
        %3568 = vmatmul.mubr.f32.gmra.mrb[0].mxu0 %v3453
        %v3569 = vpop.f32.mrb[0].mxu0
        %v3570 = vadd.f32 %v3429, %v3569
        %v3571 = vpop.f32.mrb[0].mxu0
        %v3572 = vadd.f32 %v3429, %v3571
        %3573 = vdwg.mxu0
        %v3574 = vmax.f32 %v3528, 0.0
        %v3575 = vmax.f32 %v3530, 0.0
        %v3576 = vmax.f32 %v3534, 0.0
        %v3577 = vmax.f32 %v3536, 0.0
        %v3578 = vmax.f32 %v3540, 0.0
        %v3579 = vmax.f32 %v3542, 0.0
        %v3580 = vmax.f32 %v3546, 0.0
        %v3581 = vmax.f32 %v3548, 0.0
        %v3582 = vmax.f32 %v3552, 0.0
        %v3583 = vmax.f32 %v3554, 0.0
        %v3584 = vmax.f32 %v3558, 0.0
        %v3585 = vmax.f32 %v3560, 0.0
        %v3586 = vmax.f32 %v3564, 0.0
        %v3587 = vmax.f32 %v3566, 0.0
        %v3588 = vmax.f32 %v3570, 0.0
        %v3589 = vmax.f32 %v3572, 0.0
        %v3590 = vadd.f32 %v3574, %v3575
        %3591 = vadd.xlane.f32.xlu0 %v3590
        %v3592 = vpop.xlane.xlu0 %3591
        %v3593 = vadd.f32 %v3576, %v3577
        %3594 = vadd.xlane.f32.xlu0 %v3593
        %v3595 = vpop.xlane.xlu0 %3594
        %v3596 = vadd.f32 %v3578, %v3579
        %3597 = vadd.xlane.f32.xlu0 %v3596
        %v3598 = vpop.xlane.xlu0 %3597
        %v3599 = vadd.f32 %v3580, %v3581
        %3600 = vadd.xlane.f32.xlu0 %v3599
        %v3601 = vpop.xlane.xlu0 %3600
        %v3602 = vadd.f32 %v3582, %v3583
        %3603 = vadd.xlane.f32.xlu0 %v3602
        %v3604 = vpop.xlane.xlu0 %3603
        %v3605 = vadd.f32 %v3584, %v3585
        %3606 = vadd.xlane.f32.xlu0 %v3605
        %v3607 = vpop.xlane.xlu0 %3606
        %v3608 = vadd.f32 %v3586, %v3587
        %3609 = vadd.xlane.f32.xlu0 %v3608
        %v3610 = vpop.xlane.xlu0 %3609
        %v3611 = vadd.f32 %v3588, %v3589
        %3612 = vadd.xlane.f32.xlu0 %v3611
        %v3613 = vpop.xlane.xlu0 %3612
        %v3614 = vrcp.pop 256.0
        %v3615 = vmul.f32 %v3592, %v3614
        %v3616 = vmul.f32 %v3595, %v3614
        %v3617 = vmul.f32 %v3598, %v3614
        %v3618 = vmul.f32 %v3601, %v3614
        %v3619 = vmul.f32 %v3604, %v3614
        %v3620 = vmul.f32 %v3607, %v3614
        %v3621 = vmul.f32 %v3610, %v3614
        %v3622 = vmul.f32 %v3613, %v3614
        %v3623 = vld [vmem:[#allocation8] sm:$0xf]
        %v3624 = vld [vmem:[%s10] sm:$0xf]
        %vm3625 = vcmask 523264
        %v3627 = vsel %vm3625, %v3623, 0
        %3629 = vmatprep.subr.mxu0 0.0
        %3630 = vmatpush1.msra.mxu0 %v3615
        %3631 = vmatprep.subr.mxu0 0.0
        %3632 = vmatpush1.msra.mxu0 %v3616
        %3633 = vmatprep.subr.mxu0 0.0
        %3634 = vmatpush1.msra.mxu0 %v3617
        %3635 = vmatprep.subr.mxu0 0.0
        %3636 = vmatpush1.msra.mxu0 %v3618
        %3637 = vmatprep.subr.mxu0 0.0
        %3638 = vmatpush1.msra.mxu0 %v3619
        %3639 = vmatprep.subr.mxu0 0.0
        %3640 = vmatpush1.msra.mxu0 %v3620
        %3641 = vmatprep.subr.mxu0 0.0
        %3642 = vmatpush1.msra.mxu0 %v3621
        %3643 = vmatprep.subr.mxu0 0.0
        %3644 = vmatpush1.msra.mxu0 %v3622
        %3645 = vmatprep.subr.mxu0 0.0
        %3646 = vmatpush1.msra.mxu0 0.0
        %3647 = vmatprep.subr.mxu0 0.0
        %3648 = vmatpush1.msra.mxu0 0.0
        %3649 = vmatprep.subr.mxu0 0.0
        %3650 = vmatpush1.msra.mxu0 0.0
        %3651 = vmatprep.subr.mxu0 0.0
        %3652 = vmatpush1.msra.mxu0 0.0
        %3653 = vmatprep.subr.mxu0 0.0
        %3654 = vmatpush1.msra.mxu0 0.0
        %3655 = vmatprep.subr.mxu0 0.0
        %3656 = vmatpush1.msra.mxu0 0.0
        %3657 = vmatprep.subr.mxu0 0.0
        %3658 = vmatpush1.msra.mxu0 0.0
        %3659 = vmatprep.subr.mxu0 0.0
        %3660 = vmatpush1.msra.mxu0 0.0
        %3661 = vmatprep.subr.mxu0 0.0
        %3662 = vmatpush1.msra.mxu0 0.0
        %3663 = vmatprep.subr.mxu0 0.0
        %3664 = vmatpush1.msra.mxu0 0.0
        %3665 = vmatprep.subr.mxu0 0.0
        %3666 = vmatpush1.msra.mxu0 0.0
        %3667 = vmatprep.subr.mxu0 0.0
        %3668 = vmatpush1.msra.mxu0 0.0
        %3669 = vmatprep.subr.mxu0 0.0
        %3670 = vmatpush1.msra.mxu0 0.0
        %3671 = vmatprep.subr.mxu0 0.0
        %3672 = vmatpush1.msra.mxu0 0.0
        %3673 = vmatprep.subr.mxu0 0.0
        %3674 = vmatpush1.msra.mxu0 0.0
        %3675 = vmatprep.subr.mxu0 0.0
        %3676 = vmatpush1.msra.mxu0 0.0
        %3677 = vmatprep.subr.mxu0 0.0
        %3678 = vmatpush1.msra.mxu0 0.0
        %3679 = vmatprep.subr.mxu0 0.0
        %3680 = vmatpush1.msra.mxu0 0.0
        %3681 = vmatprep.subr.mxu0 0.0
        %3682 = vmatpush1.msra.mxu0 0.0
        %3683 = vmatprep.subr.mxu0 0.0
        %3684 = vmatpush1.msra.mxu0 0.0
        %3685 = vmatprep.subr.mxu0 0.0
        %3686 = vmatpush1.msra.mxu0 0.0
        %3687 = vmatprep.subr.mxu0 0.0
        %3688 = vmatpush1.msra.mxu0 0.0
        %3689 = vmatprep.subr.mxu0 0.0
        %3690 = vmatpush1.msra.mxu0 0.0
        %3691 = vmatprep.subr.mxu0 0.0
        %3692 = vmatpush1.msra.mxu0 0.0
        %3693 = vmatprep.mubr.f32.mxu0 0.0
        %3694 = vmatmul.mubr.f32.gmra.mrb[0].mxu0 %v3627
        %v3695 = vpop.f32.mrb[0].mxu0
        %v3696 = vadd.f32 %v3624, %v3695
        %v3697 = vpop.f32.mrb[0].mxu0
        %3698 = vdwg.mxu0
        %v3699 = vmax.f32 %v3696, 0.0
        %v3700 = vld [vmem:[%s11] sm:$0xff]
        %v3701 = vld [vmem:[%s11 + $0x8] sm:$0xff]
        %v3702 = vld [vmem:[%s11 + $0x10] sm:$0xff]
        %v3703 = vld [vmem:[%s11 + $0x18] sm:$0xff]
        %v3704 = vld [vmem:[%s11 + $0x20] sm:$0xff]
        %v3705 = vld [vmem:[%s11 + $0x28] sm:$0xff]
        %v3706 = vld [vmem:[%s11 + $0x30] sm:$0xff]
        %v3707 = vld [vmem:[%s11 + $0x38] sm:$0xff]
        %v3708 = vld [vmem:[%s12] sm:$0xff]
        %v3709 = vld [vmem:[%s12 + $0x8] sm:$0xff]
        %v3710 = vld [vmem:[%s12 + $0x10] sm:$0xff]
        %v3711 = vld [vmem:[%s12 + $0x18] sm:$0xff]
        %v3712 = vld [vmem:[%s12 + $0x20] sm:$0xff]
        %v3713 = vld [vmem:[%s12 + $0x28] sm:$0xff]
        %v3714 = vld [vmem:[%s12 + $0x30] sm:$0xff]
        %v3715 = vld [vmem:[%s12 + $0x38] sm:$0xff]
        %vm3716 = vcmask 31744
        %v3718 = vsel %vm3716, %v3700, 0
        %v3721 = vsel %vm3716, %v3701, 0
        %v3724 = vsel %vm3716, %v3702, 0
        %v3727 = vsel %vm3716, %v3703, 0
        %v3730 = vsel %vm3716, %v3704, 0
        %v3733 = vsel %vm3716, %v3705, 0
        %v3736 = vsel %vm3716, %v3706, 0
        %v3739 = vsel %vm3716, %v3707, 0
        %vm3741 = vcmask 1043456
        %v3743 = vsel %vm3741, %v3699, 0
        %3745 = vmatprep.subr.mxu0 0.0
        %3746 = vmatpush1.msra.mxu0 %v3743
        %3747 = vmatprep.subr.mxu0 0.0
        %3748 = vmatpush1.msra.mxu0 0.0
        %3749 = vmatprep.subr.mxu0 0.0
        %3750 = vmatpush1.msra.mxu0 0.0
        %3751 = vmatprep.subr.mxu0 0.0
        %3752 = vmatpush1.msra.mxu0 0.0
        %3753 = vmatprep.subr.mxu0 0.0
        %3754 = vmatpush1.msra.mxu0 0.0
        %3755 = vmatprep.subr.mxu0 0.0
        %3756 = vmatpush1.msra.mxu0 0.0
        %3757 = vmatprep.subr.mxu0 0.0
        %3758 = vmatpush1.msra.mxu0 0.0
        %3759 = vmatprep.subr.mxu0 0.0
        %3760 = vmatpush1.msra.mxu0 0.0
        %3761 = vmatprep.subr.mxu0 0.0
        %3762 = vmatpush1.msra.mxu0 0.0
        %3763 = vmatprep.subr.mxu0 0.0
        %3764 = vmatpush1.msra.mxu0 0.0
        %3765 = vmatprep.subr.mxu0 0.0
        %3766 = vmatpush1.msra.mxu0 0.0
        %3767 = vmatprep.subr.mxu0 0.0
        %3768 = vmatpush1.msra.mxu0 0.0
        %3769 = vmatprep.subr.mxu0 0.0
        %3770 = vmatpush1.msra.mxu0 0.0
        %3771 = vmatprep.subr.mxu0 0.0
        %3772 = vmatpush1.msra.mxu0 0.0
        %3773 = vmatprep.subr.mxu0 0.0
        %3774 = vmatpush1.msra.mxu0 0.0
        %3775 = vmatprep.subr.mxu0 0.0
        %3776 = vmatpush1.msra.mxu0 0.0
        %3777 = vmatprep.subr.mxu0 0.0
        %3778 = vmatpush1.msra.mxu0 0.0
        %3779 = vmatprep.subr.mxu0 0.0
        %3780 = vmatpush1.msra.mxu0 0.0
        %3781 = vmatprep.subr.mxu0 0.0
        %3782 = vmatpush1.msra.mxu0 0.0
        %3783 = vmatprep.subr.mxu0 0.0
        %3784 = vmatpush1.msra.mxu0 0.0
        %3785 = vmatprep.subr.mxu0 0.0
        %3786 = vmatpush1.msra.mxu0 0.0
        %3787 = vmatprep.subr.mxu0 0.0
        %3788 = vmatpush1.msra.mxu0 0.0
        %3789 = vmatprep.subr.mxu0 0.0
        %3790 = vmatpush1.msra.mxu0 0.0
        %3791 = vmatprep.subr.mxu0 0.0
        %3792 = vmatpush1.msra.mxu0 0.0
        %3793 = vmatprep.subr.mxu0 0.0
        %3794 = vmatpush1.msra.mxu0 0.0
        %3795 = vmatprep.subr.mxu0 0.0
        %3796 = vmatpush1.msra.mxu0 0.0
        %3797 = vmatprep.subr.mxu0 0.0
        %3798 = vmatpush1.msra.mxu0 0.0
        %3799 = vmatprep.subr.mxu0 0.0
        %3800 = vmatpush1.msra.mxu0 0.0
        %3801 = vmatprep.subr.mxu0 0.0
        %3802 = vmatpush1.msra.mxu0 0.0
        %3803 = vmatprep.subr.mxu0 0.0
        %3804 = vmatpush1.msra.mxu0 0.0
        %3805 = vmatprep.subr.mxu0 0.0
        %3806 = vmatpush1.msra.mxu0 0.0
        %3807 = vmatprep.subr.mxu0 0.0
        %3808 = vmatpush1.msra.mxu0 0.0
        %3809 = vmatprep.mubr.f32.mxu0 0.0
        %3810 = vmatmul.mubr.f32.gmra.mrb[0].mxu0 %v3718
        %v3811 = vpop.f32.mrb[0].mxu0
        %v3812 = vadd.f32 %v3708, %v3811
        %v3813 = vpop.f32.mrb[0].mxu0
        %3814 = vmatprep.mubr.f32.mxu0 0.0
        %3815 = vmatmul.mubr.f32.gmra.mrb[0].mxu0 %v3721
        %v3816 = vpop.f32.mrb[0].mxu0
        %v3817 = vadd.f32 %v3709, %v3816
        %v3818 = vpop.f32.mrb[0].mxu0
        %3819 = vmatprep.mubr.f32.mxu0 0.0
        %3820 = vmatmul.mubr.f32.gmra.mrb[0].mxu0 %v3724
        %v3821 = vpop.f32.mrb[0].mxu0
        %v3822 = vadd.f32 %v3710, %v3821
        %v3823 = vpop.f32.mrb[0].mxu0
        %3824 = vmatprep.mubr.f32.mxu0 0.0
        %3825 = vmatmul.mubr.f32.gmra.mrb[0].mxu0 %v3727
        %v3826 = vpop.f32.mrb[0].mxu0
        %v3827 = vadd.f32 %v3711, %v3826
        %v3828 = vpop.f32.mrb[0].mxu0
        %3829 = vmatprep.mubr.f32.mxu0 0.0
        %3830 = vmatmul.mubr.f32.gmra.mrb[0].mxu0 %v3730
        %v3831 = vpop.f32.mrb[0].mxu0
        %v3832 = vadd.f32 %v3712, %v3831
        %v3833 = vpop.f32.mrb[0].mxu0
        %3834 = vmatprep.mubr.f32.mxu0 0.0
        %3835 = vmatmul.mubr.f32.gmra.mrb[0].mxu0 %v3733
        %v3836 = vpop.f32.mrb[0].mxu0
        %v3837 = vadd.f32 %v3713, %v3836
        %v3838 = vpop.f32.mrb[0].mxu0
        %3839 = vmatprep.mubr.f32.mxu0 0.0
        %3840 = vmatmul.mubr.f32.gmra.mrb[0].mxu0 %v3736
        %v3841 = vpop.f32.mrb[0].mxu0
        %v3842 = vadd.f32 %v3714, %v3841
        %v3843 = vpop.f32.mrb[0].mxu0
        %3844 = vmatprep.mubr.f32.mxu0 0.0
        %3845 = vmatmul.mubr.f32.gmra.mrb[0].mxu0 %v3739
        %v3846 = vpop.f32.mrb[0].mxu0
        %v3847 = vadd.f32 %v3715, %v3846
        %v3848 = vpop.f32.mrb[0].mxu0
        %3849 = vdwg.mxu0
        %v3850 = vxor.u32 %v3812, 2147483648
        %v3851 = vxor.u32 %v3817, 2147483648
        %v3852 = vxor.u32 %v3822, 2147483648
        %v3853 = vxor.u32 %v3827, 2147483648
        %v3854 = vxor.u32 %v3832, 2147483648
        %v3855 = vxor.u32 %v3837, 2147483648
        %v3856 = vxor.u32 %v3842, 2147483648
        %v3857 = vxor.u32 %v3847, 2147483648
        %v3858 = vmul.f32 %v3850, 1.442695
        %v3859 = vpow.pop %v3858
        %v3860 = vmul.f32 %v3851, 1.442695
        %v3861 = vpow.pop %v3860
        %v3862 = vmul.f32 %v3852, 1.442695
        %v3863 = vpow.pop %v3862
        %v3864 = vmul.f32 %v3853, 1.442695
        %v3865 = vpow.pop %v3864
        %v3866 = vmul.f32 %v3854, 1.442695
        %v3867 = vpow.pop %v3866
        %v3868 = vmul.f32 %v3855, 1.442695
        %v3869 = vpow.pop %v3868
        %v3870 = vmul.f32 %v3856, 1.442695
        %v3871 = vpow.pop %v3870
        %v3872 = vmul.f32 %v3857, 1.442695
        %v3873 = vpow.pop %v3872
        %v3874 = vadd.f32 %v3859, 1.0
        %v3875 = vadd.f32 %v3861, 1.0
        %v3876 = vadd.f32 %v3863, 1.0
        %v3877 = vadd.f32 %v3865, 1.0
        %v3878 = vadd.f32 %v3867, 1.0
        %v3879 = vadd.f32 %v3869, 1.0
        %v3880 = vadd.f32 %v3871, 1.0
        %v3881 = vadd.f32 %v3873, 1.0
        %v3882 = vrcp.pop %v3874
        %v3883 = vmul.f32 1.0, %v3882
        %v3884 = vrcp.pop %v3875
        %v3885 = vmul.f32 1.0, %v3884
        %v3886 = vrcp.pop %v3876
        %v3887 = vmul.f32 1.0, %v3886
        %v3888 = vrcp.pop %v3877
        %v3889 = vmul.f32 1.0, %v3888
        %v3890 = vrcp.pop %v3878
        %v3891 = vmul.f32 1.0, %v3890
        %v3892 = vrcp.pop %v3879
        %v3893 = vmul.f32 1.0, %v3892
        %v3894 = vrcp.pop %v3880
        %v3895 = vmul.f32 1.0, %v3894
        %v3896 = vrcp.pop %v3881
        %v3897 = vmul.f32 1.0, %v3896
        %3899 = vset.pattern.permute.xlu0 0
        %3900 = vperm.xlu0 %3899, %v3883
        %v3901 = vpop.permute.xlu0 %3900
        %3904 = vset.pattern.permute.xlu0 0
        %3905 = vperm.xlu0 %3904, %v3885
        %v3906 = vpop.permute.xlu0 %3905
        %3909 = vset.pattern.permute.xlu0 0
        %3910 = vperm.xlu0 %3909, %v3887
        %v3911 = vpop.permute.xlu0 %3910
        %3914 = vset.pattern.permute.xlu0 0
        %3915 = vperm.xlu0 %3914, %v3889
        %v3916 = vpop.permute.xlu0 %3915
        %3919 = vset.pattern.permute.xlu0 0
        %3920 = vperm.xlu0 %3919, %v3891
        %v3921 = vpop.permute.xlu0 %3920
        %3924 = vset.pattern.permute.xlu0 0
        %3925 = vperm.xlu0 %3924, %v3893
        %v3926 = vpop.permute.xlu0 %3925
        %3929 = vset.pattern.permute.xlu0 0
        %3930 = vperm.xlu0 %3929, %v3895
        %v3931 = vpop.permute.xlu0 %3930
        %3934 = vset.pattern.permute.xlu0 0
        %3935 = vperm.xlu0 %3934, %v3897
        %v3936 = vpop.permute.xlu0 %3935
        %v3938 = vmul.f32 %v3574, %v3901
        %v3939 = vmul.f32 %v3575, %v3901
        %v3940 = vmul.f32 %v3576, %v3906
        %v3941 = vmul.f32 %v3577, %v3906
        %v3942 = vmul.f32 %v3578, %v3911
        %v3943 = vmul.f32 %v3579, %v3911
        %v3944 = vmul.f32 %v3580, %v3916
        %v3945 = vmul.f32 %v3581, %v3916
        %v3946 = vmul.f32 %v3582, %v3921
        %v3947 = vmul.f32 %v3583, %v3921
        %v3948 = vmul.f32 %v3584, %v3926
        %v3949 = vmul.f32 %v3585, %v3926
        %v3950 = vmul.f32 %v3586, %v3931
        %v3951 = vmul.f32 %v3587, %v3931
        %v3952 = vmul.f32 %v3588, %v3936
        %v3953 = vmul.f32 %v3589, %v3936
        %v3954 = vmax.f32 %v3938, %v3942
        %v3955 = vmax.f32 %v3940, %v3944
        %v3956 = vmax.f32 %v3954, %v3946
        %v3957 = vmax.f32 %v3955, %v3948
        %v3958 = vmax.f32 %v3956, %v3950
        %v3959 = vmax.f32 %v3957, %v3952
        %v3960 = vmax.f32 %v3958, %v3959
        %v3961 = vrot.slane %v3960, 4
        %v3962 = vmax.f32 %v3960, %v3961
        %v3963 = vrot.slane %v3962, 2
        %v3964 = vmax.f32 %v3962, %v3963
        %v3965 = vrot.slane %v3964, 1
        %v3966 = vmax.f32 %v3964, %v3965
        %v3967 = vmax.f32 %v3939, %v3943
        %v3968 = vmax.f32 %v3941, %v3945
        %v3969 = vmax.f32 %v3967, %v3947
        %v3970 = vmax.f32 %v3968, %v3949
        %v3971 = vmax.f32 %v3969, %v3951
        %v3972 = vmax.f32 %v3970, %v3953
        %v3973 = vmax.f32 %v3971, %v3972
        %v3974 = vrot.slane %v3973, 4
        %v3975 = vmax.f32 %v3973, %v3974
        %v3976 = vrot.slane %v3975, 2
        %v3977 = vmax.f32 %v3975, %v3976
        %v3978 = vrot.slane %v3977, 1
        %v3979 = vmax.f32 %v3977, %v3978
        %v3980 = vadd.f32 %v3938, %v3940
        %v3981 = vadd.f32 %v3980, %v3942
        %v3982 = vadd.f32 %v3981, %v3944
        %v3983 = vadd.f32 %v3982, %v3946
        %v3984 = vadd.f32 %v3983, %v3948
        %v3985 = vadd.f32 %v3984, %v3950
        %v3986 = vadd.f32 %v3985, %v3952
        %v3987 = vrot.slane %v3986, 4
        %v3988 = vadd.f32 %v3986, %v3987
        %v3989 = vrot.slane %v3988, 2
        %v3990 = vadd.f32 %v3988, %v3989
        %v3991 = vrot.slane %v3990, 1
        %v3992 = vadd.f32 %v3990, %v3991
        %v3993 = vadd.f32 %v3939, %v3941
        %v3994 = vadd.f32 %v3993, %v3943
        %v3995 = vadd.f32 %v3994, %v3945
        %v3996 = vadd.f32 %v3995, %v3947
        %v3997 = vadd.f32 %v3996, %v3949
        %v3998 = vadd.f32 %v3997, %v3951
        %v3999 = vadd.f32 %v3998, %v3953
        %v4000 = vrot.slane %v3999, 4
        %v4001 = vadd.f32 %v3999, %v4000
        %v4002 = vrot.slane %v4001, 2
        %v4003 = vadd.f32 %v4001, %v4002
        %v4004 = vrot.slane %v4003, 1
        %v4005 = vadd.f32 %v4003, %v4004
        %v4006 = vrcp.pop 64.0
        %v4007 = vmul.f32 %v3992, %v4006
        %v4008 = vmul.f32 %v4005, %v4006
        %v4009 = vld [vmem:[#allocation9] sm:$0xff]
        %v4010 = vld [vmem:[#allocation9 + $0x8] sm:$0xff]
        %v4011 = vld [vmem:[#allocation9 + $0x10] sm:$0xff]
        %v4012 = vld [vmem:[#allocation9 + $0x18] sm:$0xff]
        %v4013 = vld [vmem:[#allocation9 + $0x20] sm:$0xff]
        %v4014 = vld [vmem:[#allocation9 + $0x28] sm:$0xff]
        %v4015 = vld [vmem:[#allocation9 + $0x30] sm:$0xff]
        %v4016 = vld [vmem:[#allocation9 + $0x38] sm:$0xff]
        %v4017 = vld [vmem:[#allocation9 + $0x40] sm:$0xff]
        %v4018 = vld [vmem:[#allocation9 + $0x48] sm:$0xff]
        %v4019 = vld [vmem:[#allocation9 + $0x50] sm:$0xff]
        %v4020 = vld [vmem:[#allocation9 + $0x58] sm:$0xff]
        %v4021 = vld [vmem:[#allocation9 + $0x60] sm:$0xff]
        %v4022 = vld [vmem:[#allocation9 + $0x68] sm:$0xff]
        %v4023 = vld [vmem:[#allocation9 + $0x70] sm:$0xff]
        %v4024 = vld [vmem:[#allocation9 + $0x78] sm:$0xff]
        %v4025 = vld [vmem:[#allocation9 + $0x80] sm:$0xff]
        %v4026 = vld [vmem:[#allocation9 + $0x88] sm:$0xff]
        %v4027 = vld [vmem:[#allocation9 + $0x90] sm:$0xff]
        %v4028 = vld [vmem:[#allocation9 + $0x98] sm:$0xff]
        %v4029 = vld [vmem:[#allocation9 + $0xa0] sm:$0xff]
        %v4030 = vld [vmem:[#allocation9 + $0xa8] sm:$0xff]
        %v4031 = vld [vmem:[#allocation9 + $0xb0] sm:$0xff]
        %v4032 = vld [vmem:[#allocation9 + $0xb8] sm:$0xff]
        %v4033 = vld [vmem:[#allocation9 + $0xc0] sm:$0xff]
        %v4034 = vld [vmem:[#allocation9 + $0xc8] sm:$0xff]
        %v4035 = vld [vmem:[#allocation9 + $0xd0] sm:$0xff]
        %v4036 = vld [vmem:[#allocation9 + $0xd8] sm:$0xff]
        %v4037 = vld [vmem:[#allocation9 + $0xe0] sm:$0xff]
        %v4038 = vld [vmem:[#allocation9 + $0xe8] sm:$0xff]
        %v4039 = vld [vmem:[#allocation9 + $0xf0] sm:$0xff]
        %v4040 = vld [vmem:[#allocation9 + $0xf8] sm:$0xff]
        %v4041 = vld [vmem:[#allocation9 + $0x100] sm:$0xff]
        %v4042 = vld [vmem:[#allocation9 + $0x108] sm:$0xff]
        %v4043 = vld [vmem:[#allocation9 + $0x110] sm:$0xff]
        %v4044 = vld [vmem:[#allocation9 + $0x118] sm:$0xff]
        %v4045 = vld [vmem:[#allocation9 + $0x120] sm:$0xff]
        %v4046 = vld [vmem:[#allocation9 + $0x128] sm:$0xff]
        %v4047 = vld [vmem:[#allocation9 + $0x130] sm:$0xff]
        %v4048 = vld [vmem:[#allocation9 + $0x138] sm:$0xff]
        %v4049 = vld [vmem:[#allocation9 + $0x140] sm:$0xff]
        %v4050 = vld [vmem:[#allocation9 + $0x148] sm:$0xff]
        %v4051 = vld [vmem:[#allocation9 + $0x150] sm:$0xff]
        %v4052 = vld [vmem:[#allocation9 + $0x158] sm:$0xff]
        %v4053 = vld [vmem:[#allocation9 + $0x160] sm:$0xff]
        %v4054 = vld [vmem:[#allocation9 + $0x168] sm:$0xff]
        %v4055 = vld [vmem:[#allocation9 + $0x170] sm:$0xff]
        %v4056 = vld [vmem:[#allocation9 + $0x178] sm:$0xff]
        %v4057 = vld [vmem:[#allocation9 + $0x180] sm:$0xff]
        %v4058 = vld [vmem:[#allocation9 + $0x188] sm:$0xff]
        %v4059 = vld [vmem:[#allocation9 + $0x190] sm:$0xff]
        %v4060 = vld [vmem:[#allocation9 + $0x198] sm:$0xff]
        %v4061 = vld [vmem:[#allocation9 + $0x1a0] sm:$0xff]
        %v4062 = vld [vmem:[#allocation9 + $0x1a8] sm:$0xff]
        %v4063 = vld [vmem:[#allocation9 + $0x1b0] sm:$0xff]
        %v4064 = vld [vmem:[#allocation9 + $0x1b8] sm:$0xff]
        %v4065 = vld [vmem:[#allocation9 + $0x1c0] sm:$0xff]
        %v4066 = vld [vmem:[#allocation9 + $0x1c8] sm:$0xff]
        %v4067 = vld [vmem:[#allocation9 + $0x1d0] sm:$0xff]
        %v4068 = vld [vmem:[#allocation9 + $0x1d8] sm:$0xff]
        %v4069 = vld [vmem:[#allocation9 + $0x1e0] sm:$0xff]
        %v4070 = vld [vmem:[#allocation9 + $0x1e8] sm:$0xff]
        %v4071 = vld [vmem:[#allocation9 + $0x1f0] sm:$0xff]
        %v4072 = vld [vmem:[#allocation9 + $0x1f8] sm:$0xff]
        %v4073 = vld [vmem:[#allocation9 + $0x200] sm:$0xff]
        %v4074 = vld [vmem:[#allocation9 + $0x208] sm:$0xff]
        %v4075 = vld [vmem:[#allocation9 + $0x210] sm:$0xff]
        %v4076 = vld [vmem:[#allocation9 + $0x218] sm:$0xff]
        %v4077 = vld [vmem:[#allocation9 + $0x220] sm:$0xff]
        %v4078 = vld [vmem:[#allocation9 + $0x228] sm:$0xff]
        %v4079 = vld [vmem:[#allocation9 + $0x230] sm:$0xff]
        %v4080 = vld [vmem:[#allocation9 + $0x238] sm:$0xff]
        %v4081 = vld [vmem:[#allocation9 + $0x240] sm:$0xff]
        %v4082 = vld [vmem:[#allocation9 + $0x248] sm:$0xff]
        %v4083 = vld [vmem:[#allocation9 + $0x250] sm:$0xff]
        %v4084 = vld [vmem:[#allocation9 + $0x258] sm:$0xff]
        %v4085 = vld [vmem:[#allocation9 + $0x260] sm:$0xff]
        %v4086 = vld [vmem:[#allocation9 + $0x268] sm:$0xff]
        %v4087 = vld [vmem:[#allocation9 + $0x270] sm:$0xff]
        %v4088 = vld [vmem:[#allocation9 + $0x278] sm:$0xff]
        %v4089 = vld [vmem:[#allocation9 + $0x280] sm:$0xff]
        %v4090 = vld [vmem:[#allocation9 + $0x288] sm:$0xff]
        %v4091 = vld [vmem:[#allocation9 + $0x290] sm:$0xff]
        %v4092 = vld [vmem:[#allocation9 + $0x298] sm:$0xff]
        %v4093 = vld [vmem:[#allocation9 + $0x2a0] sm:$0xff]
        %v4094 = vld [vmem:[#allocation9 + $0x2a8] sm:$0xff]
        %v4095 = vld [vmem:[#allocation9 + $0x2b0] sm:$0xff]
        %v4096 = vld [vmem:[#allocation9 + $0x2b8] sm:$0xff]
        %v4097 = vld [vmem:[#allocation9 + $0x2c0] sm:$0xff]
        %v4098 = vld [vmem:[#allocation9 + $0x2c8] sm:$0xff]
        %v4099 = vld [vmem:[#allocation9 + $0x2d0] sm:$0xff]
        %v4100 = vld [vmem:[#allocation9 + $0x2d8] sm:$0xff]
        %v4101 = vld [vmem:[#allocation9 + $0x2e0] sm:$0xff]
        %v4102 = vld [vmem:[#allocation9 + $0x2e8] sm:$0xff]
        %v4103 = vld [vmem:[#allocation9 + $0x2f0] sm:$0xff]
        %v4104 = vld [vmem:[#allocation9 + $0x2f8] sm:$0xff]
        %v4105 = vld [vmem:[#allocation9 + $0x300] sm:$0xff]
        %v4106 = vld [vmem:[#allocation9 + $0x308] sm:$0xff]
        %v4107 = vld [vmem:[#allocation9 + $0x310] sm:$0xff]
        %v4108 = vld [vmem:[#allocation9 + $0x318] sm:$0xff]
        %v4109 = vld [vmem:[#allocation9 + $0x320] sm:$0xff]
        %v4110 = vld [vmem:[#allocation9 + $0x328] sm:$0xff]
        %v4111 = vld [vmem:[#allocation9 + $0x330] sm:$0xff]
        %v4112 = vld [vmem:[#allocation9 + $0x338] sm:$0xff]
        %v4113 = vld [vmem:[#allocation9 + $0x340] sm:$0xff]
        %v4114 = vld [vmem:[#allocation9 + $0x348] sm:$0xff]
        %v4115 = vld [vmem:[#allocation9 + $0x350] sm:$0xff]
        %v4116 = vld [vmem:[#allocation9 + $0x358] sm:$0xff]
        %v4117 = vld [vmem:[#allocation9 + $0x360] sm:$0xff]
        %v4118 = vld [vmem:[#allocation9 + $0x368] sm:$0xff]
        %v4119 = vld [vmem:[#allocation9 + $0x370] sm:$0xff]
        %v4120 = vld [vmem:[#allocation9 + $0x378] sm:$0xff]
        %v4121 = vld [vmem:[#allocation9 + $0x380] sm:$0xff]
        %v4122 = vld [vmem:[#allocation9 + $0x388] sm:$0xff]
        %v4123 = vld [vmem:[#allocation9 + $0x390] sm:$0xff]
        %v4124 = vld [vmem:[#allocation9 + $0x398] sm:$0xff]
        %v4125 = vld [vmem:[#allocation9 + $0x3a0] sm:$0xff]
        %v4126 = vld [vmem:[#allocation9 + $0x3a8] sm:$0xff]
        %v4127 = vld [vmem:[#allocation9 + $0x3b0] sm:$0xff]
        %v4128 = vld [vmem:[#allocation9 + $0x3b8] sm:$0xff]
        %v4129 = vld [vmem:[#allocation9 + $0x3c0] sm:$0xff]
        %v4130 = vld [vmem:[#allocation9 + $0x3c8] sm:$0xff]
        %v4131 = vld [vmem:[#allocation9 + $0x3d0] sm:$0xff]
        %v4132 = vld [vmem:[#allocation9 + $0x3d8] sm:$0xff]
        %v4133 = vld [vmem:[#allocation9 + $0x3e0] sm:$0xff]
        %v4134 = vld [vmem:[#allocation9 + $0x3e8] sm:$0xff]
        %v4135 = vld [vmem:[#allocation9 + $0x3f0] sm:$0xff]
        %v4136 = vld [vmem:[#allocation9 + $0x3f8] sm:$0xff]
        %v4137 = vld [vmem:[#allocation3] sm:$0x1]
        %4139 = vset.pattern.permute.xlu0 0
        %4140 = vperm.xlu0 %4139, %v4137
        %v4141 = vpop.permute.xlu0 %4140
        %v4143 = vlaneseq
        %v4144 = vshrl.u32 %v4143, 7
        %v4145 = vsub.s32 0, %v4144
        %v4146 = vrot.slane %v4141, %v4145
        %4147 = vmatprep.subr.mxu0 %v4010
        %4148 = vmatpush1.msra.mxu0 %v4009
        %4149 = vmatprep.subr.mxu0 %v4012
        %4150 = vmatpush1.msra.mxu0 %v4011
        %4151 = vmatprep.subr.mxu0 %v4014
        %4152 = vmatpush1.msra.mxu0 %v4013
        %4153 = vmatprep.subr.mxu0 %v4016
        %4154 = vmatpush1.msra.mxu0 %v4015
        %4155 = vmatprep.subr.mxu0 %v4018
        %4156 = vmatpush1.msra.mxu0 %v4017
        %4157 = vmatprep.subr.mxu0 %v4020
        %4158 = vmatpush1.msra.mxu0 %v4019
        %4159 = vmatprep.subr.mxu0 %v4022
        %4160 = vmatpush1.msra.mxu0 %v4021
        %4161 = vmatprep.subr.mxu0 %v4024
        %4162 = vmatpush1.msra.mxu0 %v4023
        %4163 = vmatprep.subr.mxu0 %v4026
        %4164 = vmatpush1.msra.mxu0 %v4025
        %4165 = vmatprep.subr.mxu0 %v4028
        %4166 = vmatpush1.msra.mxu0 %v4027
        %4167 = vmatprep.subr.mxu0 %v4030
        %4168 = vmatpush1.msra.mxu0 %v4029
        %4169 = vmatprep.subr.mxu0 %v4032
        %4170 = vmatpush1.msra.mxu0 %v4031
        %4171 = vmatprep.subr.mxu0 %v4034
        %4172 = vmatpush1.msra.mxu0 %v4033
        %4173 = vmatprep.subr.mxu0 %v4036
        %4174 = vmatpush1.msra.mxu0 %v4035
        %4175 = vmatprep.subr.mxu0 %v4038
        %4176 = vmatpush1.msra.mxu0 %v4037
        %4177 = vmatprep.subr.mxu0 %v4040
        %4178 = vmatpush1.msra.mxu0 %v4039
        %4179 = vmatprep.subr.mxu0 %v4042
        %4180 = vmatpush1.msra.mxu0 %v4041
        %4181 = vmatprep.subr.mxu0 %v4044
        %4182 = vmatpush1.msra.mxu0 %v4043
        %4183 = vmatprep.subr.mxu0 %v4046
        %4184 = vmatpush1.msra.mxu0 %v4045
        %4185 = vmatprep.subr.mxu0 %v4048
        %4186 = vmatpush1.msra.mxu0 %v4047
        %4187 = vmatprep.subr.mxu0 %v4050
        %4188 = vmatpush1.msra.mxu0 %v4049
        %4189 = vmatprep.subr.mxu0 %v4052
        %4190 = vmatpush1.msra.mxu0 %v4051
        %4191 = vmatprep.subr.mxu0 %v4054
        %4192 = vmatpush1.msra.mxu0 %v4053
        %4193 = vmatprep.subr.mxu0 %v4056
        %4194 = vmatpush1.msra.mxu0 %v4055
        %4195 = vmatprep.subr.mxu0 %v4058
        %4196 = vmatpush1.msra.mxu0 %v4057
        %4197 = vmatprep.subr.mxu0 %v4060
        %4198 = vmatpush1.msra.mxu0 %v4059
        %4199 = vmatprep.subr.mxu0 %v4062
        %4200 = vmatpush1.msra.mxu0 %v4061
        %4201 = vmatprep.subr.mxu0 %v4064
        %4202 = vmatpush1.msra.mxu0 %v4063
        %4203 = vmatprep.subr.mxu0 %v4066
        %4204 = vmatpush1.msra.mxu0 %v4065
        %4205 = vmatprep.subr.mxu0 %v4068
        %4206 = vmatpush1.msra.mxu0 %v4067
        %4207 = vmatprep.subr.mxu0 %v4070
        %4208 = vmatpush1.msra.mxu0 %v4069
        %4209 = vmatprep.subr.mxu0 %v4072
        %4210 = vmatpush1.msra.mxu0 %v4071
        %4211 = vmatprep.mubr.f32.mxu0 %v3979
        %4212 = vmatmul.mubr.f32.gmra.mrb[0].mxu0 %v3966
        %v4213 = vpop.f32.mrb[0].mxu0
        %v4214 = vadd.f32 %v4146, %v4213
        %v4215 = vpop.f32.mrb[0].mxu0
        %v4216 = vadd.f32 %v4146, %v4215
        %4217 = vdwg.mxu0
        %4218 = vmatprep.subr.mxu0 %v4074
        %4219 = vmatpush1.msra.mxu0 %v4073
        %4220 = vmatprep.subr.mxu0 %v4076
        %4221 = vmatpush1.msra.mxu0 %v4075
        %4222 = vmatprep.subr.mxu0 %v4078
        %4223 = vmatpush1.msra.mxu0 %v4077
        %4224 = vmatprep.subr.mxu0 %v4080
        %4225 = vmatpush1.msra.mxu0 %v4079
        %4226 = vmatprep.subr.mxu0 %v4082
        %4227 = vmatpush1.msra.mxu0 %v4081
        %4228 = vmatprep.subr.mxu0 %v4084
        %4229 = vmatpush1.msra.mxu0 %v4083
        %4230 = vmatprep.subr.mxu0 %v4086
        %4231 = vmatpush1.msra.mxu0 %v4085
        %4232 = vmatprep.subr.mxu0 %v4088
        %4233 = vmatpush1.msra.mxu0 %v4087
        %4234 = vmatprep.subr.mxu0 %v4090
        %4235 = vmatpush1.msra.mxu0 %v4089
        %4236 = vmatprep.subr.mxu0 %v4092
        %4237 = vmatpush1.msra.mxu0 %v4091
        %4238 = vmatprep.subr.mxu0 %v4094
        %4239 = vmatpush1.msra.mxu0 %v4093
        %4240 = vmatprep.subr.mxu0 %v4096
        %4241 = vmatpush1.msra.mxu0 %v4095
        %4242 = vmatprep.subr.mxu0 %v4098
        %4243 = vmatpush1.msra.mxu0 %v4097
        %4244 = vmatprep.subr.mxu0 %v4100
        %4245 = vmatpush1.msra.mxu0 %v4099
        %4246 = vmatprep.subr.mxu0 %v4102
        %4247 = vmatpush1.msra.mxu0 %v4101
        %4248 = vmatprep.subr.mxu0 %v4104
        %4249 = vmatpush1.msra.mxu0 %v4103
        %4250 = vmatprep.subr.mxu0 %v4106
        %4251 = vmatpush1.msra.mxu0 %v4105
        %4252 = vmatprep.subr.mxu0 %v4108
        %4253 = vmatpush1.msra.mxu0 %v4107
        %4254 = vmatprep.subr.mxu0 %v4110
        %4255 = vmatpush1.msra.mxu0 %v4109
        %4256 = vmatprep.subr.mxu0 %v4112
        %4257 = vmatpush1.msra.mxu0 %v4111
        %4258 = vmatprep.subr.mxu0 %v4114
        %4259 = vmatpush1.msra.mxu0 %v4113
        %4260 = vmatprep.subr.mxu0 %v4116
        %4261 = vmatpush1.msra.mxu0 %v4115
        %4262 = vmatprep.subr.mxu0 %v4118
        %4263 = vmatpush1.msra.mxu0 %v4117
        %4264 = vmatprep.subr.mxu0 %v4120
        %4265 = vmatpush1.msra.mxu0 %v4119
        %4266 = vmatprep.subr.mxu0 %v4122
        %4267 = vmatpush1.msra.mxu0 %v4121
        %4268 = vmatprep.subr.mxu0 %v4124
        %4269 = vmatpush1.msra.mxu0 %v4123
        %4270 = vmatprep.subr.mxu0 %v4126
        %4271 = vmatpush1.msra.mxu0 %v4125
        %4272 = vmatprep.subr.mxu0 %v4128
        %4273 = vmatpush1.msra.mxu0 %v4127
        %4274 = vmatprep.subr.mxu0 %v4130
        %4275 = vmatpush1.msra.mxu0 %v4129
        %4276 = vmatprep.subr.mxu0 %v4132
        %4277 = vmatpush1.msra.mxu0 %v4131
        %4278 = vmatprep.subr.mxu0 %v4134
        %4279 = vmatpush1.msra.mxu0 %v4133
        %4280 = vmatprep.subr.mxu0 %v4136
        %4281 = vmatpush1.msra.mxu0 %v4135
        %4282 = vmatprep.mubr.f32.mxu0 %v4008
        %4283 = vmatmul.mubr.f32.gmra.mrb[0].mxu0 %v4007
        %v4284 = vpop.f32.mrb[0].mxu0
        %v4285 = vadd.f32 %v4214, %v4284
        %v4286 = vpop.f32.mrb[0].mxu0
        %v4287 = vadd.f32 %v4216, %v4286
        %4288 = vdwg.mxu0
        %v4289 = vxor.u32 %v4285, 2147483648
        %v4290 = vxor.u32 %v4287, 2147483648
        %v4291 = vmul.f32 %v4289, 1.442695
        %v4292 = vpow.pop %v4291
        %v4293 = vmul.f32 %v4290, 1.442695
        %v4294 = vpow.pop %v4293
        %v4295 = vadd.f32 %v4292, 1.0
        %v4296 = vadd.f32 %v4294, 1.0
        %v4297 = vrcp.pop %v4295
        %v4298 = vmul.f32 1.0, %v4297
        %v4299 = vrcp.pop %v4296
        %v4300 = vmul.f32 1.0, %v4299
        %v4301 = vlaneseq
        %v4302 = vshrl.u32 %v4301, 7
        %v4303 = vsub.s32 0, %v4302
        %v4304 = vrot.slane %v4298, %v4303
        %v4305 = vlaneseq
        %v4306 = vshrl.u32 %v4305, 7
        %v4307 = vsub.s32 0, %v4306
        %v4308 = vrot.slane %v4300, %v4307
        %v4309 = vmul.f32 %v3938, %v4304
        %v4310 = vmul.f32 %v3939, %v4308
        %v4311 = vmul.f32 %v3940, %v4304
        %v4312 = vmul.f32 %v3941, %v4308
        %v4313 = vmul.f32 %v3942, %v4304
        %v4314 = vmul.f32 %v3943, %v4308
        %v4315 = vmul.f32 %v3944, %v4304
        %v4316 = vmul.f32 %v3945, %v4308
        %v4317 = vmul.f32 %v3946, %v4304
        %v4318 = vmul.f32 %v3947, %v4308
        %v4319 = vmul.f32 %v3948, %v4304
        %v4320 = vmul.f32 %v3949, %v4308
        %v4321 = vmul.f32 %v3950, %v4304
        %v4322 = vmul.f32 %v3951, %v4308
        %v4323 = vmul.f32 %v3952, %v4304
        %v4324 = vmul.f32 %v3953, %v4308
        %v4325 = vadd.f32 %v4309, %v4310
        %4326 = vadd.xlane.f32.xlu0 %v4325
        %v4327 = vpop.xlane.xlu0 %4326
        %v4328 = vadd.f32 %v4311, %v4312
        %4329 = vadd.xlane.f32.xlu0 %v4328
        %v4330 = vpop.xlane.xlu0 %4329
        %v4331 = vadd.f32 %v4313, %v4314
        %4332 = vadd.xlane.f32.xlu0 %v4331
        %v4333 = vpop.xlane.xlu0 %4332
        %v4334 = vadd.f32 %v4315, %v4316
        %4335 = vadd.xlane.f32.xlu0 %v4334
        %v4336 = vpop.xlane.xlu0 %4335
        %v4337 = vadd.f32 %v4317, %v4318
        %4338 = vadd.xlane.f32.xlu0 %v4337
        %v4339 = vpop.xlane.xlu0 %4338
        %v4340 = vadd.f32 %v4319, %v4320
        %4341 = vadd.xlane.f32.xlu0 %v4340
        %v4342 = vpop.xlane.xlu0 %4341
        %v4343 = vadd.f32 %v4321, %v4322
        %4344 = vadd.xlane.f32.xlu0 %v4343
        %v4345 = vpop.xlane.xlu0 %4344
        %v4346 = vadd.f32 %v4323, %v4324
        %4347 = vadd.xlane.f32.xlu0 %v4346
        %v4348 = vpop.xlane.xlu0 %4347
        %v4349 = vmul.f32 %v4327, %v3614
        %v4350 = vmul.f32 %v4330, %v3614
        %v4351 = vmul.f32 %v4333, %v3614
        %v4352 = vmul.f32 %v4336, %v3614
        %v4353 = vmul.f32 %v4339, %v3614
        %v4354 = vmul.f32 %v4342, %v3614
        %v4355 = vmul.f32 %v4345, %v3614
        %v4356 = vmul.f32 %v4348, %v3614
        %v4357 = vld [vmem:[#allocation11] sm:$0x1f]
        %v4358 = vld [vmem:[%s16] sm:$0x1f]
        %v4360 = vsel %vm3625, %v4357, 0
        %4362 = vmatprep.subr.mxu0 0.0
        %4363 = vmatpush1.msra.mxu0 %v4349
        %4364 = vmatprep.subr.mxu0 0.0
        %4365 = vmatpush1.msra.mxu0 %v4350
        %4366 = vmatprep.subr.mxu0 0.0
        %4367 = vmatpush1.msra.mxu0 %v4351
        %4368 = vmatprep.subr.mxu0 0.0
        %4369 = vmatpush1.msra.mxu0 %v4352
        %4370 = vmatprep.subr.mxu0 0.0
        %4371 = vmatpush1.msra.mxu0 %v4353
        %4372 = vmatprep.subr.mxu0 0.0
        %4373 = vmatpush1.msra.mxu0 %v4354
        %4374 = vmatprep.subr.mxu0 0.0
        %4375 = vmatpush1.msra.mxu0 %v4355
        %4376 = vmatprep.subr.mxu0 0.0
        %4377 = vmatpush1.msra.mxu0 %v4356
        %4378 = vmatprep.subr.mxu0 0.0
        %4379 = vmatpush1.msra.mxu0 0.0
        %4380 = vmatprep.subr.mxu0 0.0
        %4381 = vmatpush1.msra.mxu0 0.0
        %4382 = vmatprep.subr.mxu0 0.0
        %4383 = vmatpush1.msra.mxu0 0.0
        %4384 = vmatprep.subr.mxu0 0.0
        %4385 = vmatpush1.msra.mxu0 0.0
        %4386 = vmatprep.subr.mxu0 0.0
        %4387 = vmatpush1.msra.mxu0 0.0
        %4388 = vmatprep.subr.mxu0 0.0
        %4389 = vmatpush1.msra.mxu0 0.0
        %4390 = vmatprep.subr.mxu0 0.0
        %4391 = vmatpush1.msra.mxu0 0.0
        %4392 = vmatprep.subr.mxu0 0.0
        %4393 = vmatpush1.msra.mxu0 0.0
        %4394 = vmatprep.subr.mxu0 0.0
        %4395 = vmatpush1.msra.mxu0 0.0
        %4396 = vmatprep.subr.mxu0 0.0
        %4397 = vmatpush1.msra.mxu0 0.0
        %4398 = vmatprep.subr.mxu0 0.0
        %4399 = vmatpush1.msra.mxu0 0.0
        %4400 = vmatprep.subr.mxu0 0.0
        %4401 = vmatpush1.msra.mxu0 0.0
        %4402 = vmatprep.subr.mxu0 0.0
        %4403 = vmatpush1.msra.mxu0 0.0
        %4404 = vmatprep.subr.mxu0 0.0
        %4405 = vmatpush1.msra.mxu0 0.0
        %4406 = vmatprep.subr.mxu0 0.0
        %4407 = vmatpush1.msra.mxu0 0.0
        %4408 = vmatprep.subr.mxu0 0.0
        %4409 = vmatpush1.msra.mxu0 0.0
        %4410 = vmatprep.subr.mxu0 0.0
        %4411 = vmatpush1.msra.mxu0 0.0
        %4412 = vmatprep.subr.mxu0 0.0
        %4413 = vmatpush1.msra.mxu0 0.0
        %4414 = vmatprep.subr.mxu0 0.0
        %4415 = vmatpush1.msra.mxu0 0.0
        %4416 = vmatprep.subr.mxu0 0.0
        %4417 = vmatpush1.msra.mxu0 0.0
        %4418 = vmatprep.subr.mxu0 0.0
        %4419 = vmatpush1.msra.mxu0 0.0
        %4420 = vmatprep.subr.mxu0 0.0
        %4421 = vmatpush1.msra.mxu0 0.0
        %4422 = vmatprep.subr.mxu0 0.0
        %4423 = vmatpush1.msra.mxu0 0.0
        %4424 = vmatprep.subr.mxu0 0.0
        %4425 = vmatpush1.msra.mxu0 0.0
        %4426 = vmatprep.mubr.f32.mxu0 0.0
        %4427 = vmatmul.mubr.f32.gmra.mrb[0].mxu0 %v4360
        %v4428 = vpop.f32.mrb[0].mxu0
        %v4429 = vadd.f32 %v4358, %v4428
        %v4430 = vpop.f32.mrb[0].mxu0
        %4431 = vdwg.mxu0
        %vm4432 = vcmask 4096
        %4433 = vst.msk [vmem:[%s617] sm:$0x1f] %vm4432, %v4429
        %p4434 = scmp.lt.s32.totalorder %s35, 1
        %s4435 = scalar_select %p4434, %s35, 1
        %s4436 = smul.addr %s4435, 8
        %s4437 = scalar_lea.vmem %s17, %s4436
        // Predicated region
        $region109: #{custom_efficientnet_b7_forward.1} parent=87 // pred_check
          %p4438 = pneg %p415
        $region110: #{custom_efficientnet_b7_forward.1} parent=87 // pred_check_branch
          %4440 = sbr.rel (%p4438) target = $region112
        $region111: #{custom_efficientnet_b7_forward.1} parent=87 // pred_region
          _
        $region112: #{custom_efficientnet_b7_forward.1} parent=87 // pred_fallthru
          _
      $region88: #{custom_efficientnet_b7_forward.1} parent=5 // pred_fallthru
        _
      %p4441 = scmp.le.s32.totalorder 2, %s30
      // Predicated region
      $region113: #{custom_efficientnet_b7_forward.1} parent=5 // pred_check
        %p4442 = pneg %p4441
      $region114: #{custom_efficientnet_b7_forward.1} parent=5 // pred_check_branch
        %4444 = sbr.rel (%p4442) target = $region116
      $region115: #{custom_efficientnet_b7_forward.1} parent=5 // pred_region
        %s4445 = ssub.s32 %s30, 2
        // Predicated region
        $region117: #{custom_efficientnet_b7_forward.1} parent=115 // pred_check
          %p4446 = pneg %p421
        $region118: #{custom_efficientnet_b7_forward.1} parent=115 // pred_check_branch
          %4448 = sbr.rel (%p4446) target = $region120
        $region119: #{custom_efficientnet_b7_forward.1} parent=115 // pred_region
          %p4449 = scmp.lt.s32.totalorder %s36, 1
          %s4450 = scalar_select %p4449, %s36, 1
          %s4451 = smul.addr %s4450, 8
          %s4452 = scalar_lea.vmem %s17, %s4451
        $region120: #{custom_efficientnet_b7_forward.1} parent=115 // pred_fallthru
          _
      $region116: #{custom_efficientnet_b7_forward.1} parent=5 // pred_fallthru
        _
    $region6: #{custom_efficientnet_b7_forward.1} parent=1 // loop_footer
      %s34 = sadd.s32 1, %s30
    $region7: #{custom_efficientnet_b7_forward.1} parent=1 // loop_footer_branch
      %29 = sbr.rel target = $region3
    $region8: #{custom_efficientnet_b7_forward.1} parent=1 // loop_exit
      _
    %4453 = vsyncpa [#allocation5], 1
    %s4454 = scalar_lea.sflag [#allocation5], 1
    %4455 = vsyncpa %s4454, 1
    %4456 = vsyncpa [#allocation7], 1
    %4457 = vsyncpa [#allocation10], 1

</llo_original>
